<compile_context>
chip_gen: v7x
topology: tpu7x:2x2x1
jax: 0.10.0
libtpu: 0.0.40
codegen_flags: <defaults>
</compile_context>

<pallas_src>
import numpy as np
import jax
import jax.numpy as jnp
from jax.experimental import pallas as pl
from jax.experimental.pallas import tpu as pltpu

LANE = 128


def _round_up(v, m=LANE):
    return ((int(v) + m - 1) // m) * m


# ----------------------------------------------------------------------------
# Pallas kernel: fused 2-layer relational GNN, single invocation (no grid).
# ----------------------------------------------------------------------------
def _make_gnn_kernel(R, Npad, h1p, h2p):
    def gnn_kernel(x_ref, wcat_ref, b1_ref, acat_ref, a2_ref, w2cat_ref,
                   b2_ref, out_ref, stack_scr):
        x = x_ref[...]                                        # [Npad, g_pad] bf16
        # One wide MXU matmul: block 0 is the root transform (x @ W_root1),
        # blocks 1..R are the per-relation message transforms (x @ W_r).
        msg = jnp.dot(x, wcat_ref[...], preferred_element_type=jnp.float32)
        h1 = msg[:, :h1p] + b1_ref[...]                       # root + bias (f32)
        # Re-layout messages row-stacked (bf16 cast at store time) so the
        # relation aggregation becomes a single deep-K matmul.
        for r in range(R):
            stack_scr[r * Npad:(r + 1) * Npad, :] = (
                msg[:, (r + 1) * h1p:(r + 2) * h1p].astype(jnp.bfloat16))
        # h1 += sum_r A_r @ (x @ W_r)   as ONE [Npad, R*Npad] @ [R*Npad, h1p].
        h1 = h1 + jnp.dot(acat_ref[...], stack_scr[...],
                          preferred_element_type=jnp.float32)
        h1 = jnp.maximum(h1, 0.0)                             # ReLU
        h1b = h1.astype(jnp.bfloat16)
        # Layer 2: W2 | W2_root packed as one [h1p, 2*h2p] weight, split here.
        proj = jnp.dot(h1b, w2cat_ref[...], preferred_element_type=jnp.float32)
        agg = proj[:, :h2p]
        root = proj[:, h2p:]
        h2 = (jnp.dot(a2_ref[...], agg.astype(jnp.bfloat16),
                      preferred_element_type=jnp.float32) + root + b2_ref[...])
        out_ref[...] = jnp.where(h2 > 0, h2, 0.01 * h2)       # LeakyReLU(0.01)
    return gnn_kernel


_GNN_FN_CACHE = {}


def _get_gnn_fn(R, Npad, g_pad, h1p, h2p):
    key = (R, Npad, g_pad, h1p, h2p)
    fn = _GNN_FN_CACHE.get(key)
    if fn is None:
        kernel = _make_gnn_kernel(R, Npad, h1p, h2p)
        fn = jax.jit(pl.pallas_call(
            kernel,
            out_shape=jax.ShapeDtypeStruct((Npad, h2p), jnp.float32),
            in_specs=[pl.BlockSpec(memory_space=pltpu.MemorySpace.VMEM)] * 7,
            out_specs=pl.BlockSpec(memory_space=pltpu.MemorySpace.VMEM),
            scratch_shapes=[pltpu.VMEM((R * Npad, h1p), jnp.bfloat16)],
        ))
        _GNN_FN_CACHE[key] = fn
    return fn


def run_gnn(x_pad, W_cat, b1, A_cat, A2, W2cat, b2, R):
    Npad, g_pad = x_pad.shape
    h1p = b1.shape[1]
    h2p = b2.shape[1]
    return _get_gnn_fn(R, Npad, g_pad, h1p, h2p)(
        x_pad, W_cat, b1, A_cat, A2, W2cat, b2)


# Pure-JAX reference mirroring the kernel math (same dtypes / cast points).
def gnn_reference(x_pad, W_cat, b1, A_cat, A2, W2cat, b2, R):
    h1p = b1.shape[1]
    h2p = b2.shape[1]
    msg = jnp.dot(x_pad, W_cat, preferred_element_type=jnp.float32)
    h1 = msg[:, :h1p] + b1
    stack = jnp.concatenate(
        [msg[:, (r + 1) * h1p:(r + 2) * h1p].astype(jnp.bfloat16)
         for r in range(R)], axis=0)
    h1 = h1 + jnp.dot(A_cat, stack, preferred_element_type=jnp.float32)
    h1 = jnp.maximum(h1, 0.0)
    h1b = h1.astype(jnp.bfloat16)
    proj = jnp.dot(h1b, W2cat, preferred_element_type=jnp.float32)
    agg, root = proj[:, :h2p], proj[:, h2p:]
    h2 = (jnp.dot(A2, agg.astype(jnp.bfloat16),
                  preferred_element_type=jnp.float32) + root + b2)
    return jnp.where(h2 > 0, h2, 0.01 * h2)


# ----------------------------------------------------------------------------
# Host-side glue (exact port of feature_packing / batch_graphify / edge_perms)
# ----------------------------------------------------------------------------
def pack_features_host(x_np, lengths, n_modals, Npad, g_pad, g_dim):
    """Vectorized host-side feature packing: pure NumPy, one device put later."""
    lengths = [int(l) for l in lengths]
    x_pad = np.zeros((Npad, g_pad), np.float32)
    row = 0
    for m in range(n_modals):
        for j, L in enumerate(lengths):
            x_pad[row:row + L, :g_dim] = x_np[m, j, :L, :]
            row += L
    return x_pad


def multi_concat(nodes_feature, lengths, n_modals):
    sum_len = int(np.sum(lengths))
    return jnp.concatenate(
        [nodes_feature[m * sum_len:(m + 1) * sum_len] for m in range(n_modals)],
        axis=-1)


class Args:
    modalities = "atv"
    wp = 2
    wf = 2
    edge_type = "temp_multi"


class GraphModelPallas:
    def __init__(self, g_dim, h1_dim, h2_dim, args, key):
        self.n_modals = len(args.modalities)
        self.wp = args.wp
        self.wf = args.wf
        edge_temp = 'temp' in args.edge_type
        edge_multi = 'multi' in args.edge_type
        edge_type_to_idx = {}
        if edge_temp:
            for j in [-1, 1, 0]:
                for k in range(self.n_modals):
                    edge_type_to_idx[str(j) + str(k) + str(k)] = len(edge_type_to_idx)
        else:
            for j in range(self.n_modals):
                edge_type_to_idx['0' + str(j) + str(j)] = len(edge_type_to_idx)
        if edge_multi:
            for j in range(self.n_modals):
                for k in range(self.n_modals):
                    if j != k:
                        edge_type_to_idx['0' + str(j) + str(k)] = len(edge_type_to_idx)
        self.edge_type_to_idx = edge_type_to_idx
        self.num_relations = len(edge_type_to_idx)
        # NOTE: the reference swaps these two flags — preserved for bug-for-bug parity.
        self.edge_temp = edge_multi
        self.edge_multi = edge_temp

        self.g_dim, self.h1_dim, self.h2_dim = g_dim, h1_dim, h2_dim
        self.g_pad = _round_up(g_dim)
        self.h1p = _round_up(h1_dim)
        self.h2p = _round_up(h2_dim)
        R = self.num_relations

        # Deterministic GNN parameters.
        ks = jax.random.split(key, 6)
        s1 = 1.0 / np.sqrt(g_dim)
        s2 = 1.0 / np.sqrt(h1_dim)
        W_rel = np.asarray(jax.random.normal(ks[0], (R, g_dim, h1_dim), jnp.float32)) * s1
        W_root1 = np.asarray(jax.random.normal(ks[1], (g_dim, h1_dim), jnp.float32)) * s1
        b1 = np.asarray(jax.random.normal(ks[2], (1, h1_dim), jnp.float32)) * 0.01
        W2 = np.asarray(jax.random.normal(ks[3], (h1_dim, h2_dim), jnp.float32)) * s2
        W2_root = np.asarray(jax.random.normal(ks[4], (h1_dim, h2_dim), jnp.float32)) * s2
        b2 = np.asarray(jax.random.normal(ks[5], (1, h2_dim), jnp.float32)) * 0.01

        # W_cat = [W_root1 | W_0 | ... | W_{R-1}], zero-padded lane-dense.
        # (Root fused in as block 0: one wide matmul streams x through the MXU once.)
        W_cat = np.zeros((self.g_pad, (R + 1) * self.h1p), np.float32)
        W_cat[:g_dim, :h1_dim] = W_root1
        for r in range(R):
            W_cat[:g_dim, (r + 1) * self.h1p:(r + 1) * self.h1p + h1_dim] = W_rel[r]
        self.W_cat = jnp.asarray(W_cat, jnp.bfloat16)

        # W2cat = [W2 | W2_root] -> single 256-wide layer-2 projection.
        W2cat = np.zeros((self.h1p, 2 * self.h2p), np.float32)
        W2cat[:h1_dim, :h2_dim] = W2
        W2cat[:h1_dim, self.h2p:self.h2p + h2_dim] = W2_root
        self.W2cat = jnp.asarray(W2cat, jnp.bfloat16)

        self.b1_p = jnp.asarray(np.pad(b1, ((0, 0), (0, self.h1p - h1_dim))), jnp.float32)
        self.b2_p = jnp.asarray(np.pad(b2, ((0, 0), (0, self.h2p - h2_dim))), jnp.float32)

        self._graph_cache = {}

    # ---------------- graph construction (host-side Python, as in reference) --
    def edge_perms(self, length, total_lengths):
        all_perms = set()
        array = np.arange(length)
        for j in range(length):
            if self.wp == -1 and self.wf == -1:
                eff_array = array
            elif self.wp == -1:
                eff_array = array[:min(length, j + self.wf)]
            elif self.wf == -1:
                eff_array = array[max(0, j - self.wp):]
            else:
                eff_array = array[max(0, j - self.wp):min(length, j + self.wf)]
            perms = set()
            for k in range(self.n_modals):
                node_index = j + k * total_lengths
                if self.edge_multi is True:
                    for item in eff_array:
                        perms.add((node_index, int(item) + k * total_lengths))
                else:
                    perms.add((node_index, node_index))
                if self.edge_temp is True:
                    for l in range(self.n_modals):
                        if l != k:
                            perms.add((node_index, j + l * total_lengths))
            all_perms = all_perms.union(perms)
        return list(all_perms)

    def batch_graphify(self, lengths):
        node_type, edge_index, edge_type, edge_index_lengths = [], [], [], []
        lengths = list(np.asarray(lengths).tolist())
        sum_length = 0
        total_length = sum(lengths)
        batch_size = len(lengths)
        for k in range(self.n_modals):
            for j in range(batch_size):
                node_type.extend([k] * lengths[j])
        for j in range(batch_size):
            cur_len = lengths[j]
            perms = self.edge_perms(cur_len, total_length)
            edge_index_lengths.append(len(perms))
            for item in perms:
                vertices, neighbor = item[0], item[1]
                edge_index.append((vertices + sum_length, neighbor + sum_length))
                if vertices % total_length > neighbor % total_length:
                    temporal_type = 1
                elif vertices % total_length < neighbor % total_length:
                    temporal_type = -1
                else:
                    temporal_type = 0
                edge_type.append(self.edge_type_to_idx[
                    str(temporal_type)
                    + str(node_type[vertices + sum_length])
                    + str(node_type[neighbor + sum_length])])
            sum_length += cur_len
        node_type = np.asarray(node_type, np.int32)
        edge_index = np.asarray(edge_index, np.int32).reshape(-1, 2).T  # [2, E]
        edge_type = np.asarray(edge_type, np.int32)
        edge_index_lengths = np.asarray(edge_index_lengths, np.int32)
        return node_type, edge_index, edge_type, edge_index_lengths

    # ---------------- cached, vectorized adjacency assembly -------------------
    def _get_graph(self, lengths_key):
        if lengths_key in self._graph_cache:
            return self._graph_cache[lengths_key]
        lengths = np.asarray(lengths_key, np.int32)
        _, edge_index, edge_type, _ = self.batch_graphify(lengths)
        N = self.n_modals * int(lengths.sum())
        Npad = _round_up(max(N, 1))
        R = self.num_relations        # FIXED R (zero blocks kept): shape-stable kernel.

        # Dense per-relation adjacency (mean aggregation over incoming edges).
        A = np.zeros((R, Npad, Npad), np.float32)
        A2 = np.zeros((Npad, Npad), np.float32)
        if edge_type.size:
            src, dst = edge_index[0], edge_index[1]
            np.add.at(A, (edge_type, dst, src), 1.0)
            np.add.at(A2, (dst, src), 1.0)
        A = A / np.maximum(A.sum(axis=2, keepdims=True), 1.0)
        A2 = A2 / np.maximum(A2.sum(axis=1, keepdims=True), 1.0)
        # A_cat[:, r*Npad:(r+1)*Npad] = A_r  (matches the row-stacked message layout).
        A_cat = np.ascontiguousarray(A.transpose(1, 0, 2)).reshape(Npad, R * Npad)

        # Resident-VMEM sanity check before the kernel is built.
        resident = (Npad * self.g_pad * 2                      # x (bf16)
                    + self.g_pad * (R + 1) * self.h1p * 2      # W_cat
                    + Npad * R * Npad * 2                      # A_cat
                    + Npad * Npad * 2                          # A2
                    + self.h1p * 2 * self.h2p * 2              # W2cat
                    + R * Npad * self.h1p * 2                  # msg-stack scratch
                    + Npad * self.h2p * 4)                     # out (f32)
        # TODO(synk): before larger-N use, add a row-tile "parallel" grid axis
        # (stream A_cat/A2 in (tile_n, ...) blocks, two-pass layer 2) — the
        # dense R*Npad^2 A_cat blows past v7x's 64 MiB VMEM well before v5e/v6e.
        assert resident < 12 * (1 << 20), (
            f"resident VMEM {resident / 2**20:.1f} MiB too large for the "
            "single-invocation kernel; implement the row-tile grid (see TODO).")

        entry = (Npad,
                 jnp.asarray(A_cat, jnp.bfloat16),
                 jnp.asarray(A2, jnp.bfloat16))
        self._graph_cache[lengths_key] = entry
        return entry

    def _prepare(self, x, lengths):
        lengths = np.asarray(lengths)
        Npad, A_cat, A2 = self._get_graph(tuple(int(l) for l in lengths))
        x_np = np.asarray(x, np.float32)
        x_pad_np = pack_features_host(x_np, lengths, self.n_modals, Npad,
                                      self.g_pad, self.g_dim)
        N = self.n_modals * int(lengths.sum())
        x_pad = jnp.asarray(x_pad_np, jnp.bfloat16)   # single device put
        return x_pad, N, A_cat, A2, lengths

    # ---------------- forward ------------------------------------------------
    def forward(self, x, lengths):
        x_pad, N, A_cat, A2, lengths = self._prepare(x, lengths)
        out = run_gnn(x_pad, self.W_cat, self.b1_p, A_cat, A2,
                      self.W2cat, self.b2_p, self.num_relations)
        out = out[:N, :self.h2_dim]
        return multi_concat(out, lengths, self.n_modals)

    def forward_reference(self, x, lengths):
        x_pad, N, A_cat, A2, lengths = self._prepare(x, lengths)
        out = gnn_reference(x_pad, self.W_cat, self.b1_p, A_cat, A2,
                            self.W2cat, self.b2_p, self.num_relations)
        out = out[:N, :self.h2_dim]
        return multi_concat(out, lengths, self.n_modals)


# ----------------------------------------------------------------------------
if __name__ == "__main__":
    key = jax.random.PRNGKey(0)
    k_x, k_p = jax.random.split(key)

    args = Args()
    g_dim, h1_dim, h2_dim = 32, 32, 32
    batch, seq_max = 2, 8
    n_modals = len(args.modalities)

    lengths = np.array([6, 8], dtype=np.int32)
    x = jax.random.normal(k_x, (n_modals, batch, seq_max, g_dim), jnp.float32)

    model = GraphModelPallas(g_dim, h1_dim, h2_dim, args, k_p)
    out = jax.block_until_ready(model.forward(x, lengths))

    expected_shape = (int(lengths.sum()), n_modals * h2_dim)
    assert out.shape == expected_shape, (out.shape, expected_shape)
    assert bool(jnp.all(jnp.isfinite(out)))

    # Second call with the same lengths hits the graph + kernel caches (no recompile).
    out2 = jax.block_until_ready(model.forward(x, lengths))
    assert bool(jnp.allclose(out, out2))

    # Validate against a pure-JAX reference of the same (bf16) math.
    ref = jax.block_until_ready(model.forward_reference(x, lengths))
    max_err = float(jnp.max(jnp.abs(out - ref)))
    assert max_err < 5e-2, f"kernel vs reference mismatch: max abs err {max_err}"

    print("KERNEL_OK")
</pallas_src>

<mosaic_0001>
module attributes {stable_mosaic.version = 11 : i64} {
  func.func @gnn_kernel(%arg0: memref<128x128xbf16, #tpu.memory_space<vmem>>, %arg1: memref<128x2048xbf16, #tpu.memory_space<vmem>>, %arg2: memref<1x128xf32, #tpu.memory_space<vmem>>, %arg3: memref<128x1920xbf16, #tpu.memory_space<vmem>>, %arg4: memref<128x128xbf16, #tpu.memory_space<vmem>>, %arg5: memref<128x256xbf16, #tpu.memory_space<vmem>>, %arg6: memref<1x128xf32, #tpu.memory_space<vmem>>, %arg7: memref<128x128xf32, #tpu.memory_space<vmem>>, %arg8: memref<1920x128xbf16, #tpu.memory_space<vmem>>) attributes {dimension_semantics = [], scalar_prefetch = 0 : i64, scratch_operands = 1 : i64, tpu.core_type = #tpu.core_type<tc>} {
    %c0 = arith.constant 0 : index
    %c0_0 = arith.constant 0 : index
    %0 = vector.load %arg0[%c0, %c0_0] : memref<128x128xbf16, #tpu.memory_space<vmem>>, vector<128x128xbf16>
    %c0_1 = arith.constant 0 : index
    %c0_2 = arith.constant 0 : index
    %1 = vector.load %arg1[%c0_1, %c0_2] : memref<128x2048xbf16, #tpu.memory_space<vmem>>, vector<128x2048xbf16>
    %cst = arith.constant dense<0.000000e+00> : vector<128x2048xf32>
    %2 = tpu.matmul %0, %1, %cst {dimension_numbers = #tpu.dot_dimension_numbers<[1], [0], [0], [1], [0, 0, 1, 1], [], []>} : vector<128x128xbf16>, vector<128x2048xbf16>, vector<128x2048xf32> -> vector<128x2048xf32>
    %3 = vector.extract_strided_slice %2 {offsets = [0, 0], sizes = [128, 128], strides = [1, 1]} : vector<128x2048xf32> to vector<128x128xf32>
    %c0_3 = arith.constant 0 : index
    %c0_4 = arith.constant 0 : index
    %4 = vector.load %arg2[%c0_3, %c0_4] : memref<1x128xf32, #tpu.memory_space<vmem>>, vector<1x128xf32>
    %5 = vector.broadcast %4 : vector<1x128xf32> to vector<128x128xf32>
    %6 = arith.addf %3, %5 : vector<128x128xf32>
    %7 = vector.extract_strided_slice %2 {offsets = [0, 128], sizes = [128, 128], strides = [1, 1]} : vector<128x2048xf32> to vector<128x128xf32>
    %8 = arith.truncf %7 : vector<128x128xf32> to vector<128x128xbf16>
    %c0_5 = arith.constant 0 : index
    %c0_6 = arith.constant 0 : index
    %9 = vector.load %arg8[%c0_5, %c0_6] : memref<1920x128xbf16, #tpu.memory_space<vmem>>, vector<128x128xbf16>
    tpu.vector_store %arg8[%c0_5, %c0_6], %8 {strides = array<i32>} : memref<1920x128xbf16, #tpu.memory_space<vmem>>, vector<128x128xbf16>,
    %10 = vector.extract_strided_slice %2 {offsets = [0, 256], sizes = [128, 128], strides = [1, 1]} : vector<128x2048xf32> to vector<128x128xf32>
    %11 = arith.truncf %10 : vector<128x128xf32> to vector<128x128xbf16>
    %c128 = arith.constant 128 : index
    %c0_7 = arith.constant 0 : index
    %12 = vector.load %arg8[%c128, %c0_7] : memref<1920x128xbf16, #tpu.memory_space<vmem>>, vector<128x128xbf16>
    tpu.vector_store %arg8[%c128, %c0_7], %11 {strides = array<i32>} : memref<1920x128xbf16, #tpu.memory_space<vmem>>, vector<128x128xbf16>,
    %13 = vector.extract_strided_slice %2 {offsets = [0, 384], sizes = [128, 128], strides = [1, 1]} : vector<128x2048xf32> to vector<128x128xf32>
    %14 = arith.truncf %13 : vector<128x128xf32> to vector<128x128xbf16>
    %c256 = arith.constant 256 : index
    %c0_8 = arith.constant 0 : index
    %15 = vector.load %arg8[%c256, %c0_8] : memref<1920x128xbf16, #tpu.memory_space<vmem>>, vector<128x128xbf16>
    tpu.vector_store %arg8[%c256, %c0_8], %14 {strides = array<i32>} : memref<1920x128xbf16, #tpu.memory_space<vmem>>, vector<128x128xbf16>,
    %16 = vector.extract_strided_slice %2 {offsets = [0, 512], sizes = [128, 128], strides = [1, 1]} : vector<128x2048xf32> to vector<128x128xf32>
    %17 = arith.truncf %16 : vector<128x128xf32> to vector<128x128xbf16>
    %c384 = arith.constant 384 : index
    %c0_9 = arith.constant 0 : index
    %18 = vector.load %arg8[%c384, %c0_9] : memref<1920x128xbf16, #tpu.memory_space<vmem>>, vector<128x128xbf16>
    tpu.vector_store %arg8[%c384, %c0_9], %17 {strides = array<i32>} : memref<1920x128xbf16, #tpu.memory_space<vmem>>, vector<128x128xbf16>,
    %19 = vector.extract_strided_slice %2 {offsets = [0, 640], sizes = [128, 128], strides = [1, 1]} : vector<128x2048xf32> to vector<128x128xf32>
    %20 = arith.truncf %19 : vector<128x128xf32> to vector<128x128xbf16>
    %c512 = arith.constant 512 : index
    %c0_10 = arith.constant 0 : index
    %21 = vector.load %arg8[%c512, %c0_10] : memref<1920x128xbf16, #tpu.memory_space<vmem>>, vector<128x128xbf16>
    tpu.vector_store %arg8[%c512, %c0_10], %20 {strides = array<i32>} : memref<1920x128xbf16, #tpu.memory_space<vmem>>, vector<128x128xbf16>,
    %22 = vector.extract_strided_slice %2 {offsets = [0, 768], sizes = [128, 128], strides = [1, 1]} : vector<128x2048xf32> to vector<128x128xf32>
    %23 = arith.truncf %22 : vector<128x128xf32> to vector<128x128xbf16>
    %c640 = arith.constant 640 : index
    %c0_11 = arith.constant 0 : index
    %24 = vector.load %arg8[%c640, %c0_11] : memref<1920x128xbf16, #tpu.memory_space<vmem>>, vector<128x128xbf16>
    tpu.vector_store %arg8[%c640, %c0_11], %23 {strides = array<i32>} : memref<1920x128xbf16, #tpu.memory_space<vmem>>, vector<128x128xbf16>,
    %25 = vector.extract_strided_slice %2 {offsets = [0, 896], sizes = [128, 128], strides = [1, 1]} : vector<128x2048xf32> to vector<128x128xf32>
    %26 = arith.truncf %25 : vector<128x128xf32> to vector<128x128xbf16>
    %c768 = arith.constant 768 : index
    %c0_12 = arith.constant 0 : index
    %27 = vector.load %arg8[%c768, %c0_12] : memref<1920x128xbf16, #tpu.memory_space<vmem>>, vector<128x128xbf16>
    tpu.vector_store %arg8[%c768, %c0_12], %26 {strides = array<i32>} : memref<1920x128xbf16, #tpu.memory_space<vmem>>, vector<128x128xbf16>,
    %28 = vector.extract_strided_slice %2 {offsets = [0, 1024], sizes = [128, 128], strides = [1, 1]} : vector<128x2048xf32> to vector<128x128xf32>
    %29 = arith.truncf %28 : vector<128x128xf32> to vector<128x128xbf16>
    %c896 = arith.constant 896 : index
    %c0_13 = arith.constant 0 : index
    %30 = vector.load %arg8[%c896, %c0_13] : memref<1920x128xbf16, #tpu.memory_space<vmem>>, vector<128x128xbf16>
    tpu.vector_store %arg8[%c896, %c0_13], %29 {strides = array<i32>} : memref<1920x128xbf16, #tpu.memory_space<vmem>>, vector<128x128xbf16>,
    %31 = vector.extract_strided_slice %2 {offsets = [0, 1152], sizes = [128, 128], strides = [1, 1]} : vector<128x2048xf32> to vector<128x128xf32>
    %32 = arith.truncf %31 : vector<128x128xf32> to vector<128x128xbf16>
    %c1024 = arith.constant 1024 : index
    %c0_14 = arith.constant 0 : index
    %33 = vector.load %arg8[%c1024, %c0_14] : memref<1920x128xbf16, #tpu.memory_space<vmem>>, vector<128x128xbf16>
    tpu.vector_store %arg8[%c1024, %c0_14], %32 {strides = array<i32>} : memref<1920x128xbf16, #tpu.memory_space<vmem>>, vector<128x128xbf16>,
    %34 = vector.extract_strided_slice %2 {offsets = [0, 1280], sizes = [128, 128], strides = [1, 1]} : vector<128x2048xf32> to vector<128x128xf32>
    %35 = arith.truncf %34 : vector<128x128xf32> to vector<128x128xbf16>
    %c1152 = arith.constant 1152 : index
    %c0_15 = arith.constant 0 : index
    %36 = vector.load %arg8[%c1152, %c0_15] : memref<1920x128xbf16, #tpu.memory_space<vmem>>, vector<128x128xbf16>
    tpu.vector_store %arg8[%c1152, %c0_15], %35 {strides = array<i32>} : memref<1920x128xbf16, #tpu.memory_space<vmem>>, vector<128x128xbf16>,
    %37 = vector.extract_strided_slice %2 {offsets = [0, 1408], sizes = [128, 128], strides = [1, 1]} : vector<128x2048xf32> to vector<128x128xf32>
    %38 = arith.truncf %37 : vector<128x128xf32> to vector<128x128xbf16>
    %c1280 = arith.constant 1280 : index
    %c0_16 = arith.constant 0 : index
    %39 = vector.load %arg8[%c1280, %c0_16] : memref<1920x128xbf16, #tpu.memory_space<vmem>>, vector<128x128xbf16>
    tpu.vector_store %arg8[%c1280, %c0_16], %38 {strides = array<i32>} : memref<1920x128xbf16, #tpu.memory_space<vmem>>, vector<128x128xbf16>,
    %40 = vector.extract_strided_slice %2 {offsets = [0, 1536], sizes = [128, 128], strides = [1, 1]} : vector<128x2048xf32> to vector<128x128xf32>
    %41 = arith.truncf %40 : vector<128x128xf32> to vector<128x128xbf16>
    %c1408 = arith.constant 1408 : index
    %c0_17 = arith.constant 0 : index
    %42 = vector.load %arg8[%c1408, %c0_17] : memref<1920x128xbf16, #tpu.memory_space<vmem>>, vector<128x128xbf16>
    tpu.vector_store %arg8[%c1408, %c0_17], %41 {strides = array<i32>} : memref<1920x128xbf16, #tpu.memory_space<vmem>>, vector<128x128xbf16>,
    %43 = vector.extract_strided_slice %2 {offsets = [0, 1664], sizes = [128, 128], strides = [1, 1]} : vector<128x2048xf32> to vector<128x128xf32>
    %44 = arith.truncf %43 : vector<128x128xf32> to vector<128x128xbf16>
    %c1536 = arith.constant 1536 : index
    %c0_18 = arith.constant 0 : index
    %45 = vector.load %arg8[%c1536, %c0_18] : memref<1920x128xbf16, #tpu.memory_space<vmem>>, vector<128x128xbf16>
    tpu.vector_store %arg8[%c1536, %c0_18], %44 {strides = array<i32>} : memref<1920x128xbf16, #tpu.memory_space<vmem>>, vector<128x128xbf16>,
    %46 = vector.extract_strided_slice %2 {offsets = [0, 1792], sizes = [128, 128], strides = [1, 1]} : vector<128x2048xf32> to vector<128x128xf32>
    %47 = arith.truncf %46 : vector<128x128xf32> to vector<128x128xbf16>
    %c1664 = arith.constant 1664 : index
    %c0_19 = arith.constant 0 : index
    %48 = vector.load %arg8[%c1664, %c0_19] : memref<1920x128xbf16, #tpu.memory_space<vmem>>, vector<128x128xbf16>
    tpu.vector_store %arg8[%c1664, %c0_19], %47 {strides = array<i32>} : memref<1920x128xbf16, #tpu.memory_space<vmem>>, vector<128x128xbf16>,
    %49 = vector.extract_strided_slice %2 {offsets = [0, 1920], sizes = [128, 128], strides = [1, 1]} : vector<128x2048xf32> to vector<128x128xf32>
    %50 = arith.truncf %49 : vector<128x128xf32> to vector<128x128xbf16>
    %c1792 = arith.constant 1792 : index
    %c0_20 = arith.constant 0 : index
    %51 = vector.load %arg8[%c1792, %c0_20] : memref<1920x128xbf16, #tpu.memory_space<vmem>>, vector<128x128xbf16>
    tpu.vector_store %arg8[%c1792, %c0_20], %50 {strides = array<i32>} : memref<1920x128xbf16, #tpu.memory_space<vmem>>, vector<128x128xbf16>,
    %c0_21 = arith.constant 0 : index
    %c0_22 = arith.constant 0 : index
    %52 = vector.load %arg3[%c0_21, %c0_22] : memref<128x1920xbf16, #tpu.memory_space<vmem>>, vector<128x1920xbf16>
    %c0_23 = arith.constant 0 : index
    %c0_24 = arith.constant 0 : index
    %53 = vector.load %arg8[%c0_23, %c0_24] : memref<1920x128xbf16, #tpu.memory_space<vmem>>, vector<1920x128xbf16>
    %cst_25 = arith.constant dense<0.000000e+00> : vector<128x128xf32>
    %54 = tpu.matmul %52, %53, %cst_25 {dimension_numbers = #tpu.dot_dimension_numbers<[1], [0], [0], [1], [0, 0, 1, 1], [], []>} : vector<128x1920xbf16>, vector<1920x128xbf16>, vector<128x128xf32> -> vector<128x128xf32>
    %55 = arith.addf %6, %54 : vector<128x128xf32>
    %cst_26 = arith.constant 0.000000e+00 : f32
    %56 = vector.broadcast %cst_26 : f32 to vector<128x128xf32>
    %57 = arith.maximumf %55, %56 : vector<128x128xf32>
    %58 = arith.truncf %57 : vector<128x128xf32> to vector<128x128xbf16>
    %c0_27 = arith.constant 0 : index
    %c0_28 = arith.constant 0 : index
    %59 = vector.load %arg5[%c0_27, %c0_28] : memref<128x256xbf16, #tpu.memory_space<vmem>>, vector<128x256xbf16>
    %cst_29 = arith.constant dense<0.000000e+00> : vector<128x256xf32>
    %60 = tpu.matmul %58, %59, %cst_29 {dimension_numbers = #tpu.dot_dimension_numbers<[1], [0], [0], [1], [0, 0, 1, 1], [], []>} : vector<128x128xbf16>, vector<128x256xbf16>, vector<128x256xf32> -> vector<128x256xf32>
    %61 = vector.extract_strided_slice %60 {offsets = [0, 0], sizes = [128, 128], strides = [1, 1]} : vector<128x256xf32> to vector<128x128xf32>
    %62 = vector.extract_strided_slice %60 {offsets = [0, 128], sizes = [128, 128], strides = [1, 1]} : vector<128x256xf32> to vector<128x128xf32>
    %c0_30 = arith.constant 0 : index
    %c0_31 = arith.constant 0 : index
    %63 = vector.load %arg4[%c0_30, %c0_31] : memref<128x128xbf16, #tpu.memory_space<vmem>>, vector<128x128xbf16>
    %64 = arith.truncf %61 : vector<128x128xf32> to vector<128x128xbf16>
    %cst_32 = arith.constant dense<0.000000e+00> : vector<128x128xf32>
    %65 = tpu.matmul %63, %64, %cst_32 {dimension_numbers = #tpu.dot_dimension_numbers<[1], [0], [0], [1], [0, 0, 1, 1], [], []>} : vector<128x128xbf16>, vector<128x128xbf16>, vector<128x128xf32> -> vector<128x128xf32>
    %66 = arith.addf %65, %62 : vector<128x128xf32>
    %c0_33 = arith.constant 0 : index
    %c0_34 = arith.constant 0 : index
    %67 = vector.load %arg6[%c0_33, %c0_34] : memref<1x128xf32, #tpu.memory_space<vmem>>, vector<1x128xf32>
    %68 = vector.broadcast %67 : vector<1x128xf32> to vector<128x128xf32>
    %69 = arith.addf %66, %68 : vector<128x128xf32>
    %cst_35 = arith.constant 0.000000e+00 : f32
    %70 = vector.broadcast %cst_35 : f32 to vector<128x128xf32>
    %71 = arith.cmpf ogt, %69, %70 : vector<128x128xf32>
    %cst_36 = arith.constant 0.00999999977 : f32
    %72 = vector.broadcast %cst_36 : f32 to vector<128x128xf32>
    %73 = arith.mulf %72, %69 : vector<128x128xf32>
    %74 = arith.select %71, %69, %73 : vector<128x128xi1>, vector<128x128xf32>
    %c0_37 = arith.constant 0 : index
    %c0_38 = arith.constant 0 : index
    %75 = vector.load %arg7[%c0_37, %c0_38] : memref<128x128xf32, #tpu.memory_space<vmem>>, vector<128x128xf32>
    tpu.vector_store %arg7[%c0_37, %c0_38], %74 {strides = array<i32>} : memref<128x128xf32, #tpu.memory_space<vmem>>, vector<128x128xf32>,
    return
  }
}

</mosaic_0001>

<llo_original>
// kernel: tpu_custom_call.1
$region0: #{tpu_custom_call.1}
  #allocation0 [shape = 'u32[]', space=smem, size = 0x4, offset = 0x4, fixed_abs, tag = 'smem constant byte address 0x4 - core index']
  #allocation1 [shape = 'u32[144,128]{1,0:T(1,128)}', space=vmem, size = 0x12000, scoped, tag = 'internal scratch']
  #allocation2 [shape = 'bf16[1920,128]{1,0:T(16,128)(2,1)}', space=vmem, size = 0x78000, scoped, tag = 'scratch operand']
  %s0 = inlined_call_operand.hbm [shape: bf16[128,128], index: 0, kind: input, shape index: {}]
  %s1 = inlined_call_operand.hbm [shape: bf16[128,2048], index: 1, kind: input, shape index: {}]
  %s2 = inlined_call_operand.vmem [shape: f32[1,128], index: 2, kind: input, shape index: {}]
  %s3 = inlined_call_operand.hbm [shape: bf16[128,1920], index: 3, kind: input, shape index: {}]
  %s4 = inlined_call_operand.hbm [shape: bf16[128,128], index: 4, kind: input, shape index: {}]
  %s5 = inlined_call_operand.hbm [shape: bf16[128,256], index: 5, kind: input, shape index: {}]
  %s6 = inlined_call_operand.vmem [shape: f32[1,128], index: 6, kind: input, shape index: {}]
  %s7 = inlined_call_operand.hbm [shape: f32[128,128], index: 7, kind: output, shape index: {}]
  %s8 = sld [smem:[#allocation0]]
  $region58: #{tpu_custom_call.1} parent=0
    _
  %s10 = ssub.s32 1, %s8
  %s11 = scalar_select 0, %s10, %s8
  $region1: #{tpu_custom_call.1} parent=0
    #allocation3 [shape = 'u8[32768]{0}', space=vmem, size = 0x8000, scoped, tag = 'input window, operand 0, single buffered']
    #allocation4 [shape = 's32[1]{0}', space=sflag, size = 0x4, scoped, tag = 'scoped memory for tpu_custom_call.1']
    #allocation5 [shape = 's32[1]{0}', space=sflag, size = 0x4, scoped, tag = 'scoped memory for tpu_custom_call.1']
    #allocation6 [shape = 'u8[524288]{0}', space=vmem, size = 0x80000, scoped, tag = 'input window, operand 1, single buffered']
    #allocation7 [shape = 's32[1]{0}', space=sflag, size = 0x4, scoped, tag = 'scoped memory for tpu_custom_call.1']
    #allocation8 [shape = 'u8[491520]{0}', space=vmem, size = 0x78000, scoped, tag = 'input window, operand 3, single buffered']
    #allocation9 [shape = 'u8[32768]{0}', space=vmem, size = 0x8000, scoped, tag = 'input window, operand 4, single buffered']
    #allocation10 [shape = 's32[1]{0}', space=sflag, size = 0x4, scoped, tag = 'scoped memory for tpu_custom_call.1']
    #allocation11 [shape = 'u8[65536]{0}', space=vmem, size = 0x10000, scoped, tag = 'input window, operand 5, single buffered']
    #allocation12 [shape = 'u8[65536]{0}', space=vmem, size = 0x10000, scoped, tag = 'output window, operand 0, single buffered']
    %12 = vsyncpa [#allocation4], 0
    %13 = vsyncpa [#allocation7], 0
    %14 = vsyncpa [#allocation10], 0
    %15 = vsyncpa [#allocation5], 0
    // Predicated region
    $region2: #{tpu_custom_call.1} parent=1 // pred_check
      _
    $region3: #{tpu_custom_call.1} parent=1 // pred_check_branch
      %17 = sbr.rel (0) target = $region5
    $region4: #{tpu_custom_call.1} parent=1 // pred_region
      %s19 = ssub.s32 1024, 1024
      %20 = vsyncadd [#allocation4], %s19
      %s21 = sshll.u32 [#allocation3], 4
      %s22 = int_to_ptr.vmem [resolvable:$true] %s21
      %27 = dma.hbm_to_vmem [thread:$0]  %s0, 1024, %s22, [#allocation4], 64, 64, 4
    $region5: #{tpu_custom_call.1} parent=1 // pred_fallthru
      _
    // Predicated region
    $region6: #{tpu_custom_call.1} parent=1 // pred_check
      _
    $region7: #{tpu_custom_call.1} parent=1 // pred_check_branch
      %29 = sbr.rel (0) target = $region9
    $region8: #{tpu_custom_call.1} parent=1 // pred_region
      %s31 = ssub.s32 16384, 16384
      %32 = vsyncadd [#allocation7], %s31
      %s33 = sshll.u32 [#allocation6], 4
      %s34 = int_to_ptr.vmem [resolvable:$true] %s33
      %39 = dma.hbm_to_vmem [thread:$0]  %s1, 16384, %s34, [#allocation7], 1024, 1024, 64
    $region9: #{tpu_custom_call.1} parent=1 // pred_fallthru
      _
    // Predicated region
    $region10: #{tpu_custom_call.1} parent=1 // pred_check
      _
    $region11: #{tpu_custom_call.1} parent=1 // pred_check_branch
      %41 = sbr.rel (0) target = $region13
    $region12: #{tpu_custom_call.1} parent=1 // pred_region
      _
    $region13: #{tpu_custom_call.1} parent=1 // pred_fallthru
      _
    // Predicated region
    $region14: #{tpu_custom_call.1} parent=1 // pred_check
      _
    $region15: #{tpu_custom_call.1} parent=1 // pred_check_branch
      %43 = sbr.rel (0) target = $region17
    $region16: #{tpu_custom_call.1} parent=1 // pred_region
      %s45 = ssub.s32 15360, 15360
      %46 = vsyncadd [#allocation7], %s45
      %s47 = sshll.u32 [#allocation8], 4
      %s48 = int_to_ptr.vmem [resolvable:$true] %s47
      %53 = dma.hbm_to_vmem [thread:$0]  %s3, 15360, %s48, [#allocation7], 960, 960, 60
    $region17: #{tpu_custom_call.1} parent=1 // pred_fallthru
      _
    // Predicated region
    $region18: #{tpu_custom_call.1} parent=1 // pred_check
      _
    $region19: #{tpu_custom_call.1} parent=1 // pred_check_branch
      %55 = sbr.rel (0) target = $region21
    $region20: #{tpu_custom_call.1} parent=1 // pred_region
      %s57 = ssub.s32 1024, 1024
      %58 = vsyncadd [#allocation10], %s57
      %s59 = sshll.u32 [#allocation9], 4
      %s60 = int_to_ptr.vmem [resolvable:$true] %s59
      %65 = dma.hbm_to_vmem [thread:$0]  %s4, 1024, %s60, [#allocation10], 64, 64, 4
    $region21: #{tpu_custom_call.1} parent=1 // pred_fallthru
      _
    // Predicated region
    $region22: #{tpu_custom_call.1} parent=1 // pred_check
      _
    $region23: #{tpu_custom_call.1} parent=1 // pred_check_branch
      %67 = sbr.rel (0) target = $region25
    $region24: #{tpu_custom_call.1} parent=1 // pred_region
      %s69 = ssub.s32 2048, 2048
      %70 = vsyncadd [#allocation10], %s69
      %s71 = sshll.u32 [#allocation11], 4
      %s72 = int_to_ptr.vmem [resolvable:$true] %s71
      %77 = dma.hbm_to_vmem [thread:$0]  %s5, 2048, %s72, [#allocation10], 128, 128, 8
    $region25: #{tpu_custom_call.1} parent=1 // pred_fallthru
      _
    // Predicated region
    $region26: #{tpu_custom_call.1} parent=1 // pred_check
      _
    $region27: #{tpu_custom_call.1} parent=1 // pred_check_branch
      %79 = sbr.rel (0) target = $region29
    $region28: #{tpu_custom_call.1} parent=1 // pred_region
      _
    $region29: #{tpu_custom_call.1} parent=1 // pred_fallthru
      _
    // Predicated region
    $region30: #{tpu_custom_call.1} parent=1 // pred_check
      _
    $region31: #{tpu_custom_call.1} parent=1 // pred_check_branch
      %81 = sbr.rel (0) target = $region33
    $region32: #{tpu_custom_call.1} parent=1 // pred_region
      %82 = dma.done [#allocation4], 1024
    $region33: #{tpu_custom_call.1} parent=1 // pred_fallthru
      _
    // Predicated region
    $region34: #{tpu_custom_call.1} parent=1 // pred_check
      _
    $region35: #{tpu_custom_call.1} parent=1 // pred_check_branch
      %84 = sbr.rel (0) target = $region37
    $region36: #{tpu_custom_call.1} parent=1 // pred_region
      %85 = dma.done [#allocation7], 16384
    $region37: #{tpu_custom_call.1} parent=1 // pred_fallthru
      _
    // Predicated region
    $region38: #{tpu_custom_call.1} parent=1 // pred_check
      _
    $region39: #{tpu_custom_call.1} parent=1 // pred_check_branch
      %87 = sbr.rel (0) target = $region41
    $region40: #{tpu_custom_call.1} parent=1 // pred_region
      %88 = dma.done [#allocation7], 15360
    $region41: #{tpu_custom_call.1} parent=1 // pred_fallthru
      _
    // Predicated region
    $region42: #{tpu_custom_call.1} parent=1 // pred_check
      _
    $region43: #{tpu_custom_call.1} parent=1 // pred_check_branch
      %90 = sbr.rel (0) target = $region45
    $region44: #{tpu_custom_call.1} parent=1 // pred_region
      %91 = dma.done [#allocation10], 1024
    $region45: #{tpu_custom_call.1} parent=1 // pred_fallthru
      _
    // Predicated region
    $region46: #{tpu_custom_call.1} parent=1 // pred_check
      _
    $region47: #{tpu_custom_call.1} parent=1 // pred_check_branch
      %93 = sbr.rel (0) target = $region49
    $region48: #{tpu_custom_call.1} parent=1 // pred_region
      %94 = dma.done [#allocation10], 2048
    $region49: #{tpu_custom_call.1} parent=1 // pred_fallthru
      _
    %v96 = vld [vmem:[#allocation3] sm:$0xf]
    %v97 = vld [vmem:[#allocation3 + $0x4] sm:$0xf]
    %v98 = vld [vmem:[#allocation3 + $0x8] sm:$0xf]
    %v99 = vld [vmem:[#allocation3 + $0xc] sm:$0xf]
    %v100 = vld [vmem:[#allocation3 + $0x10] sm:$0xf]
    %v101 = vld [vmem:[#allocation3 + $0x14] sm:$0xf]
    %v102 = vld [vmem:[#allocation3 + $0x18] sm:$0xf]
    %v103 = vld [vmem:[#allocation3 + $0x1c] sm:$0xf]
    %v104 = vld [vmem:[#allocation3 + $0x20] sm:$0xf]
    %v105 = vld [vmem:[#allocation3 + $0x24] sm:$0xf]
    %v106 = vld [vmem:[#allocation3 + $0x28] sm:$0xf]
    %v107 = vld [vmem:[#allocation3 + $0x2c] sm:$0xf]
    %v108 = vld [vmem:[#allocation3 + $0x30] sm:$0xf]
    %v109 = vld [vmem:[#allocation3 + $0x34] sm:$0xf]
    %v110 = vld [vmem:[#allocation3 + $0x38] sm:$0xf]
    %v111 = vld [vmem:[#allocation3 + $0x3c] sm:$0xf]
    %v112 = vld [vmem:[#allocation6] sm:$0xff]
    %v113 = vld [vmem:[#allocation6 + $0x8] sm:$0xff]
    %v114 = vld [vmem:[#allocation6 + $0x10] sm:$0xff]
    %v115 = vld [vmem:[#allocation6 + $0x18] sm:$0xff]
    %v116 = vld [vmem:[#allocation6 + $0x20] sm:$0xff]
    %v117 = vld [vmem:[#allocation6 + $0x28] sm:$0xff]
    %v118 = vld [vmem:[#allocation6 + $0x30] sm:$0xff]
    %v119 = vld [vmem:[#allocation6 + $0x38] sm:$0xff]
    %v120 = vld [vmem:[#allocation6 + $0x40] sm:$0xff]
    %v121 = vld [vmem:[#allocation6 + $0x48] sm:$0xff]
    %v122 = vld [vmem:[#allocation6 + $0x50] sm:$0xff]
    %v123 = vld [vmem:[#allocation6 + $0x58] sm:$0xff]
    %v124 = vld [vmem:[#allocation6 + $0x60] sm:$0xff]
    %v125 = vld [vmem:[#allocation6 + $0x68] sm:$0xff]
    %v126 = vld [vmem:[#allocation6 + $0x70] sm:$0xff]
    %v127 = vld [vmem:[#allocation6 + $0x78] sm:$0xff]
    %v128 = vld [vmem:[#allocation6 + $0x80] sm:$0xff]
    %v129 = vld [vmem:[#allocation6 + $0x88] sm:$0xff]
    %v130 = vld [vmem:[#allocation6 + $0x90] sm:$0xff]
    %v131 = vld [vmem:[#allocation6 + $0x98] sm:$0xff]
    %v132 = vld [vmem:[#allocation6 + $0xa0] sm:$0xff]
    %v133 = vld [vmem:[#allocation6 + $0xa8] sm:$0xff]
    %v134 = vld [vmem:[#allocation6 + $0xb0] sm:$0xff]
    %v135 = vld [vmem:[#allocation6 + $0xb8] sm:$0xff]
    %v136 = vld [vmem:[#allocation6 + $0xc0] sm:$0xff]
    %v137 = vld [vmem:[#allocation6 + $0xc8] sm:$0xff]
    %v138 = vld [vmem:[#allocation6 + $0xd0] sm:$0xff]
    %v139 = vld [vmem:[#allocation6 + $0xd8] sm:$0xff]
    %v140 = vld [vmem:[#allocation6 + $0xe0] sm:$0xff]
    %v141 = vld [vmem:[#allocation6 + $0xe8] sm:$0xff]
    %v142 = vld [vmem:[#allocation6 + $0xf0] sm:$0xff]
    %v143 = vld [vmem:[#allocation6 + $0xf8] sm:$0xff]
    %v144 = vld [vmem:[#allocation6 + $0x100] sm:$0xff]
    %v145 = vld [vmem:[#allocation6 + $0x108] sm:$0xff]
    %v146 = vld [vmem:[#allocation6 + $0x110] sm:$0xff]
    %v147 = vld [vmem:[#allocation6 + $0x118] sm:$0xff]
    %v148 = vld [vmem:[#allocation6 + $0x120] sm:$0xff]
    %v149 = vld [vmem:[#allocation6 + $0x128] sm:$0xff]
    %v150 = vld [vmem:[#allocation6 + $0x130] sm:$0xff]
    %v151 = vld [vmem:[#allocation6 + $0x138] sm:$0xff]
    %v152 = vld [vmem:[#allocation6 + $0x140] sm:$0xff]
    %v153 = vld [vmem:[#allocation6 + $0x148] sm:$0xff]
    %v154 = vld [vmem:[#allocation6 + $0x150] sm:$0xff]
    %v155 = vld [vmem:[#allocation6 + $0x158] sm:$0xff]
    %v156 = vld [vmem:[#allocation6 + $0x160] sm:$0xff]
    %v157 = vld [vmem:[#allocation6 + $0x168] sm:$0xff]
    %v158 = vld [vmem:[#allocation6 + $0x170] sm:$0xff]
    %v159 = vld [vmem:[#allocation6 + $0x178] sm:$0xff]
    %v160 = vld [vmem:[#allocation6 + $0x180] sm:$0xff]
    %v161 = vld [vmem:[#allocation6 + $0x188] sm:$0xff]
    %v162 = vld [vmem:[#allocation6 + $0x190] sm:$0xff]
    %v163 = vld [vmem:[#allocation6 + $0x198] sm:$0xff]
    %v164 = vld [vmem:[#allocation6 + $0x1a0] sm:$0xff]
    %v165 = vld [vmem:[#allocation6 + $0x1a8] sm:$0xff]
    %v166 = vld [vmem:[#allocation6 + $0x1b0] sm:$0xff]
    %v167 = vld [vmem:[#allocation6 + $0x1b8] sm:$0xff]
    %v168 = vld [vmem:[#allocation6 + $0x1c0] sm:$0xff]
    %v169 = vld [vmem:[#allocation6 + $0x1c8] sm:$0xff]
    %v170 = vld [vmem:[#allocation6 + $0x1d0] sm:$0xff]
    %v171 = vld [vmem:[#allocation6 + $0x1d8] sm:$0xff]
    %v172 = vld [vmem:[#allocation6 + $0x1e0] sm:$0xff]
    %v173 = vld [vmem:[#allocation6 + $0x1e8] sm:$0xff]
    %v174 = vld [vmem:[#allocation6 + $0x1f0] sm:$0xff]
    %v175 = vld [vmem:[#allocation6 + $0x1f8] sm:$0xff]
    %v176 = vld [vmem:[#allocation6 + $0x200] sm:$0xff]
    %v177 = vld [vmem:[#allocation6 + $0x208] sm:$0xff]
    %v178 = vld [vmem:[#allocation6 + $0x210] sm:$0xff]
    %v179 = vld [vmem:[#allocation6 + $0x218] sm:$0xff]
    %v180 = vld [vmem:[#allocation6 + $0x220] sm:$0xff]
    %v181 = vld [vmem:[#allocation6 + $0x228] sm:$0xff]
    %v182 = vld [vmem:[#allocation6 + $0x230] sm:$0xff]
    %v183 = vld [vmem:[#allocation6 + $0x238] sm:$0xff]
    %v184 = vld [vmem:[#allocation6 + $0x240] sm:$0xff]
    %v185 = vld [vmem:[#allocation6 + $0x248] sm:$0xff]
    %v186 = vld [vmem:[#allocation6 + $0x250] sm:$0xff]
    %v187 = vld [vmem:[#allocation6 + $0x258] sm:$0xff]
    %v188 = vld [vmem:[#allocation6 + $0x260] sm:$0xff]
    %v189 = vld [vmem:[#allocation6 + $0x268] sm:$0xff]
    %v190 = vld [vmem:[#allocation6 + $0x270] sm:$0xff]
    %v191 = vld [vmem:[#allocation6 + $0x278] sm:$0xff]
    %v192 = vld [vmem:[#allocation6 + $0x280] sm:$0xff]
    %v193 = vld [vmem:[#allocation6 + $0x288] sm:$0xff]
    %v194 = vld [vmem:[#allocation6 + $0x290] sm:$0xff]
    %v195 = vld [vmem:[#allocation6 + $0x298] sm:$0xff]
    %v196 = vld [vmem:[#allocation6 + $0x2a0] sm:$0xff]
    %v197 = vld [vmem:[#allocation6 + $0x2a8] sm:$0xff]
    %v198 = vld [vmem:[#allocation6 + $0x2b0] sm:$0xff]
    %v199 = vld [vmem:[#allocation6 + $0x2b8] sm:$0xff]
    %v200 = vld [vmem:[#allocation6 + $0x2c0] sm:$0xff]
    %v201 = vld [vmem:[#allocation6 + $0x2c8] sm:$0xff]
    %v202 = vld [vmem:[#allocation6 + $0x2d0] sm:$0xff]
    %v203 = vld [vmem:[#allocation6 + $0x2d8] sm:$0xff]
    %v204 = vld [vmem:[#allocation6 + $0x2e0] sm:$0xff]
    %v205 = vld [vmem:[#allocation6 + $0x2e8] sm:$0xff]
    %v206 = vld [vmem:[#allocation6 + $0x2f0] sm:$0xff]
    %v207 = vld [vmem:[#allocation6 + $0x2f8] sm:$0xff]
    %v208 = vld [vmem:[#allocation6 + $0x300] sm:$0xff]
    %v209 = vld [vmem:[#allocation6 + $0x308] sm:$0xff]
    %v210 = vld [vmem:[#allocation6 + $0x310] sm:$0xff]
    %v211 = vld [vmem:[#allocation6 + $0x318] sm:$0xff]
    %v212 = vld [vmem:[#allocation6 + $0x320] sm:$0xff]
    %v213 = vld [vmem:[#allocation6 + $0x328] sm:$0xff]
    %v214 = vld [vmem:[#allocation6 + $0x330] sm:$0xff]
    %v215 = vld [vmem:[#allocation6 + $0x338] sm:$0xff]
    %v216 = vld [vmem:[#allocation6 + $0x340] sm:$0xff]
    %v217 = vld [vmem:[#allocation6 + $0x348] sm:$0xff]
    %v218 = vld [vmem:[#allocation6 + $0x350] sm:$0xff]
    %v219 = vld [vmem:[#allocation6 + $0x358] sm:$0xff]
    %v220 = vld [vmem:[#allocation6 + $0x360] sm:$0xff]
    %v221 = vld [vmem:[#allocation6 + $0x368] sm:$0xff]
    %v222 = vld [vmem:[#allocation6 + $0x370] sm:$0xff]
    %v223 = vld [vmem:[#allocation6 + $0x378] sm:$0xff]
    %v224 = vld [vmem:[#allocation6 + $0x380] sm:$0xff]
    %v225 = vld [vmem:[#allocation6 + $0x388] sm:$0xff]
    %v226 = vld [vmem:[#allocation6 + $0x390] sm:$0xff]
    %v227 = vld [vmem:[#allocation6 + $0x398] sm:$0xff]
    %v228 = vld [vmem:[#allocation6 + $0x3a0] sm:$0xff]
    %v229 = vld [vmem:[#allocation6 + $0x3a8] sm:$0xff]
    %v230 = vld [vmem:[#allocation6 + $0x3b0] sm:$0xff]
    %v231 = vld [vmem:[#allocation6 + $0x3b8] sm:$0xff]
    %v232 = vld [vmem:[#allocation6 + $0x3c0] sm:$0xff]
    %v233 = vld [vmem:[#allocation6 + $0x3c8] sm:$0xff]
    %v234 = vld [vmem:[#allocation6 + $0x3d0] sm:$0xff]
    %v235 = vld [vmem:[#allocation6 + $0x3d8] sm:$0xff]
    %v236 = vld [vmem:[#allocation6 + $0x3e0] sm:$0xff]
    %v237 = vld [vmem:[#allocation6 + $0x3e8] sm:$0xff]
    %v238 = vld [vmem:[#allocation6 + $0x3f0] sm:$0xff]
    %v239 = vld [vmem:[#allocation6 + $0x3f8] sm:$0xff]
    %v256 = vunpack.c.l.b16 %v96
    %v257 = vunpack.c.l.b16 %v97
    %v258 = vunpack.c.l.b16 %v98
    %v259 = vunpack.c.l.b16 %v99
    %v260 = vunpack.c.l.b16 %v100
    %v261 = vunpack.c.l.b16 %v101
    %v262 = vunpack.c.l.b16 %v102
    %v263 = vunpack.c.l.b16 %v103
    %v264 = vunpack.c.l.b16 %v104
    %v265 = vunpack.c.l.b16 %v105
    %v266 = vunpack.c.l.b16 %v106
    %v267 = vunpack.c.l.b16 %v107
    %v268 = vunpack.c.l.b16 %v108
    %v269 = vunpack.c.l.b16 %v109
    %v270 = vunpack.c.l.b16 %v110
    %v271 = vunpack.c.l.b16 %v111
    %v272 = vpack.c.b16 %v257, %v256
    %v273 = vpack.c.b16 %v259, %v258
    %v274 = vpack.c.b16 %v261, %v260
    %v275 = vpack.c.b16 %v263, %v262
    %v276 = vpack.c.b16 %v265, %v264
    %v277 = vpack.c.b16 %v267, %v266
    %v278 = vpack.c.b16 %v269, %v268
    %v279 = vpack.c.b16 %v271, %v270
    %v416 = vunpack.c.l.b16 %v112
    %v417 = vunpack.c.h.b16 %v112
    %v418 = vunpack.c.l.b16 %v113
    %v419 = vunpack.c.h.b16 %v113
    %v420 = vunpack.c.l.b16 %v114
    %v421 = vunpack.c.h.b16 %v114
    %v422 = vunpack.c.l.b16 %v115
    %v423 = vunpack.c.h.b16 %v115
    %v424 = vunpack.c.l.b16 %v116
    %v425 = vunpack.c.h.b16 %v116
    %v426 = vunpack.c.l.b16 %v117
    %v427 = vunpack.c.h.b16 %v117
    %v428 = vunpack.c.l.b16 %v118
    %v429 = vunpack.c.h.b16 %v118
    %v430 = vunpack.c.l.b16 %v119
    %v431 = vunpack.c.h.b16 %v119
    %v432 = vunpack.c.l.b16 %v120
    %v433 = vunpack.c.h.b16 %v120
    %v434 = vunpack.c.l.b16 %v121
    %v435 = vunpack.c.h.b16 %v121
    %v436 = vunpack.c.l.b16 %v122
    %v437 = vunpack.c.h.b16 %v122
    %v438 = vunpack.c.l.b16 %v123
    %v439 = vunpack.c.h.b16 %v123
    %v440 = vunpack.c.l.b16 %v124
    %v441 = vunpack.c.h.b16 %v124
    %v442 = vunpack.c.l.b16 %v125
    %v443 = vunpack.c.h.b16 %v125
    %v444 = vunpack.c.l.b16 %v126
    %v445 = vunpack.c.h.b16 %v126
    %v446 = vunpack.c.l.b16 %v127
    %v447 = vunpack.c.h.b16 %v127
    %v448 = vunpack.c.l.b16 %v128
    %v449 = vunpack.c.h.b16 %v128
    %v450 = vunpack.c.l.b16 %v129
    %v451 = vunpack.c.h.b16 %v129
    %v452 = vunpack.c.l.b16 %v130
    %v453 = vunpack.c.h.b16 %v130
    %v454 = vunpack.c.l.b16 %v131
    %v455 = vunpack.c.h.b16 %v131
    %v456 = vunpack.c.l.b16 %v132
    %v457 = vunpack.c.h.b16 %v132
    %v458 = vunpack.c.l.b16 %v133
    %v459 = vunpack.c.h.b16 %v133
    %v460 = vunpack.c.l.b16 %v134
    %v461 = vunpack.c.h.b16 %v134
    %v462 = vunpack.c.l.b16 %v135
    %v463 = vunpack.c.h.b16 %v135
    %v464 = vunpack.c.l.b16 %v136
    %v465 = vunpack.c.h.b16 %v136
    %v466 = vunpack.c.l.b16 %v137
    %v467 = vunpack.c.h.b16 %v137
    %v468 = vunpack.c.l.b16 %v138
    %v469 = vunpack.c.h.b16 %v138
    %v470 = vunpack.c.l.b16 %v139
    %v471 = vunpack.c.h.b16 %v139
    %v472 = vunpack.c.l.b16 %v140
    %v473 = vunpack.c.h.b16 %v140
    %v474 = vunpack.c.l.b16 %v141
    %v475 = vunpack.c.h.b16 %v141
    %v476 = vunpack.c.l.b16 %v142
    %v477 = vunpack.c.h.b16 %v142
    %v478 = vunpack.c.l.b16 %v143
    %v479 = vunpack.c.h.b16 %v143
    %v480 = vunpack.c.l.b16 %v144
    %v481 = vunpack.c.h.b16 %v144
    %v482 = vunpack.c.l.b16 %v145
    %v483 = vunpack.c.h.b16 %v145
    %v484 = vunpack.c.l.b16 %v146
    %v485 = vunpack.c.h.b16 %v146
    %v486 = vunpack.c.l.b16 %v147
    %v487 = vunpack.c.h.b16 %v147
    %v488 = vunpack.c.l.b16 %v148
    %v489 = vunpack.c.h.b16 %v148
    %v490 = vunpack.c.l.b16 %v149
    %v491 = vunpack.c.h.b16 %v149
    %v492 = vunpack.c.l.b16 %v150
    %v493 = vunpack.c.h.b16 %v150
    %v494 = vunpack.c.l.b16 %v151
    %v495 = vunpack.c.h.b16 %v151
    %v496 = vunpack.c.l.b16 %v152
    %v497 = vunpack.c.h.b16 %v152
    %v498 = vunpack.c.l.b16 %v153
    %v499 = vunpack.c.h.b16 %v153
    %v500 = vunpack.c.l.b16 %v154
    %v501 = vunpack.c.h.b16 %v154
    %v502 = vunpack.c.l.b16 %v155
    %v503 = vunpack.c.h.b16 %v155
    %v504 = vunpack.c.l.b16 %v156
    %v505 = vunpack.c.h.b16 %v156
    %v506 = vunpack.c.l.b16 %v157
    %v507 = vunpack.c.h.b16 %v157
    %v508 = vunpack.c.l.b16 %v158
    %v509 = vunpack.c.h.b16 %v158
    %v510 = vunpack.c.l.b16 %v159
    %v511 = vunpack.c.h.b16 %v159
    %v512 = vunpack.c.l.b16 %v160
    %v513 = vunpack.c.h.b16 %v160
    %v514 = vunpack.c.l.b16 %v161
    %v515 = vunpack.c.h.b16 %v161
    %v516 = vunpack.c.l.b16 %v162
    %v517 = vunpack.c.h.b16 %v162
    %v518 = vunpack.c.l.b16 %v163
    %v519 = vunpack.c.h.b16 %v163
    %v520 = vunpack.c.l.b16 %v164
    %v521 = vunpack.c.h.b16 %v164
    %v522 = vunpack.c.l.b16 %v165
    %v523 = vunpack.c.h.b16 %v165
    %v524 = vunpack.c.l.b16 %v166
    %v525 = vunpack.c.h.b16 %v166
    %v526 = vunpack.c.l.b16 %v167
    %v527 = vunpack.c.h.b16 %v167
    %v528 = vunpack.c.l.b16 %v168
    %v529 = vunpack.c.h.b16 %v168
    %v530 = vunpack.c.l.b16 %v169
    %v531 = vunpack.c.h.b16 %v169
    %v532 = vunpack.c.l.b16 %v170
    %v533 = vunpack.c.h.b16 %v170
    %v534 = vunpack.c.l.b16 %v171
    %v535 = vunpack.c.h.b16 %v171
    %v536 = vunpack.c.l.b16 %v172
    %v537 = vunpack.c.h.b16 %v172
    %v538 = vunpack.c.l.b16 %v173
    %v539 = vunpack.c.h.b16 %v173
    %v540 = vunpack.c.l.b16 %v174
    %v541 = vunpack.c.h.b16 %v174
    %v542 = vunpack.c.l.b16 %v175
    %v543 = vunpack.c.h.b16 %v175
    %v544 = vunpack.c.l.b16 %v176
    %v545 = vunpack.c.h.b16 %v176
    %v546 = vunpack.c.l.b16 %v177
    %v547 = vunpack.c.h.b16 %v177
    %v548 = vunpack.c.l.b16 %v178
    %v549 = vunpack.c.h.b16 %v178
    %v550 = vunpack.c.l.b16 %v179
    %v551 = vunpack.c.h.b16 %v179
    %v552 = vunpack.c.l.b16 %v180
    %v553 = vunpack.c.h.b16 %v180
    %v554 = vunpack.c.l.b16 %v181
    %v555 = vunpack.c.h.b16 %v181
    %v556 = vunpack.c.l.b16 %v182
    %v557 = vunpack.c.h.b16 %v182
    %v558 = vunpack.c.l.b16 %v183
    %v559 = vunpack.c.h.b16 %v183
    %v560 = vunpack.c.l.b16 %v184
    %v561 = vunpack.c.h.b16 %v184
    %v562 = vunpack.c.l.b16 %v185
    %v563 = vunpack.c.h.b16 %v185
    %v564 = vunpack.c.l.b16 %v186
    %v565 = vunpack.c.h.b16 %v186
    %v566 = vunpack.c.l.b16 %v187
    %v567 = vunpack.c.h.b16 %v187
    %v568 = vunpack.c.l.b16 %v188
    %v569 = vunpack.c.h.b16 %v188
    %v570 = vunpack.c.l.b16 %v189
    %v571 = vunpack.c.h.b16 %v189
    %v572 = vunpack.c.l.b16 %v190
    %v573 = vunpack.c.h.b16 %v190
    %v574 = vunpack.c.l.b16 %v191
    %v575 = vunpack.c.h.b16 %v191
    %v576 = vunpack.c.l.b16 %v192
    %v577 = vunpack.c.h.b16 %v192
    %v578 = vunpack.c.l.b16 %v193
    %v579 = vunpack.c.h.b16 %v193
    %v580 = vunpack.c.l.b16 %v194
    %v581 = vunpack.c.h.b16 %v194
    %v582 = vunpack.c.l.b16 %v195
    %v583 = vunpack.c.h.b16 %v195
    %v584 = vunpack.c.l.b16 %v196
    %v585 = vunpack.c.h.b16 %v196
    %v586 = vunpack.c.l.b16 %v197
    %v587 = vunpack.c.h.b16 %v197
    %v588 = vunpack.c.l.b16 %v198
    %v589 = vunpack.c.h.b16 %v198
    %v590 = vunpack.c.l.b16 %v199
    %v591 = vunpack.c.h.b16 %v199
    %v592 = vunpack.c.l.b16 %v200
    %v593 = vunpack.c.h.b16 %v200
    %v594 = vunpack.c.l.b16 %v201
    %v595 = vunpack.c.h.b16 %v201
    %v596 = vunpack.c.l.b16 %v202
    %v597 = vunpack.c.h.b16 %v202
    %v598 = vunpack.c.l.b16 %v203
    %v599 = vunpack.c.h.b16 %v203
    %v600 = vunpack.c.l.b16 %v204
    %v601 = vunpack.c.h.b16 %v204
    %v602 = vunpack.c.l.b16 %v205
    %v603 = vunpack.c.h.b16 %v205
    %v604 = vunpack.c.l.b16 %v206
    %v605 = vunpack.c.h.b16 %v206
    %v606 = vunpack.c.l.b16 %v207
    %v607 = vunpack.c.h.b16 %v207
    %v608 = vunpack.c.l.b16 %v208
    %v609 = vunpack.c.h.b16 %v208
    %v610 = vunpack.c.l.b16 %v209
    %v611 = vunpack.c.h.b16 %v209
    %v612 = vunpack.c.l.b16 %v210
    %v613 = vunpack.c.h.b16 %v210
    %v614 = vunpack.c.l.b16 %v211
    %v615 = vunpack.c.h.b16 %v211
    %v616 = vunpack.c.l.b16 %v212
    %v617 = vunpack.c.h.b16 %v212
    %v618 = vunpack.c.l.b16 %v213
    %v619 = vunpack.c.h.b16 %v213
    %v620 = vunpack.c.l.b16 %v214
    %v621 = vunpack.c.h.b16 %v214
    %v622 = vunpack.c.l.b16 %v215
    %v623 = vunpack.c.h.b16 %v215
    %v624 = vunpack.c.l.b16 %v216
    %v625 = vunpack.c.h.b16 %v216
    %v626 = vunpack.c.l.b16 %v217
    %v627 = vunpack.c.h.b16 %v217
    %v628 = vunpack.c.l.b16 %v218
    %v629 = vunpack.c.h.b16 %v218
    %v630 = vunpack.c.l.b16 %v219
    %v631 = vunpack.c.h.b16 %v219
    %v632 = vunpack.c.l.b16 %v220
    %v633 = vunpack.c.h.b16 %v220
    %v634 = vunpack.c.l.b16 %v221
    %v635 = vunpack.c.h.b16 %v221
    %v636 = vunpack.c.l.b16 %v222
    %v637 = vunpack.c.h.b16 %v222
    %v638 = vunpack.c.l.b16 %v223
    %v639 = vunpack.c.h.b16 %v223
    %v640 = vunpack.c.l.b16 %v224
    %v641 = vunpack.c.h.b16 %v224
    %v642 = vunpack.c.l.b16 %v225
    %v643 = vunpack.c.h.b16 %v225
    %v644 = vunpack.c.l.b16 %v226
    %v645 = vunpack.c.h.b16 %v226
    %v646 = vunpack.c.l.b16 %v227
    %v647 = vunpack.c.h.b16 %v227
    %v648 = vunpack.c.l.b16 %v228
    %v649 = vunpack.c.h.b16 %v228
    %v650 = vunpack.c.l.b16 %v229
    %v651 = vunpack.c.h.b16 %v229
    %v652 = vunpack.c.l.b16 %v230
    %v653 = vunpack.c.h.b16 %v230
    %v654 = vunpack.c.l.b16 %v231
    %v655 = vunpack.c.h.b16 %v231
    %v656 = vunpack.c.l.b16 %v232
    %v657 = vunpack.c.h.b16 %v232
    %v658 = vunpack.c.l.b16 %v233
    %v659 = vunpack.c.h.b16 %v233
    %v660 = vunpack.c.l.b16 %v234
    %v661 = vunpack.c.h.b16 %v234
    %v662 = vunpack.c.l.b16 %v235
    %v663 = vunpack.c.h.b16 %v235
    %v664 = vunpack.c.l.b16 %v236
    %v665 = vunpack.c.h.b16 %v236
    %v666 = vunpack.c.l.b16 %v237
    %v667 = vunpack.c.h.b16 %v237
    %v668 = vunpack.c.l.b16 %v238
    %v669 = vunpack.c.h.b16 %v238
    %v670 = vunpack.c.l.b16 %v239
    %v671 = vunpack.c.h.b16 %v239
    %v672 = vpack.c.b16 %v432, %v416
    %v673 = vpack.c.b16 %v433, %v417
    %v674 = vpack.c.b16 %v434, %v418
    %v675 = vpack.c.b16 %v435, %v419
    %v676 = vpack.c.b16 %v436, %v420
    %v677 = vpack.c.b16 %v437, %v421
    %v678 = vpack.c.b16 %v438, %v422
    %v679 = vpack.c.b16 %v439, %v423
    %v680 = vpack.c.b16 %v440, %v424
    %v681 = vpack.c.b16 %v441, %v425
    %v682 = vpack.c.b16 %v442, %v426
    %v683 = vpack.c.b16 %v443, %v427
    %v684 = vpack.c.b16 %v444, %v428
    %v685 = vpack.c.b16 %v445, %v429
    %v686 = vpack.c.b16 %v446, %v430
    %v687 = vpack.c.b16 %v447, %v431
    %v688 = vpack.c.b16 %v464, %v448
    %v689 = vpack.c.b16 %v465, %v449
    %v690 = vpack.c.b16 %v466, %v450
    %v691 = vpack.c.b16 %v467, %v451
    %v692 = vpack.c.b16 %v468, %v452
    %v693 = vpack.c.b16 %v469, %v453
    %v694 = vpack.c.b16 %v470, %v454
    %v695 = vpack.c.b16 %v471, %v455
    %v696 = vpack.c.b16 %v472, %v456
    %v697 = vpack.c.b16 %v473, %v457
    %v698 = vpack.c.b16 %v474, %v458
    %v699 = vpack.c.b16 %v475, %v459
    %v700 = vpack.c.b16 %v476, %v460
    %v701 = vpack.c.b16 %v477, %v461
    %v702 = vpack.c.b16 %v478, %v462
    %v703 = vpack.c.b16 %v479, %v463
    %v704 = vpack.c.b16 %v496, %v480
    %v705 = vpack.c.b16 %v497, %v481
    %v706 = vpack.c.b16 %v498, %v482
    %v707 = vpack.c.b16 %v499, %v483
    %v708 = vpack.c.b16 %v500, %v484
    %v709 = vpack.c.b16 %v501, %v485
    %v710 = vpack.c.b16 %v502, %v486
    %v711 = vpack.c.b16 %v503, %v487
    %v712 = vpack.c.b16 %v504, %v488
    %v713 = vpack.c.b16 %v505, %v489
    %v714 = vpack.c.b16 %v506, %v490
    %v715 = vpack.c.b16 %v507, %v491
    %v716 = vpack.c.b16 %v508, %v492
    %v717 = vpack.c.b16 %v509, %v493
    %v718 = vpack.c.b16 %v510, %v494
    %v719 = vpack.c.b16 %v511, %v495
    %v720 = vpack.c.b16 %v528, %v512
    %v721 = vpack.c.b16 %v529, %v513
    %v722 = vpack.c.b16 %v530, %v514
    %v723 = vpack.c.b16 %v531, %v515
    %v724 = vpack.c.b16 %v532, %v516
    %v725 = vpack.c.b16 %v533, %v517
    %v726 = vpack.c.b16 %v534, %v518
    %v727 = vpack.c.b16 %v535, %v519
    %v728 = vpack.c.b16 %v536, %v520
    %v729 = vpack.c.b16 %v537, %v521
    %v730 = vpack.c.b16 %v538, %v522
    %v731 = vpack.c.b16 %v539, %v523
    %v732 = vpack.c.b16 %v540, %v524
    %v733 = vpack.c.b16 %v541, %v525
    %v734 = vpack.c.b16 %v542, %v526
    %v735 = vpack.c.b16 %v543, %v527
    %v736 = vpack.c.b16 %v560, %v544
    %v737 = vpack.c.b16 %v561, %v545
    %v738 = vpack.c.b16 %v562, %v546
    %v739 = vpack.c.b16 %v563, %v547
    %v740 = vpack.c.b16 %v564, %v548
    %v741 = vpack.c.b16 %v565, %v549
    %v742 = vpack.c.b16 %v566, %v550
    %v743 = vpack.c.b16 %v567, %v551
    %v744 = vpack.c.b16 %v568, %v552
    %v745 = vpack.c.b16 %v569, %v553
    %v746 = vpack.c.b16 %v570, %v554
    %v747 = vpack.c.b16 %v571, %v555
    %v748 = vpack.c.b16 %v572, %v556
    %v749 = vpack.c.b16 %v573, %v557
    %v750 = vpack.c.b16 %v574, %v558
    %v751 = vpack.c.b16 %v575, %v559
    %v752 = vpack.c.b16 %v592, %v576
    %v753 = vpack.c.b16 %v593, %v577
    %v754 = vpack.c.b16 %v594, %v578
    %v755 = vpack.c.b16 %v595, %v579
    %v756 = vpack.c.b16 %v596, %v580
    %v757 = vpack.c.b16 %v597, %v581
    %v758 = vpack.c.b16 %v598, %v582
    %v759 = vpack.c.b16 %v599, %v583
    %v760 = vpack.c.b16 %v600, %v584
    %v761 = vpack.c.b16 %v601, %v585
    %v762 = vpack.c.b16 %v602, %v586
    %v763 = vpack.c.b16 %v603, %v587
    %v764 = vpack.c.b16 %v604, %v588
    %v765 = vpack.c.b16 %v605, %v589
    %v766 = vpack.c.b16 %v606, %v590
    %v767 = vpack.c.b16 %v607, %v591
    %v768 = vpack.c.b16 %v624, %v608
    %v769 = vpack.c.b16 %v625, %v609
    %v770 = vpack.c.b16 %v626, %v610
    %v771 = vpack.c.b16 %v627, %v611
    %v772 = vpack.c.b16 %v628, %v612
    %v773 = vpack.c.b16 %v629, %v613
    %v774 = vpack.c.b16 %v630, %v614
    %v775 = vpack.c.b16 %v631, %v615
    %v776 = vpack.c.b16 %v632, %v616
    %v777 = vpack.c.b16 %v633, %v617
    %v778 = vpack.c.b16 %v634, %v618
    %v779 = vpack.c.b16 %v635, %v619
    %v780 = vpack.c.b16 %v636, %v620
    %v781 = vpack.c.b16 %v637, %v621
    %v782 = vpack.c.b16 %v638, %v622
    %v783 = vpack.c.b16 %v639, %v623
    %v784 = vpack.c.b16 %v656, %v640
    %v785 = vpack.c.b16 %v657, %v641
    %v786 = vpack.c.b16 %v658, %v642
    %v787 = vpack.c.b16 %v659, %v643
    %v788 = vpack.c.b16 %v660, %v644
    %v789 = vpack.c.b16 %v661, %v645
    %v790 = vpack.c.b16 %v662, %v646
    %v791 = vpack.c.b16 %v663, %v647
    %v792 = vpack.c.b16 %v664, %v648
    %v793 = vpack.c.b16 %v665, %v649
    %v794 = vpack.c.b16 %v666, %v650
    %v795 = vpack.c.b16 %v667, %v651
    %v796 = vpack.c.b16 %v668, %v652
    %v797 = vpack.c.b16 %v669, %v653
    %v798 = vpack.c.b16 %v670, %v654
    %v799 = vpack.c.b16 %v671, %v655
    %928 = vmatprep.subr.bf16.mxu0 %v673
    %929 = vmatpush1.bf16.msra.mxu0 %v672
    %930 = vmatprep.subr.bf16.mxu0 %v689
    %931 = vmatpush1.bf16.msra.mxu0 %v688
    %932 = vmatprep.subr.bf16.mxu0 %v705
    %933 = vmatpush1.bf16.msra.mxu0 %v704
    %934 = vmatprep.subr.bf16.mxu0 %v721
    %935 = vmatpush1.bf16.msra.mxu0 %v720
    %936 = vmatprep.subr.bf16.mxu0 %v737
    %937 = vmatpush1.bf16.msra.mxu0 %v736
    %938 = vmatprep.subr.bf16.mxu0 %v753
    %939 = vmatpush1.bf16.msra.mxu0 %v752
    %940 = vmatprep.subr.bf16.mxu0 %v769
    %941 = vmatpush1.bf16.msra.mxu0 %v768
    %942 = vmatprep.subr.bf16.mxu0 %v785
    %943 = vmatpush1.bf16.msra.mxu0 %v784
    %944 = vmatprep.subr.bf16.mxu0 0
    %945 = vmatpush1.bf16.msra.mxu0 0
    %946 = vmatprep.subr.bf16.mxu0 0
    %947 = vmatpush1.bf16.msra.mxu0 0
    %948 = vmatprep.subr.bf16.mxu0 0
    %949 = vmatpush1.bf16.msra.mxu0 0
    %950 = vmatprep.subr.bf16.mxu0 0
    %951 = vmatpush1.bf16.msra.mxu0 0
    %952 = vmatprep.subr.bf16.mxu0 0
    %953 = vmatpush1.bf16.msra.mxu0 0
    %954 = vmatprep.subr.bf16.mxu0 0
    %955 = vmatpush1.bf16.msra.mxu0 0
    %956 = vmatprep.subr.bf16.mxu0 0
    %957 = vmatpush1.bf16.msra.mxu0 0
    %958 = vmatprep.subr.bf16.mxu0 0
    %959 = vmatpush1.bf16.msra.mxu0 0
    %960 = vmatprep.mubr.bf16.mxu0 0
    %961 = vmatmul.mubr.bf16.gmra.mrb[0].mxu0 %v272
    %v962 = vpop.f32.mrb[0].mxu0
    %v963 = vadd.f32 0.0, %v962
    %v964 = vpop.f32.mrb[0].mxu0
    %v965 = vadd.f32 0.0, %v964
    %v966 = vpop.f32.mrb[0].mxu0
    %v967 = vadd.f32 0.0, %v966
    %v968 = vpop.f32.mrb[0].mxu0
    %v969 = vadd.f32 0.0, %v968
    %970 = vmatprep.mubr.bf16.mxu0 0
    %971 = vmatmul.mubr.bf16.gmra.mrb[0].mxu0 %v273
    %v972 = vpop.f32.mrb[0].mxu0
    %v973 = vadd.f32 0.0, %v972
    %v974 = vpop.f32.mrb[0].mxu0
    %v975 = vadd.f32 0.0, %v974
    %v976 = vpop.f32.mrb[0].mxu0
    %v977 = vadd.f32 0.0, %v976
    %v978 = vpop.f32.mrb[0].mxu0
    %v979 = vadd.f32 0.0, %v978
    %980 = vmatprep.mubr.bf16.mxu0 0
    %981 = vmatmul.mubr.bf16.gmra.mrb[0].mxu0 %v274
    %v982 = vpop.f32.mrb[0].mxu0
    %v983 = vadd.f32 0.0, %v982
    %v984 = vpop.f32.mrb[0].mxu0
    %v985 = vadd.f32 0.0, %v984
    %v986 = vpop.f32.mrb[0].mxu0
    %v987 = vadd.f32 0.0, %v986
    %v988 = vpop.f32.mrb[0].mxu0
    %v989 = vadd.f32 0.0, %v988
    %990 = vmatprep.mubr.bf16.mxu0 0
    %991 = vmatmul.mubr.bf16.gmra.mrb[0].mxu0 %v275
    %v992 = vpop.f32.mrb[0].mxu0
    %v993 = vadd.f32 0.0, %v992
    %v994 = vpop.f32.mrb[0].mxu0
    %v995 = vadd.f32 0.0, %v994
    %v996 = vpop.f32.mrb[0].mxu0
    %v997 = vadd.f32 0.0, %v996
    %v998 = vpop.f32.mrb[0].mxu0
    %v999 = vadd.f32 0.0, %v998
    %1000 = vmatprep.mubr.bf16.mxu0 0
    %1001 = vmatmul.mubr.bf16.gmra.mrb[0].mxu0 %v276
    %v1002 = vpop.f32.mrb[0].mxu0
    %v1003 = vadd.f32 0.0, %v1002
    %v1004 = vpop.f32.mrb[0].mxu0
    %v1005 = vadd.f32 0.0, %v1004
    %v1006 = vpop.f32.mrb[0].mxu0
    %v1007 = vadd.f32 0.0, %v1006
    %v1008 = vpop.f32.mrb[0].mxu0
    %v1009 = vadd.f32 0.0, %v1008
    %1010 = vmatprep.mubr.bf16.mxu0 0
    %1011 = vmatmul.mubr.bf16.gmra.mrb[0].mxu0 %v277
    %v1012 = vpop.f32.mrb[0].mxu0
    %v1013 = vadd.f32 0.0, %v1012
    %v1014 = vpop.f32.mrb[0].mxu0
    %v1015 = vadd.f32 0.0, %v1014
    %v1016 = vpop.f32.mrb[0].mxu0
    %v1017 = vadd.f32 0.0, %v1016
    %v1018 = vpop.f32.mrb[0].mxu0
    %v1019 = vadd.f32 0.0, %v1018
    %1020 = vmatprep.mubr.bf16.mxu0 0
    %1021 = vmatmul.mubr.bf16.gmra.mrb[0].mxu0 %v278
    %v1022 = vpop.f32.mrb[0].mxu0
    %v1023 = vadd.f32 0.0, %v1022
    %v1024 = vpop.f32.mrb[0].mxu0
    %v1025 = vadd.f32 0.0, %v1024
    %v1026 = vpop.f32.mrb[0].mxu0
    %v1027 = vadd.f32 0.0, %v1026
    %v1028 = vpop.f32.mrb[0].mxu0
    %v1029 = vadd.f32 0.0, %v1028
    %1030 = vmatprep.mubr.bf16.mxu0 0
    %1031 = vmatmul.mubr.bf16.gmra.mrb[0].mxu0 %v279
    %v1032 = vpop.f32.mrb[0].mxu0
    %v1033 = vadd.f32 0.0, %v1032
    %v1034 = vpop.f32.mrb[0].mxu0
    %v1035 = vadd.f32 0.0, %v1034
    %v1036 = vpop.f32.mrb[0].mxu0
    %v1037 = vadd.f32 0.0, %v1036
    %v1038 = vpop.f32.mrb[0].mxu0
    %v1039 = vadd.f32 0.0, %v1038
    %1040 = vdwg.mxu0
    %1041 = vmatprep.subr.bf16.mxu0 %v675
    %1042 = vmatpush1.bf16.msra.mxu0 %v674
    %1043 = vmatprep.subr.bf16.mxu0 %v691
    %1044 = vmatpush1.bf16.msra.mxu0 %v690
    %1045 = vmatprep.subr.bf16.mxu0 %v707
    %1046 = vmatpush1.bf16.msra.mxu0 %v706
    %1047 = vmatprep.subr.bf16.mxu0 %v723
    %1048 = vmatpush1.bf16.msra.mxu0 %v722
    %1049 = vmatprep.subr.bf16.mxu0 %v739
    %1050 = vmatpush1.bf16.msra.mxu0 %v738
    %1051 = vmatprep.subr.bf16.mxu0 %v755
    %1052 = vmatpush1.bf16.msra.mxu0 %v754
    %1053 = vmatprep.subr.bf16.mxu0 %v771
    %1054 = vmatpush1.bf16.msra.mxu0 %v770
    %1055 = vmatprep.subr.bf16.mxu0 %v787
    %1056 = vmatpush1.bf16.msra.mxu0 %v786
    %1057 = vmatprep.subr.bf16.mxu0 0
    %1058 = vmatpush1.bf16.msra.mxu0 0
    %1059 = vmatprep.subr.bf16.mxu0 0
    %1060 = vmatpush1.bf16.msra.mxu0 0
    %1061 = vmatprep.subr.bf16.mxu0 0
    %1062 = vmatpush1.bf16.msra.mxu0 0
    %1063 = vmatprep.subr.bf16.mxu0 0
    %1064 = vmatpush1.bf16.msra.mxu0 0
    %1065 = vmatprep.subr.bf16.mxu0 0
    %1066 = vmatpush1.bf16.msra.mxu0 0
    %1067 = vmatprep.subr.bf16.mxu0 0
    %1068 = vmatpush1.bf16.msra.mxu0 0
    %1069 = vmatprep.subr.bf16.mxu0 0
    %1070 = vmatpush1.bf16.msra.mxu0 0
    %1071 = vmatprep.subr.bf16.mxu0 0
    %1072 = vmatpush1.bf16.msra.mxu0 0
    %1073 = vmatprep.mubr.bf16.mxu0 0
    %1074 = vmatmul.mubr.bf16.gmra.mrb[0].mxu0 %v272
    %v1075 = vpop.f32.mrb[0].mxu0
    %v1076 = vadd.f32 0.0, %v1075
    %v1077 = vpop.f32.mrb[0].mxu0
    %v1078 = vadd.f32 0.0, %v1077
    %v1079 = vpop.f32.mrb[0].mxu0
    %v1080 = vadd.f32 0.0, %v1079
    %v1081 = vpop.f32.mrb[0].mxu0
    %v1082 = vadd.f32 0.0, %v1081
    %1083 = vmatprep.mubr.bf16.mxu0 0
    %1084 = vmatmul.mubr.bf16.gmra.mrb[0].mxu0 %v273
    %v1085 = vpop.f32.mrb[0].mxu0
    %v1086 = vadd.f32 0.0, %v1085
    %v1087 = vpop.f32.mrb[0].mxu0
    %v1088 = vadd.f32 0.0, %v1087
    %v1089 = vpop.f32.mrb[0].mxu0
    %v1090 = vadd.f32 0.0, %v1089
    %v1091 = vpop.f32.mrb[0].mxu0
    %v1092 = vadd.f32 0.0, %v1091
    %1093 = vmatprep.mubr.bf16.mxu0 0
    %1094 = vmatmul.mubr.bf16.gmra.mrb[0].mxu0 %v274
    %v1095 = vpop.f32.mrb[0].mxu0
    %v1096 = vadd.f32 0.0, %v1095
    %v1097 = vpop.f32.mrb[0].mxu0
    %v1098 = vadd.f32 0.0, %v1097
    %v1099 = vpop.f32.mrb[0].mxu0
    %v1100 = vadd.f32 0.0, %v1099
    %v1101 = vpop.f32.mrb[0].mxu0
    %v1102 = vadd.f32 0.0, %v1101
    %1103 = vmatprep.mubr.bf16.mxu0 0
    %1104 = vmatmul.mubr.bf16.gmra.mrb[0].mxu0 %v275
    %v1105 = vpop.f32.mrb[0].mxu0
    %v1106 = vadd.f32 0.0, %v1105
    %v1107 = vpop.f32.mrb[0].mxu0
    %v1108 = vadd.f32 0.0, %v1107
    %v1109 = vpop.f32.mrb[0].mxu0
    %v1110 = vadd.f32 0.0, %v1109
    %v1111 = vpop.f32.mrb[0].mxu0
    %v1112 = vadd.f32 0.0, %v1111
    %1113 = vmatprep.mubr.bf16.mxu0 0
    %1114 = vmatmul.mubr.bf16.gmra.mrb[0].mxu0 %v276
    %v1115 = vpop.f32.mrb[0].mxu0
    %v1116 = vadd.f32 0.0, %v1115
    %v1117 = vpop.f32.mrb[0].mxu0
    %v1118 = vadd.f32 0.0, %v1117
    %v1119 = vpop.f32.mrb[0].mxu0
    %v1120 = vadd.f32 0.0, %v1119
    %v1121 = vpop.f32.mrb[0].mxu0
    %v1122 = vadd.f32 0.0, %v1121
    %1123 = vmatprep.mubr.bf16.mxu0 0
    %1124 = vmatmul.mubr.bf16.gmra.mrb[0].mxu0 %v277
    %v1125 = vpop.f32.mrb[0].mxu0
    %v1126 = vadd.f32 0.0, %v1125
    %v1127 = vpop.f32.mrb[0].mxu0
    %v1128 = vadd.f32 0.0, %v1127
    %v1129 = vpop.f32.mrb[0].mxu0
    %v1130 = vadd.f32 0.0, %v1129
    %v1131 = vpop.f32.mrb[0].mxu0
    %v1132 = vadd.f32 0.0, %v1131
    %1133 = vmatprep.mubr.bf16.mxu0 0
    %1134 = vmatmul.mubr.bf16.gmra.mrb[0].mxu0 %v278
    %v1135 = vpop.f32.mrb[0].mxu0
    %v1136 = vadd.f32 0.0, %v1135
    %v1137 = vpop.f32.mrb[0].mxu0
    %v1138 = vadd.f32 0.0, %v1137
    %v1139 = vpop.f32.mrb[0].mxu0
    %v1140 = vadd.f32 0.0, %v1139
    %v1141 = vpop.f32.mrb[0].mxu0
    %v1142 = vadd.f32 0.0, %v1141
    %1143 = vmatprep.mubr.bf16.mxu0 0
    %1144 = vmatmul.mubr.bf16.gmra.mrb[0].mxu0 %v279
    %v1145 = vpop.f32.mrb[0].mxu0
    %v1146 = vadd.f32 0.0, %v1145
    %v1147 = vpop.f32.mrb[0].mxu0
    %v1148 = vadd.f32 0.0, %v1147
    %v1149 = vpop.f32.mrb[0].mxu0
    %v1150 = vadd.f32 0.0, %v1149
    %v1151 = vpop.f32.mrb[0].mxu0
    %v1152 = vadd.f32 0.0, %v1151
    %1153 = vdwg.mxu0
    %1154 = vmatprep.subr.bf16.mxu0 %v677
    %1155 = vmatpush1.bf16.msra.mxu0 %v676
    %1156 = vmatprep.subr.bf16.mxu0 %v693
    %1157 = vmatpush1.bf16.msra.mxu0 %v692
    %1158 = vmatprep.subr.bf16.mxu0 %v709
    %1159 = vmatpush1.bf16.msra.mxu0 %v708
    %1160 = vmatprep.subr.bf16.mxu0 %v725
    %1161 = vmatpush1.bf16.msra.mxu0 %v724
    %1162 = vmatprep.subr.bf16.mxu0 %v741
    %1163 = vmatpush1.bf16.msra.mxu0 %v740
    %1164 = vmatprep.subr.bf16.mxu0 %v757
    %1165 = vmatpush1.bf16.msra.mxu0 %v756
    %1166 = vmatprep.subr.bf16.mxu0 %v773
    %1167 = vmatpush1.bf16.msra.mxu0 %v772
    %1168 = vmatprep.subr.bf16.mxu0 %v789
    %1169 = vmatpush1.bf16.msra.mxu0 %v788
    %1170 = vmatprep.subr.bf16.mxu0 0
    %1171 = vmatpush1.bf16.msra.mxu0 0
    %1172 = vmatprep.subr.bf16.mxu0 0
    %1173 = vmatpush1.bf16.msra.mxu0 0
    %1174 = vmatprep.subr.bf16.mxu0 0
    %1175 = vmatpush1.bf16.msra.mxu0 0
    %1176 = vmatprep.subr.bf16.mxu0 0
    %1177 = vmatpush1.bf16.msra.mxu0 0
    %1178 = vmatprep.subr.bf16.mxu0 0
    %1179 = vmatpush1.bf16.msra.mxu0 0
    %1180 = vmatprep.subr.bf16.mxu0 0
    %1181 = vmatpush1.bf16.msra.mxu0 0
    %1182 = vmatprep.subr.bf16.mxu0 0
    %1183 = vmatpush1.bf16.msra.mxu0 0
    %1184 = vmatprep.subr.bf16.mxu0 0
    %1185 = vmatpush1.bf16.msra.mxu0 0
    %1186 = vmatprep.mubr.bf16.mxu0 0
    %1187 = vmatmul.mubr.bf16.gmra.mrb[0].mxu0 %v272
    %v1188 = vpop.f32.mrb[0].mxu0
    %v1189 = vadd.f32 0.0, %v1188
    %v1190 = vpop.f32.mrb[0].mxu0
    %v1191 = vadd.f32 0.0, %v1190
    %v1192 = vpop.f32.mrb[0].mxu0
    %v1193 = vadd.f32 0.0, %v1192
    %v1194 = vpop.f32.mrb[0].mxu0
    %v1195 = vadd.f32 0.0, %v1194
    %1196 = vmatprep.mubr.bf16.mxu0 0
    %1197 = vmatmul.mubr.bf16.gmra.mrb[0].mxu0 %v273
    %v1198 = vpop.f32.mrb[0].mxu0
    %v1199 = vadd.f32 0.0, %v1198
    %v1200 = vpop.f32.mrb[0].mxu0
    %v1201 = vadd.f32 0.0, %v1200
    %v1202 = vpop.f32.mrb[0].mxu0
    %v1203 = vadd.f32 0.0, %v1202
    %v1204 = vpop.f32.mrb[0].mxu0
    %v1205 = vadd.f32 0.0, %v1204
    %1206 = vmatprep.mubr.bf16.mxu0 0
    %1207 = vmatmul.mubr.bf16.gmra.mrb[0].mxu0 %v274
    %v1208 = vpop.f32.mrb[0].mxu0
    %v1209 = vadd.f32 0.0, %v1208
    %v1210 = vpop.f32.mrb[0].mxu0
    %v1211 = vadd.f32 0.0, %v1210
    %v1212 = vpop.f32.mrb[0].mxu0
    %v1213 = vadd.f32 0.0, %v1212
    %v1214 = vpop.f32.mrb[0].mxu0
    %v1215 = vadd.f32 0.0, %v1214
    %1216 = vmatprep.mubr.bf16.mxu0 0
    %1217 = vmatmul.mubr.bf16.gmra.mrb[0].mxu0 %v275
    %v1218 = vpop.f32.mrb[0].mxu0
    %v1219 = vadd.f32 0.0, %v1218
    %v1220 = vpop.f32.mrb[0].mxu0
    %v1221 = vadd.f32 0.0, %v1220
    %v1222 = vpop.f32.mrb[0].mxu0
    %v1223 = vadd.f32 0.0, %v1222
    %v1224 = vpop.f32.mrb[0].mxu0
    %v1225 = vadd.f32 0.0, %v1224
    %1226 = vmatprep.mubr.bf16.mxu0 0
    %1227 = vmatmul.mubr.bf16.gmra.mrb[0].mxu0 %v276
    %v1228 = vpop.f32.mrb[0].mxu0
    %v1229 = vadd.f32 0.0, %v1228
    %v1230 = vpop.f32.mrb[0].mxu0
    %v1231 = vadd.f32 0.0, %v1230
    %v1232 = vpop.f32.mrb[0].mxu0
    %v1233 = vadd.f32 0.0, %v1232
    %v1234 = vpop.f32.mrb[0].mxu0
    %v1235 = vadd.f32 0.0, %v1234
    %1236 = vmatprep.mubr.bf16.mxu0 0
    %1237 = vmatmul.mubr.bf16.gmra.mrb[0].mxu0 %v277
    %v1238 = vpop.f32.mrb[0].mxu0
    %v1239 = vadd.f32 0.0, %v1238
    %v1240 = vpop.f32.mrb[0].mxu0
    %v1241 = vadd.f32 0.0, %v1240
    %v1242 = vpop.f32.mrb[0].mxu0
    %v1243 = vadd.f32 0.0, %v1242
    %v1244 = vpop.f32.mrb[0].mxu0
    %v1245 = vadd.f32 0.0, %v1244
    %1246 = vmatprep.mubr.bf16.mxu0 0
    %1247 = vmatmul.mubr.bf16.gmra.mrb[0].mxu0 %v278
    %v1248 = vpop.f32.mrb[0].mxu0
    %v1249 = vadd.f32 0.0, %v1248
    %v1250 = vpop.f32.mrb[0].mxu0
    %v1251 = vadd.f32 0.0, %v1250
    %v1252 = vpop.f32.mrb[0].mxu0
    %v1253 = vadd.f32 0.0, %v1252
    %v1254 = vpop.f32.mrb[0].mxu0
    %v1255 = vadd.f32 0.0, %v1254
    %1256 = vmatprep.mubr.bf16.mxu0 0
    %1257 = vmatmul.mubr.bf16.gmra.mrb[0].mxu0 %v279
    %v1258 = vpop.f32.mrb[0].mxu0
    %v1259 = vadd.f32 0.0, %v1258
    %v1260 = vpop.f32.mrb[0].mxu0
    %v1261 = vadd.f32 0.0, %v1260
    %v1262 = vpop.f32.mrb[0].mxu0
    %v1263 = vadd.f32 0.0, %v1262
    %v1264 = vpop.f32.mrb[0].mxu0
    %v1265 = vadd.f32 0.0, %v1264
    %1266 = vdwg.mxu0
    %1267 = vmatprep.subr.bf16.mxu0 %v679
    %1268 = vmatpush1.bf16.msra.mxu0 %v678
    %1269 = vmatprep.subr.bf16.mxu0 %v695
    %1270 = vmatpush1.bf16.msra.mxu0 %v694
    %1271 = vmatprep.subr.bf16.mxu0 %v711
    %1272 = vmatpush1.bf16.msra.mxu0 %v710
    %1273 = vmatprep.subr.bf16.mxu0 %v727
    %1274 = vmatpush1.bf16.msra.mxu0 %v726
    %1275 = vmatprep.subr.bf16.mxu0 %v743
    %1276 = vmatpush1.bf16.msra.mxu0 %v742
    %1277 = vmatprep.subr.bf16.mxu0 %v759
    %1278 = vmatpush1.bf16.msra.mxu0 %v758
    %1279 = vmatprep.subr.bf16.mxu0 %v775
    %1280 = vmatpush1.bf16.msra.mxu0 %v774
    %1281 = vmatprep.subr.bf16.mxu0 %v791
    %1282 = vmatpush1.bf16.msra.mxu0 %v790
    %1283 = vmatprep.subr.bf16.mxu0 0
    %1284 = vmatpush1.bf16.msra.mxu0 0
    %1285 = vmatprep.subr.bf16.mxu0 0
    %1286 = vmatpush1.bf16.msra.mxu0 0
    %1287 = vmatprep.subr.bf16.mxu0 0
    %1288 = vmatpush1.bf16.msra.mxu0 0
    %1289 = vmatprep.subr.bf16.mxu0 0
    %1290 = vmatpush1.bf16.msra.mxu0 0
    %1291 = vmatprep.subr.bf16.mxu0 0
    %1292 = vmatpush1.bf16.msra.mxu0 0
    %1293 = vmatprep.subr.bf16.mxu0 0
    %1294 = vmatpush1.bf16.msra.mxu0 0
    %1295 = vmatprep.subr.bf16.mxu0 0
    %1296 = vmatpush1.bf16.msra.mxu0 0
    %1297 = vmatprep.subr.bf16.mxu0 0
    %1298 = vmatpush1.bf16.msra.mxu0 0
    %1299 = vmatprep.mubr.bf16.mxu0 0
    %1300 = vmatmul.mubr.bf16.gmra.mrb[0].mxu0 %v272
    %v1301 = vpop.f32.mrb[0].mxu0
    %v1302 = vadd.f32 0.0, %v1301
    %v1303 = vpop.f32.mrb[0].mxu0
    %v1304 = vadd.f32 0.0, %v1303
    %v1305 = vpop.f32.mrb[0].mxu0
    %v1306 = vadd.f32 0.0, %v1305
    %v1307 = vpop.f32.mrb[0].mxu0
    %v1308 = vadd.f32 0.0, %v1307
    %1309 = vmatprep.mubr.bf16.mxu0 0
    %1310 = vmatmul.mubr.bf16.gmra.mrb[0].mxu0 %v273
    %v1311 = vpop.f32.mrb[0].mxu0
    %v1312 = vadd.f32 0.0, %v1311
    %v1313 = vpop.f32.mrb[0].mxu0
    %v1314 = vadd.f32 0.0, %v1313
    %v1315 = vpop.f32.mrb[0].mxu0
    %v1316 = vadd.f32 0.0, %v1315
    %v1317 = vpop.f32.mrb[0].mxu0
    %v1318 = vadd.f32 0.0, %v1317
    %1319 = vmatprep.mubr.bf16.mxu0 0
    %1320 = vmatmul.mubr.bf16.gmra.mrb[0].mxu0 %v274
    %v1321 = vpop.f32.mrb[0].mxu0
    %v1322 = vadd.f32 0.0, %v1321
    %v1323 = vpop.f32.mrb[0].mxu0
    %v1324 = vadd.f32 0.0, %v1323
    %v1325 = vpop.f32.mrb[0].mxu0
    %v1326 = vadd.f32 0.0, %v1325
    %v1327 = vpop.f32.mrb[0].mxu0
    %v1328 = vadd.f32 0.0, %v1327
    %1329 = vmatprep.mubr.bf16.mxu0 0
    %1330 = vmatmul.mubr.bf16.gmra.mrb[0].mxu0 %v275
    %v1331 = vpop.f32.mrb[0].mxu0
    %v1332 = vadd.f32 0.0, %v1331
    %v1333 = vpop.f32.mrb[0].mxu0
    %v1334 = vadd.f32 0.0, %v1333
    %v1335 = vpop.f32.mrb[0].mxu0
    %v1336 = vadd.f32 0.0, %v1335
    %v1337 = vpop.f32.mrb[0].mxu0
    %v1338 = vadd.f32 0.0, %v1337
    %1339 = vmatprep.mubr.bf16.mxu0 0
    %1340 = vmatmul.mubr.bf16.gmra.mrb[0].mxu0 %v276
    %v1341 = vpop.f32.mrb[0].mxu0
    %v1342 = vadd.f32 0.0, %v1341
    %v1343 = vpop.f32.mrb[0].mxu0
    %v1344 = vadd.f32 0.0, %v1343
    %v1345 = vpop.f32.mrb[0].mxu0
    %v1346 = vadd.f32 0.0, %v1345
    %v1347 = vpop.f32.mrb[0].mxu0
    %v1348 = vadd.f32 0.0, %v1347
    %1349 = vmatprep.mubr.bf16.mxu0 0
    %1350 = vmatmul.mubr.bf16.gmra.mrb[0].mxu0 %v277
    %v1351 = vpop.f32.mrb[0].mxu0
    %v1352 = vadd.f32 0.0, %v1351
    %v1353 = vpop.f32.mrb[0].mxu0
    %v1354 = vadd.f32 0.0, %v1353
    %v1355 = vpop.f32.mrb[0].mxu0
    %v1356 = vadd.f32 0.0, %v1355
    %v1357 = vpop.f32.mrb[0].mxu0
    %v1358 = vadd.f32 0.0, %v1357
    %1359 = vmatprep.mubr.bf16.mxu0 0
    %1360 = vmatmul.mubr.bf16.gmra.mrb[0].mxu0 %v278
    %v1361 = vpop.f32.mrb[0].mxu0
    %v1362 = vadd.f32 0.0, %v1361
    %v1363 = vpop.f32.mrb[0].mxu0
    %v1364 = vadd.f32 0.0, %v1363
    %v1365 = vpop.f32.mrb[0].mxu0
    %v1366 = vadd.f32 0.0, %v1365
    %v1367 = vpop.f32.mrb[0].mxu0
    %v1368 = vadd.f32 0.0, %v1367
    %1369 = vmatprep.mubr.bf16.mxu0 0
    %1370 = vmatmul.mubr.bf16.gmra.mrb[0].mxu0 %v279
    %v1371 = vpop.f32.mrb[0].mxu0
    %v1372 = vadd.f32 0.0, %v1371
    %v1373 = vpop.f32.mrb[0].mxu0
    %v1374 = vadd.f32 0.0, %v1373
    %v1375 = vpop.f32.mrb[0].mxu0
    %v1376 = vadd.f32 0.0, %v1375
    %v1377 = vpop.f32.mrb[0].mxu0
    %v1378 = vadd.f32 0.0, %v1377
    %1379 = vdwg.mxu0
    %1380 = vmatprep.subr.bf16.mxu0 %v681
    %1381 = vmatpush1.bf16.msra.mxu0 %v680
    %1382 = vmatprep.subr.bf16.mxu0 %v697
    %1383 = vmatpush1.bf16.msra.mxu0 %v696
    %1384 = vmatprep.subr.bf16.mxu0 %v713
    %1385 = vmatpush1.bf16.msra.mxu0 %v712
    %1386 = vmatprep.subr.bf16.mxu0 %v729
    %1387 = vmatpush1.bf16.msra.mxu0 %v728
    %1388 = vmatprep.subr.bf16.mxu0 %v745
    %1389 = vmatpush1.bf16.msra.mxu0 %v744
    %1390 = vmatprep.subr.bf16.mxu0 %v761
    %1391 = vmatpush1.bf16.msra.mxu0 %v760
    %1392 = vmatprep.subr.bf16.mxu0 %v777
    %1393 = vmatpush1.bf16.msra.mxu0 %v776
    %1394 = vmatprep.subr.bf16.mxu0 %v793
    %1395 = vmatpush1.bf16.msra.mxu0 %v792
    %1396 = vmatprep.subr.bf16.mxu0 0
    %1397 = vmatpush1.bf16.msra.mxu0 0
    %1398 = vmatprep.subr.bf16.mxu0 0
    %1399 = vmatpush1.bf16.msra.mxu0 0
    %1400 = vmatprep.subr.bf16.mxu0 0
    %1401 = vmatpush1.bf16.msra.mxu0 0
    %1402 = vmatprep.subr.bf16.mxu0 0
    %1403 = vmatpush1.bf16.msra.mxu0 0
    %1404 = vmatprep.subr.bf16.mxu0 0
    %1405 = vmatpush1.bf16.msra.mxu0 0
    %1406 = vmatprep.subr.bf16.mxu0 0
    %1407 = vmatpush1.bf16.msra.mxu0 0
    %1408 = vmatprep.subr.bf16.mxu0 0
    %1409 = vmatpush1.bf16.msra.mxu0 0
    %1410 = vmatprep.subr.bf16.mxu0 0
    %1411 = vmatpush1.bf16.msra.mxu0 0
    %1412 = vmatprep.mubr.bf16.mxu0 0
    %1413 = vmatmul.mubr.bf16.gmra.mrb[0].mxu0 %v272
    %v1414 = vpop.f32.mrb[0].mxu0
    %v1415 = vadd.f32 0.0, %v1414
    %v1416 = vpop.f32.mrb[0].mxu0
    %v1417 = vadd.f32 0.0, %v1416
    %v1418 = vpop.f32.mrb[0].mxu0
    %v1419 = vadd.f32 0.0, %v1418
    %v1420 = vpop.f32.mrb[0].mxu0
    %v1421 = vadd.f32 0.0, %v1420
    %1422 = vmatprep.mubr.bf16.mxu0 0
    %1423 = vmatmul.mubr.bf16.gmra.mrb[0].mxu0 %v273
    %v1424 = vpop.f32.mrb[0].mxu0
    %v1425 = vadd.f32 0.0, %v1424
    %v1426 = vpop.f32.mrb[0].mxu0
    %v1427 = vadd.f32 0.0, %v1426
    %v1428 = vpop.f32.mrb[0].mxu0
    %v1429 = vadd.f32 0.0, %v1428
    %v1430 = vpop.f32.mrb[0].mxu0
    %v1431 = vadd.f32 0.0, %v1430
    %1432 = vmatprep.mubr.bf16.mxu0 0
    %1433 = vmatmul.mubr.bf16.gmra.mrb[0].mxu0 %v274
    %v1434 = vpop.f32.mrb[0].mxu0
    %v1435 = vadd.f32 0.0, %v1434
    %v1436 = vpop.f32.mrb[0].mxu0
    %v1437 = vadd.f32 0.0, %v1436
    %v1438 = vpop.f32.mrb[0].mxu0
    %v1439 = vadd.f32 0.0, %v1438
    %v1440 = vpop.f32.mrb[0].mxu0
    %v1441 = vadd.f32 0.0, %v1440
    %1442 = vmatprep.mubr.bf16.mxu0 0
    %1443 = vmatmul.mubr.bf16.gmra.mrb[0].mxu0 %v275
    %v1444 = vpop.f32.mrb[0].mxu0
    %v1445 = vadd.f32 0.0, %v1444
    %v1446 = vpop.f32.mrb[0].mxu0
    %v1447 = vadd.f32 0.0, %v1446
    %v1448 = vpop.f32.mrb[0].mxu0
    %v1449 = vadd.f32 0.0, %v1448
    %v1450 = vpop.f32.mrb[0].mxu0
    %v1451 = vadd.f32 0.0, %v1450
    %1452 = vmatprep.mubr.bf16.mxu0 0
    %1453 = vmatmul.mubr.bf16.gmra.mrb[0].mxu0 %v276
    %v1454 = vpop.f32.mrb[0].mxu0
    %v1455 = vadd.f32 0.0, %v1454
    %v1456 = vpop.f32.mrb[0].mxu0
    %v1457 = vadd.f32 0.0, %v1456
    %v1458 = vpop.f32.mrb[0].mxu0
    %v1459 = vadd.f32 0.0, %v1458
    %v1460 = vpop.f32.mrb[0].mxu0
    %v1461 = vadd.f32 0.0, %v1460
    %1462 = vmatprep.mubr.bf16.mxu0 0
    %1463 = vmatmul.mubr.bf16.gmra.mrb[0].mxu0 %v277
    %v1464 = vpop.f32.mrb[0].mxu0
    %v1465 = vadd.f32 0.0, %v1464
    %v1466 = vpop.f32.mrb[0].mxu0
    %v1467 = vadd.f32 0.0, %v1466
    %v1468 = vpop.f32.mrb[0].mxu0
    %v1469 = vadd.f32 0.0, %v1468
    %v1470 = vpop.f32.mrb[0].mxu0
    %v1471 = vadd.f32 0.0, %v1470
    %1472 = vmatprep.mubr.bf16.mxu0 0
    %1473 = vmatmul.mubr.bf16.gmra.mrb[0].mxu0 %v278
    %v1474 = vpop.f32.mrb[0].mxu0
    %v1475 = vadd.f32 0.0, %v1474
    %v1476 = vpop.f32.mrb[0].mxu0
    %v1477 = vadd.f32 0.0, %v1476
    %v1478 = vpop.f32.mrb[0].mxu0
    %v1479 = vadd.f32 0.0, %v1478
    %v1480 = vpop.f32.mrb[0].mxu0
    %v1481 = vadd.f32 0.0, %v1480
    %1482 = vmatprep.mubr.bf16.mxu0 0
    %1483 = vmatmul.mubr.bf16.gmra.mrb[0].mxu0 %v279
    %v1484 = vpop.f32.mrb[0].mxu0
    %v1485 = vadd.f32 0.0, %v1484
    %v1486 = vpop.f32.mrb[0].mxu0
    %v1487 = vadd.f32 0.0, %v1486
    %v1488 = vpop.f32.mrb[0].mxu0
    %v1489 = vadd.f32 0.0, %v1488
    %v1490 = vpop.f32.mrb[0].mxu0
    %v1491 = vadd.f32 0.0, %v1490
    %1492 = vdwg.mxu0
    %1493 = vmatprep.subr.bf16.mxu0 %v683
    %1494 = vmatpush1.bf16.msra.mxu0 %v682
    %1495 = vmatprep.subr.bf16.mxu0 %v699
    %1496 = vmatpush1.bf16.msra.mxu0 %v698
    %1497 = vmatprep.subr.bf16.mxu0 %v715
    %1498 = vmatpush1.bf16.msra.mxu0 %v714
    %1499 = vmatprep.subr.bf16.mxu0 %v731
    %1500 = vmatpush1.bf16.msra.mxu0 %v730
    %1501 = vmatprep.subr.bf16.mxu0 %v747
    %1502 = vmatpush1.bf16.msra.mxu0 %v746
    %1503 = vmatprep.subr.bf16.mxu0 %v763
    %1504 = vmatpush1.bf16.msra.mxu0 %v762
    %1505 = vmatprep.subr.bf16.mxu0 %v779
    %1506 = vmatpush1.bf16.msra.mxu0 %v778
    %1507 = vmatprep.subr.bf16.mxu0 %v795
    %1508 = vmatpush1.bf16.msra.mxu0 %v794
    %1509 = vmatprep.subr.bf16.mxu0 0
    %1510 = vmatpush1.bf16.msra.mxu0 0
    %1511 = vmatprep.subr.bf16.mxu0 0
    %1512 = vmatpush1.bf16.msra.mxu0 0
    %1513 = vmatprep.subr.bf16.mxu0 0
    %1514 = vmatpush1.bf16.msra.mxu0 0
    %1515 = vmatprep.subr.bf16.mxu0 0
    %1516 = vmatpush1.bf16.msra.mxu0 0
    %1517 = vmatprep.subr.bf16.mxu0 0
    %1518 = vmatpush1.bf16.msra.mxu0 0
    %1519 = vmatprep.subr.bf16.mxu0 0
    %1520 = vmatpush1.bf16.msra.mxu0 0
    %1521 = vmatprep.subr.bf16.mxu0 0
    %1522 = vmatpush1.bf16.msra.mxu0 0
    %1523 = vmatprep.subr.bf16.mxu0 0
    %1524 = vmatpush1.bf16.msra.mxu0 0
    %1525 = vmatprep.mubr.bf16.mxu0 0
    %1526 = vmatmul.mubr.bf16.gmra.mrb[0].mxu0 %v272
    %v1527 = vpop.f32.mrb[0].mxu0
    %v1528 = vadd.f32 0.0, %v1527
    %v1529 = vpop.f32.mrb[0].mxu0
    %v1530 = vadd.f32 0.0, %v1529
    %v1531 = vpop.f32.mrb[0].mxu0
    %v1532 = vadd.f32 0.0, %v1531
    %v1533 = vpop.f32.mrb[0].mxu0
    %v1534 = vadd.f32 0.0, %v1533
    %1535 = vmatprep.mubr.bf16.mxu0 0
    %1536 = vmatmul.mubr.bf16.gmra.mrb[0].mxu0 %v273
    %v1537 = vpop.f32.mrb[0].mxu0
    %v1538 = vadd.f32 0.0, %v1537
    %v1539 = vpop.f32.mrb[0].mxu0
    %v1540 = vadd.f32 0.0, %v1539
    %v1541 = vpop.f32.mrb[0].mxu0
    %v1542 = vadd.f32 0.0, %v1541
    %v1543 = vpop.f32.mrb[0].mxu0
    %v1544 = vadd.f32 0.0, %v1543
    %1545 = vmatprep.mubr.bf16.mxu0 0
    %1546 = vmatmul.mubr.bf16.gmra.mrb[0].mxu0 %v274
    %v1547 = vpop.f32.mrb[0].mxu0
    %v1548 = vadd.f32 0.0, %v1547
    %v1549 = vpop.f32.mrb[0].mxu0
    %v1550 = vadd.f32 0.0, %v1549
    %v1551 = vpop.f32.mrb[0].mxu0
    %v1552 = vadd.f32 0.0, %v1551
    %v1553 = vpop.f32.mrb[0].mxu0
    %v1554 = vadd.f32 0.0, %v1553
    %1555 = vmatprep.mubr.bf16.mxu0 0
    %1556 = vmatmul.mubr.bf16.gmra.mrb[0].mxu0 %v275
    %v1557 = vpop.f32.mrb[0].mxu0
    %v1558 = vadd.f32 0.0, %v1557
    %v1559 = vpop.f32.mrb[0].mxu0
    %v1560 = vadd.f32 0.0, %v1559
    %v1561 = vpop.f32.mrb[0].mxu0
    %v1562 = vadd.f32 0.0, %v1561
    %v1563 = vpop.f32.mrb[0].mxu0
    %v1564 = vadd.f32 0.0, %v1563
    %1565 = vmatprep.mubr.bf16.mxu0 0
    %1566 = vmatmul.mubr.bf16.gmra.mrb[0].mxu0 %v276
    %v1567 = vpop.f32.mrb[0].mxu0
    %v1568 = vadd.f32 0.0, %v1567
    %v1569 = vpop.f32.mrb[0].mxu0
    %v1570 = vadd.f32 0.0, %v1569
    %v1571 = vpop.f32.mrb[0].mxu0
    %v1572 = vadd.f32 0.0, %v1571
    %v1573 = vpop.f32.mrb[0].mxu0
    %v1574 = vadd.f32 0.0, %v1573
    %1575 = vmatprep.mubr.bf16.mxu0 0
    %1576 = vmatmul.mubr.bf16.gmra.mrb[0].mxu0 %v277
    %v1577 = vpop.f32.mrb[0].mxu0
    %v1578 = vadd.f32 0.0, %v1577
    %v1579 = vpop.f32.mrb[0].mxu0
    %v1580 = vadd.f32 0.0, %v1579
    %v1581 = vpop.f32.mrb[0].mxu0
    %v1582 = vadd.f32 0.0, %v1581
    %v1583 = vpop.f32.mrb[0].mxu0
    %v1584 = vadd.f32 0.0, %v1583
    %1585 = vmatprep.mubr.bf16.mxu0 0
    %1586 = vmatmul.mubr.bf16.gmra.mrb[0].mxu0 %v278
    %v1587 = vpop.f32.mrb[0].mxu0
    %v1588 = vadd.f32 0.0, %v1587
    %v1589 = vpop.f32.mrb[0].mxu0
    %v1590 = vadd.f32 0.0, %v1589
    %v1591 = vpop.f32.mrb[0].mxu0
    %v1592 = vadd.f32 0.0, %v1591
    %v1593 = vpop.f32.mrb[0].mxu0
    %v1594 = vadd.f32 0.0, %v1593
    %1595 = vmatprep.mubr.bf16.mxu0 0
    %1596 = vmatmul.mubr.bf16.gmra.mrb[0].mxu0 %v279
    %v1597 = vpop.f32.mrb[0].mxu0
    %v1598 = vadd.f32 0.0, %v1597
    %v1599 = vpop.f32.mrb[0].mxu0
    %v1600 = vadd.f32 0.0, %v1599
    %v1601 = vpop.f32.mrb[0].mxu0
    %v1602 = vadd.f32 0.0, %v1601
    %v1603 = vpop.f32.mrb[0].mxu0
    %v1604 = vadd.f32 0.0, %v1603
    %1605 = vdwg.mxu0
    %1606 = vmatprep.subr.bf16.mxu0 %v685
    %1607 = vmatpush1.bf16.msra.mxu0 %v684
    %1608 = vmatprep.subr.bf16.mxu0 %v701
    %1609 = vmatpush1.bf16.msra.mxu0 %v700
    %1610 = vmatprep.subr.bf16.mxu0 %v717
    %1611 = vmatpush1.bf16.msra.mxu0 %v716
    %1612 = vmatprep.subr.bf16.mxu0 %v733
    %1613 = vmatpush1.bf16.msra.mxu0 %v732
    %1614 = vmatprep.subr.bf16.mxu0 %v749
    %1615 = vmatpush1.bf16.msra.mxu0 %v748
    %1616 = vmatprep.subr.bf16.mxu0 %v765
    %1617 = vmatpush1.bf16.msra.mxu0 %v764
    %1618 = vmatprep.subr.bf16.mxu0 %v781
    %1619 = vmatpush1.bf16.msra.mxu0 %v780
    %1620 = vmatprep.subr.bf16.mxu0 %v797
    %1621 = vmatpush1.bf16.msra.mxu0 %v796
    %1622 = vmatprep.subr.bf16.mxu0 0
    %1623 = vmatpush1.bf16.msra.mxu0 0
    %1624 = vmatprep.subr.bf16.mxu0 0
    %1625 = vmatpush1.bf16.msra.mxu0 0
    %1626 = vmatprep.subr.bf16.mxu0 0
    %1627 = vmatpush1.bf16.msra.mxu0 0
    %1628 = vmatprep.subr.bf16.mxu0 0
    %1629 = vmatpush1.bf16.msra.mxu0 0
    %1630 = vmatprep.subr.bf16.mxu0 0
    %1631 = vmatpush1.bf16.msra.mxu0 0
    %1632 = vmatprep.subr.bf16.mxu0 0
    %1633 = vmatpush1.bf16.msra.mxu0 0
    %1634 = vmatprep.subr.bf16.mxu0 0
    %1635 = vmatpush1.bf16.msra.mxu0 0
    %1636 = vmatprep.subr.bf16.mxu0 0
    %1637 = vmatpush1.bf16.msra.mxu0 0
    %1638 = vmatprep.mubr.bf16.mxu0 0
    %1639 = vmatmul.mubr.bf16.gmra.mrb[0].mxu0 %v272
    %v1640 = vpop.f32.mrb[0].mxu0
    %v1641 = vadd.f32 0.0, %v1640
    %v1642 = vpop.f32.mrb[0].mxu0
    %v1643 = vadd.f32 0.0, %v1642
    %v1644 = vpop.f32.mrb[0].mxu0
    %v1645 = vadd.f32 0.0, %v1644
    %v1646 = vpop.f32.mrb[0].mxu0
    %v1647 = vadd.f32 0.0, %v1646
    %1648 = vmatprep.mubr.bf16.mxu0 0
    %1649 = vmatmul.mubr.bf16.gmra.mrb[0].mxu0 %v273
    %v1650 = vpop.f32.mrb[0].mxu0
    %v1651 = vadd.f32 0.0, %v1650
    %v1652 = vpop.f32.mrb[0].mxu0
    %v1653 = vadd.f32 0.0, %v1652
    %v1654 = vpop.f32.mrb[0].mxu0
    %v1655 = vadd.f32 0.0, %v1654
    %v1656 = vpop.f32.mrb[0].mxu0
    %v1657 = vadd.f32 0.0, %v1656
    %1658 = vmatprep.mubr.bf16.mxu0 0
    %1659 = vmatmul.mubr.bf16.gmra.mrb[0].mxu0 %v274
    %v1660 = vpop.f32.mrb[0].mxu0
    %v1661 = vadd.f32 0.0, %v1660
    %v1662 = vpop.f32.mrb[0].mxu0
    %v1663 = vadd.f32 0.0, %v1662
    %v1664 = vpop.f32.mrb[0].mxu0
    %v1665 = vadd.f32 0.0, %v1664
    %v1666 = vpop.f32.mrb[0].mxu0
    %v1667 = vadd.f32 0.0, %v1666
    %1668 = vmatprep.mubr.bf16.mxu0 0
    %1669 = vmatmul.mubr.bf16.gmra.mrb[0].mxu0 %v275
    %v1670 = vpop.f32.mrb[0].mxu0
    %v1671 = vadd.f32 0.0, %v1670
    %v1672 = vpop.f32.mrb[0].mxu0
    %v1673 = vadd.f32 0.0, %v1672
    %v1674 = vpop.f32.mrb[0].mxu0
    %v1675 = vadd.f32 0.0, %v1674
    %v1676 = vpop.f32.mrb[0].mxu0
    %v1677 = vadd.f32 0.0, %v1676
    %1678 = vmatprep.mubr.bf16.mxu0 0
    %1679 = vmatmul.mubr.bf16.gmra.mrb[0].mxu0 %v276
    %v1680 = vpop.f32.mrb[0].mxu0
    %v1681 = vadd.f32 0.0, %v1680
    %v1682 = vpop.f32.mrb[0].mxu0
    %v1683 = vadd.f32 0.0, %v1682
    %v1684 = vpop.f32.mrb[0].mxu0
    %v1685 = vadd.f32 0.0, %v1684
    %v1686 = vpop.f32.mrb[0].mxu0
    %v1687 = vadd.f32 0.0, %v1686
    %1688 = vmatprep.mubr.bf16.mxu0 0
    %1689 = vmatmul.mubr.bf16.gmra.mrb[0].mxu0 %v277
    %v1690 = vpop.f32.mrb[0].mxu0
    %v1691 = vadd.f32 0.0, %v1690
    %v1692 = vpop.f32.mrb[0].mxu0
    %v1693 = vadd.f32 0.0, %v1692
    %v1694 = vpop.f32.mrb[0].mxu0
    %v1695 = vadd.f32 0.0, %v1694
    %v1696 = vpop.f32.mrb[0].mxu0
    %v1697 = vadd.f32 0.0, %v1696
    %1698 = vmatprep.mubr.bf16.mxu0 0
    %1699 = vmatmul.mubr.bf16.gmra.mrb[0].mxu0 %v278
    %v1700 = vpop.f32.mrb[0].mxu0
    %v1701 = vadd.f32 0.0, %v1700
    %v1702 = vpop.f32.mrb[0].mxu0
    %v1703 = vadd.f32 0.0, %v1702
    %v1704 = vpop.f32.mrb[0].mxu0
    %v1705 = vadd.f32 0.0, %v1704
    %v1706 = vpop.f32.mrb[0].mxu0
    %v1707 = vadd.f32 0.0, %v1706
    %1708 = vmatprep.mubr.bf16.mxu0 0
    %1709 = vmatmul.mubr.bf16.gmra.mrb[0].mxu0 %v279
    %v1710 = vpop.f32.mrb[0].mxu0
    %v1711 = vadd.f32 0.0, %v1710
    %v1712 = vpop.f32.mrb[0].mxu0
    %v1713 = vadd.f32 0.0, %v1712
    %v1714 = vpop.f32.mrb[0].mxu0
    %v1715 = vadd.f32 0.0, %v1714
    %v1716 = vpop.f32.mrb[0].mxu0
    %v1717 = vadd.f32 0.0, %v1716
    %1718 = vdwg.mxu0
    %1719 = vmatprep.subr.bf16.mxu0 %v687
    %1720 = vmatpush1.bf16.msra.mxu0 %v686
    %1721 = vmatprep.subr.bf16.mxu0 %v703
    %1722 = vmatpush1.bf16.msra.mxu0 %v702
    %1723 = vmatprep.subr.bf16.mxu0 %v719
    %1724 = vmatpush1.bf16.msra.mxu0 %v718
    %1725 = vmatprep.subr.bf16.mxu0 %v735
    %1726 = vmatpush1.bf16.msra.mxu0 %v734
    %1727 = vmatprep.subr.bf16.mxu0 %v751
    %1728 = vmatpush1.bf16.msra.mxu0 %v750
    %1729 = vmatprep.subr.bf16.mxu0 %v767
    %1730 = vmatpush1.bf16.msra.mxu0 %v766
    %1731 = vmatprep.subr.bf16.mxu0 %v783
    %1732 = vmatpush1.bf16.msra.mxu0 %v782
    %1733 = vmatprep.subr.bf16.mxu0 %v799
    %1734 = vmatpush1.bf16.msra.mxu0 %v798
    %1735 = vmatprep.subr.bf16.mxu0 0
    %1736 = vmatpush1.bf16.msra.mxu0 0
    %1737 = vmatprep.subr.bf16.mxu0 0
    %1738 = vmatpush1.bf16.msra.mxu0 0
    %1739 = vmatprep.subr.bf16.mxu0 0
    %1740 = vmatpush1.bf16.msra.mxu0 0
    %1741 = vmatprep.subr.bf16.mxu0 0
    %1742 = vmatpush1.bf16.msra.mxu0 0
    %1743 = vmatprep.subr.bf16.mxu0 0
    %1744 = vmatpush1.bf16.msra.mxu0 0
    %1745 = vmatprep.subr.bf16.mxu0 0
    %1746 = vmatpush1.bf16.msra.mxu0 0
    %1747 = vmatprep.subr.bf16.mxu0 0
    %1748 = vmatpush1.bf16.msra.mxu0 0
    %1749 = vmatprep.subr.bf16.mxu0 0
    %1750 = vmatpush1.bf16.msra.mxu0 0
    %1751 = vmatprep.mubr.bf16.mxu0 0
    %1752 = vmatmul.mubr.bf16.gmra.mrb[0].mxu0 %v272
    %v1753 = vpop.f32.mrb[0].mxu0
    %v1754 = vadd.f32 0.0, %v1753
    %v1755 = vpop.f32.mrb[0].mxu0
    %v1756 = vadd.f32 0.0, %v1755
    %v1757 = vpop.f32.mrb[0].mxu0
    %v1758 = vadd.f32 0.0, %v1757
    %v1759 = vpop.f32.mrb[0].mxu0
    %v1760 = vadd.f32 0.0, %v1759
    %1761 = vmatprep.mubr.bf16.mxu0 0
    %1762 = vmatmul.mubr.bf16.gmra.mrb[0].mxu0 %v273
    %v1763 = vpop.f32.mrb[0].mxu0
    %v1764 = vadd.f32 0.0, %v1763
    %v1765 = vpop.f32.mrb[0].mxu0
    %v1766 = vadd.f32 0.0, %v1765
    %v1767 = vpop.f32.mrb[0].mxu0
    %v1768 = vadd.f32 0.0, %v1767
    %v1769 = vpop.f32.mrb[0].mxu0
    %v1770 = vadd.f32 0.0, %v1769
    %1771 = vmatprep.mubr.bf16.mxu0 0
    %1772 = vmatmul.mubr.bf16.gmra.mrb[0].mxu0 %v274
    %v1773 = vpop.f32.mrb[0].mxu0
    %v1774 = vadd.f32 0.0, %v1773
    %v1775 = vpop.f32.mrb[0].mxu0
    %v1776 = vadd.f32 0.0, %v1775
    %v1777 = vpop.f32.mrb[0].mxu0
    %v1778 = vadd.f32 0.0, %v1777
    %v1779 = vpop.f32.mrb[0].mxu0
    %v1780 = vadd.f32 0.0, %v1779
    %1781 = vmatprep.mubr.bf16.mxu0 0
    %1782 = vmatmul.mubr.bf16.gmra.mrb[0].mxu0 %v275
    %v1783 = vpop.f32.mrb[0].mxu0
    %v1784 = vadd.f32 0.0, %v1783
    %v1785 = vpop.f32.mrb[0].mxu0
    %v1786 = vadd.f32 0.0, %v1785
    %v1787 = vpop.f32.mrb[0].mxu0
    %v1788 = vadd.f32 0.0, %v1787
    %v1789 = vpop.f32.mrb[0].mxu0
    %v1790 = vadd.f32 0.0, %v1789
    %1791 = vmatprep.mubr.bf16.mxu0 0
    %1792 = vmatmul.mubr.bf16.gmra.mrb[0].mxu0 %v276
    %v1793 = vpop.f32.mrb[0].mxu0
    %v1794 = vadd.f32 0.0, %v1793
    %v1795 = vpop.f32.mrb[0].mxu0
    %v1796 = vadd.f32 0.0, %v1795
    %v1797 = vpop.f32.mrb[0].mxu0
    %v1798 = vadd.f32 0.0, %v1797
    %v1799 = vpop.f32.mrb[0].mxu0
    %v1800 = vadd.f32 0.0, %v1799
    %1801 = vmatprep.mubr.bf16.mxu0 0
    %1802 = vmatmul.mubr.bf16.gmra.mrb[0].mxu0 %v277
    %v1803 = vpop.f32.mrb[0].mxu0
    %v1804 = vadd.f32 0.0, %v1803
    %v1805 = vpop.f32.mrb[0].mxu0
    %v1806 = vadd.f32 0.0, %v1805
    %v1807 = vpop.f32.mrb[0].mxu0
    %v1808 = vadd.f32 0.0, %v1807
    %v1809 = vpop.f32.mrb[0].mxu0
    %v1810 = vadd.f32 0.0, %v1809
    %1811 = vmatprep.mubr.bf16.mxu0 0
    %1812 = vmatmul.mubr.bf16.gmra.mrb[0].mxu0 %v278
    %v1813 = vpop.f32.mrb[0].mxu0
    %v1814 = vadd.f32 0.0, %v1813
    %v1815 = vpop.f32.mrb[0].mxu0
    %v1816 = vadd.f32 0.0, %v1815
    %v1817 = vpop.f32.mrb[0].mxu0
    %v1818 = vadd.f32 0.0, %v1817
    %v1819 = vpop.f32.mrb[0].mxu0
    %v1820 = vadd.f32 0.0, %v1819
    %1821 = vmatprep.mubr.bf16.mxu0 0
    %1822 = vmatmul.mubr.bf16.gmra.mrb[0].mxu0 %v279
    %v1823 = vpop.f32.mrb[0].mxu0
    %v1824 = vadd.f32 0.0, %v1823
    %v1825 = vpop.f32.mrb[0].mxu0
    %v1826 = vadd.f32 0.0, %v1825
    %v1827 = vpop.f32.mrb[0].mxu0
    %v1828 = vadd.f32 0.0, %v1827
    %v1829 = vpop.f32.mrb[0].mxu0
    %v1830 = vadd.f32 0.0, %v1829
    %1831 = vdwg.mxu0
    %v1832 = vld [vmem:[%s2] sm:$0x1]
    %v1834 = vlaneseq
    %v1835 = vshrl.u32 %v1834, 7
    %v1836 = vsub.s32 0, %v1835
    %v1837 = vrot.slane %v1832, %v1836
    %v1839 = vadd.f32 %v963, %v1837
    %v1840 = vadd.f32 %v967, %v1837
    %v1841 = vadd.f32 %v973, %v1837
    %v1842 = vadd.f32 %v977, %v1837
    %v1843 = vadd.f32 %v983, %v1837
    %v1844 = vadd.f32 %v987, %v1837
    %v1845 = vadd.f32 %v993, %v1837
    %v1846 = vadd.f32 %v997, %v1837
    %v1847 = vadd.f32 %v1003, %v1837
    %v1848 = vadd.f32 %v1007, %v1837
    %v1849 = vadd.f32 %v1013, %v1837
    %v1850 = vadd.f32 %v1017, %v1837
    %v1851 = vadd.f32 %v1023, %v1837
    %v1852 = vadd.f32 %v1027, %v1837
    %v1853 = vadd.f32 %v1033, %v1837
    %v1854 = vadd.f32 %v1037, %v1837
    %v1855 = vpack.c.bf16 %v969, %v965
    %v1856 = vpack.c.bf16 %v979, %v975
    %v1857 = vpack.c.bf16 %v989, %v985
    %v1858 = vpack.c.bf16 %v999, %v995
    %v1859 = vpack.c.bf16 %v1009, %v1005
    %v1860 = vpack.c.bf16 %v1019, %v1015
    %v1861 = vpack.c.bf16 %v1029, %v1025
    %v1862 = vpack.c.bf16 %v1039, %v1035
    %1863 = vst [vmem:[#allocation2] sm:$0xff] %v1855
    %1864 = vst [vmem:[#allocation2 + $0x8] sm:$0xff] %v1856
    %1865 = vst [vmem:[#allocation2 + $0x10] sm:$0xff] %v1857
    %1866 = vst [vmem:[#allocation2 + $0x18] sm:$0xff] %v1858
    %1867 = vst [vmem:[#allocation2 + $0x20] sm:$0xff] %v1859
    %1868 = vst [vmem:[#allocation2 + $0x28] sm:$0xff] %v1860
    %1869 = vst [vmem:[#allocation2 + $0x30] sm:$0xff] %v1861
    %1870 = vst [vmem:[#allocation2 + $0x38] sm:$0xff] %v1862
    %v1871 = vpack.c.bf16 %v1080, %v1076
    %v1872 = vpack.c.bf16 %v1090, %v1086
    %v1873 = vpack.c.bf16 %v1100, %v1096
    %v1874 = vpack.c.bf16 %v1110, %v1106
    %v1875 = vpack.c.bf16 %v1120, %v1116
    %v1876 = vpack.c.bf16 %v1130, %v1126
    %v1877 = vpack.c.bf16 %v1140, %v1136
    %v1878 = vpack.c.bf16 %v1150, %v1146
    %1879 = vst [vmem:[#allocation2 + $0x40] sm:$0xff] %v1871
    %1880 = vst [vmem:[#allocation2 + $0x48] sm:$0xff] %v1872
    %1881 = vst [vmem:[#allocation2 + $0x50] sm:$0xff] %v1873
    %1882 = vst [vmem:[#allocation2 + $0x58] sm:$0xff] %v1874
    %1883 = vst [vmem:[#allocation2 + $0x60] sm:$0xff] %v1875
    %1884 = vst [vmem:[#allocation2 + $0x68] sm:$0xff] %v1876
    %1885 = vst [vmem:[#allocation2 + $0x70] sm:$0xff] %v1877
    %1886 = vst [vmem:[#allocation2 + $0x78] sm:$0xff] %v1878
    %v1887 = vpack.c.bf16 %v1082, %v1078
    %v1888 = vpack.c.bf16 %v1092, %v1088
    %v1889 = vpack.c.bf16 %v1102, %v1098
    %v1890 = vpack.c.bf16 %v1112, %v1108
    %v1891 = vpack.c.bf16 %v1122, %v1118
    %v1892 = vpack.c.bf16 %v1132, %v1128
    %v1893 = vpack.c.bf16 %v1142, %v1138
    %v1894 = vpack.c.bf16 %v1152, %v1148
    %1895 = vst [vmem:[#allocation2 + $0x80] sm:$0xff] %v1887
    %1896 = vst [vmem:[#allocation2 + $0x88] sm:$0xff] %v1888
    %1897 = vst [vmem:[#allocation2 + $0x90] sm:$0xff] %v1889
    %1898 = vst [vmem:[#allocation2 + $0x98] sm:$0xff] %v1890
    %1899 = vst [vmem:[#allocation2 + $0xa0] sm:$0xff] %v1891
    %1900 = vst [vmem:[#allocation2 + $0xa8] sm:$0xff] %v1892
    %1901 = vst [vmem:[#allocation2 + $0xb0] sm:$0xff] %v1893
    %1902 = vst [vmem:[#allocation2 + $0xb8] sm:$0xff] %v1894
    %v1903 = vpack.c.bf16 %v1193, %v1189
    %v1904 = vpack.c.bf16 %v1203, %v1199
    %v1905 = vpack.c.bf16 %v1213, %v1209
    %v1906 = vpack.c.bf16 %v1223, %v1219
    %v1907 = vpack.c.bf16 %v1233, %v1229
    %v1908 = vpack.c.bf16 %v1243, %v1239
    %v1909 = vpack.c.bf16 %v1253, %v1249
    %v1910 = vpack.c.bf16 %v1263, %v1259
    %1911 = vst [vmem:[#allocation2 + $0xc0] sm:$0xff] %v1903
    %1912 = vst [vmem:[#allocation2 + $0xc8] sm:$0xff] %v1904
    %1913 = vst [vmem:[#allocation2 + $0xd0] sm:$0xff] %v1905
    %1914 = vst [vmem:[#allocation2 + $0xd8] sm:$0xff] %v1906
    %1915 = vst [vmem:[#allocation2 + $0xe0] sm:$0xff] %v1907
    %1916 = vst [vmem:[#allocation2 + $0xe8] sm:$0xff] %v1908
    %1917 = vst [vmem:[#allocation2 + $0xf0] sm:$0xff] %v1909
    %1918 = vst [vmem:[#allocation2 + $0xf8] sm:$0xff] %v1910
    %v1919 = vpack.c.bf16 %v1195, %v1191
    %v1920 = vpack.c.bf16 %v1205, %v1201
    %v1921 = vpack.c.bf16 %v1215, %v1211
    %v1922 = vpack.c.bf16 %v1225, %v1221
    %v1923 = vpack.c.bf16 %v1235, %v1231
    %v1924 = vpack.c.bf16 %v1245, %v1241
    %v1925 = vpack.c.bf16 %v1255, %v1251
    %v1926 = vpack.c.bf16 %v1265, %v1261
    %1927 = vst [vmem:[#allocation2 + $0x100] sm:$0xff] %v1919
    %1928 = vst [vmem:[#allocation2 + $0x108] sm:$0xff] %v1920
    %1929 = vst [vmem:[#allocation2 + $0x110] sm:$0xff] %v1921
    %1930 = vst [vmem:[#allocation2 + $0x118] sm:$0xff] %v1922
    %1931 = vst [vmem:[#allocation2 + $0x120] sm:$0xff] %v1923
    %1932 = vst [vmem:[#allocation2 + $0x128] sm:$0xff] %v1924
    %1933 = vst [vmem:[#allocation2 + $0x130] sm:$0xff] %v1925
    %1934 = vst [vmem:[#allocation2 + $0x138] sm:$0xff] %v1926
    %v1935 = vpack.c.bf16 %v1306, %v1302
    %v1936 = vpack.c.bf16 %v1316, %v1312
    %v1937 = vpack.c.bf16 %v1326, %v1322
    %v1938 = vpack.c.bf16 %v1336, %v1332
    %v1939 = vpack.c.bf16 %v1346, %v1342
    %v1940 = vpack.c.bf16 %v1356, %v1352
    %v1941 = vpack.c.bf16 %v1366, %v1362
    %v1942 = vpack.c.bf16 %v1376, %v1372
    %1943 = vst [vmem:[#allocation2 + $0x140] sm:$0xff] %v1935
    %1944 = vst [vmem:[#allocation2 + $0x148] sm:$0xff] %v1936
    %1945 = vst [vmem:[#allocation2 + $0x150] sm:$0xff] %v1937
    %1946 = vst [vmem:[#allocation2 + $0x158] sm:$0xff] %v1938
    %1947 = vst [vmem:[#allocation2 + $0x160] sm:$0xff] %v1939
    %1948 = vst [vmem:[#allocation2 + $0x168] sm:$0xff] %v1940
    %1949 = vst [vmem:[#allocation2 + $0x170] sm:$0xff] %v1941
    %1950 = vst [vmem:[#allocation2 + $0x178] sm:$0xff] %v1942
    %v1951 = vpack.c.bf16 %v1308, %v1304
    %v1952 = vpack.c.bf16 %v1318, %v1314
    %v1953 = vpack.c.bf16 %v1328, %v1324
    %v1954 = vpack.c.bf16 %v1338, %v1334
    %v1955 = vpack.c.bf16 %v1348, %v1344
    %v1956 = vpack.c.bf16 %v1358, %v1354
    %v1957 = vpack.c.bf16 %v1368, %v1364
    %v1958 = vpack.c.bf16 %v1378, %v1374
    %1959 = vst [vmem:[#allocation2 + $0x180] sm:$0xff] %v1951
    %1960 = vst [vmem:[#allocation2 + $0x188] sm:$0xff] %v1952
    %1961 = vst [vmem:[#allocation2 + $0x190] sm:$0xff] %v1953
    %1962 = vst [vmem:[#allocation2 + $0x198] sm:$0xff] %v1954
    %1963 = vst [vmem:[#allocation2 + $0x1a0] sm:$0xff] %v1955
    %1964 = vst [vmem:[#allocation2 + $0x1a8] sm:$0xff] %v1956
    %1965 = vst [vmem:[#allocation2 + $0x1b0] sm:$0xff] %v1957
    %1966 = vst [vmem:[#allocation2 + $0x1b8] sm:$0xff] %v1958
    %v1967 = vpack.c.bf16 %v1419, %v1415
    %v1968 = vpack.c.bf16 %v1429, %v1425
    %v1969 = vpack.c.bf16 %v1439, %v1435
    %v1970 = vpack.c.bf16 %v1449, %v1445
    %v1971 = vpack.c.bf16 %v1459, %v1455
    %v1972 = vpack.c.bf16 %v1469, %v1465
    %v1973 = vpack.c.bf16 %v1479, %v1475
    %v1974 = vpack.c.bf16 %v1489, %v1485
    %1975 = vst [vmem:[#allocation2 + $0x1c0] sm:$0xff] %v1967
    %1976 = vst [vmem:[#allocation2 + $0x1c8] sm:$0xff] %v1968
    %1977 = vst [vmem:[#allocation2 + $0x1d0] sm:$0xff] %v1969
    %1978 = vst [vmem:[#allocation2 + $0x1d8] sm:$0xff] %v1970
    %1979 = vst [vmem:[#allocation2 + $0x1e0] sm:$0xff] %v1971
    %1980 = vst [vmem:[#allocation2 + $0x1e8] sm:$0xff] %v1972
    %1981 = vst [vmem:[#allocation2 + $0x1f0] sm:$0xff] %v1973
    %1982 = vst [vmem:[#allocation2 + $0x1f8] sm:$0xff] %v1974
    %v1983 = vpack.c.bf16 %v1421, %v1417
    %v1984 = vpack.c.bf16 %v1431, %v1427
    %v1985 = vpack.c.bf16 %v1441, %v1437
    %v1986 = vpack.c.bf16 %v1451, %v1447
    %v1987 = vpack.c.bf16 %v1461, %v1457
    %v1988 = vpack.c.bf16 %v1471, %v1467
    %v1989 = vpack.c.bf16 %v1481, %v1477
    %v1990 = vpack.c.bf16 %v1491, %v1487
    %1991 = vst [vmem:[#allocation2 + $0x200] sm:$0xff] %v1983
    %1992 = vst [vmem:[#allocation2 + $0x208] sm:$0xff] %v1984
    %1993 = vst [vmem:[#allocation2 + $0x210] sm:$0xff] %v1985
    %1994 = vst [vmem:[#allocation2 + $0x218] sm:$0xff] %v1986
    %1995 = vst [vmem:[#allocation2 + $0x220] sm:$0xff] %v1987
    %1996 = vst [vmem:[#allocation2 + $0x228] sm:$0xff] %v1988
    %1997 = vst [vmem:[#allocation2 + $0x230] sm:$0xff] %v1989
    %1998 = vst [vmem:[#allocation2 + $0x238] sm:$0xff] %v1990
    %v1999 = vpack.c.bf16 %v1532, %v1528
    %v2000 = vpack.c.bf16 %v1542, %v1538
    %v2001 = vpack.c.bf16 %v1552, %v1548
    %v2002 = vpack.c.bf16 %v1562, %v1558
    %v2003 = vpack.c.bf16 %v1572, %v1568
    %v2004 = vpack.c.bf16 %v1582, %v1578
    %v2005 = vpack.c.bf16 %v1592, %v1588
    %v2006 = vpack.c.bf16 %v1602, %v1598
    %2007 = vst [vmem:[#allocation2 + $0x240] sm:$0xff] %v1999
    %2008 = vst [vmem:[#allocation2 + $0x248] sm:$0xff] %v2000
    %2009 = vst [vmem:[#allocation2 + $0x250] sm:$0xff] %v2001
    %2010 = vst [vmem:[#allocation2 + $0x258] sm:$0xff] %v2002
    %2011 = vst [vmem:[#allocation2 + $0x260] sm:$0xff] %v2003
    %2012 = vst [vmem:[#allocation2 + $0x268] sm:$0xff] %v2004
    %2013 = vst [vmem:[#allocation2 + $0x270] sm:$0xff] %v2005
    %2014 = vst [vmem:[#allocation2 + $0x278] sm:$0xff] %v2006
    %v2015 = vpack.c.bf16 %v1534, %v1530
    %v2016 = vpack.c.bf16 %v1544, %v1540
    %v2017 = vpack.c.bf16 %v1554, %v1550
    %v2018 = vpack.c.bf16 %v1564, %v1560
    %v2019 = vpack.c.bf16 %v1574, %v1570
    %v2020 = vpack.c.bf16 %v1584, %v1580
    %v2021 = vpack.c.bf16 %v1594, %v1590
    %v2022 = vpack.c.bf16 %v1604, %v1600
    %2023 = vst [vmem:[#allocation2 + $0x280] sm:$0xff] %v2015
    %2024 = vst [vmem:[#allocation2 + $0x288] sm:$0xff] %v2016
    %2025 = vst [vmem:[#allocation2 + $0x290] sm:$0xff] %v2017
    %2026 = vst [vmem:[#allocation2 + $0x298] sm:$0xff] %v2018
    %2027 = vst [vmem:[#allocation2 + $0x2a0] sm:$0xff] %v2019
    %2028 = vst [vmem:[#allocation2 + $0x2a8] sm:$0xff] %v2020
    %2029 = vst [vmem:[#allocation2 + $0x2b0] sm:$0xff] %v2021
    %2030 = vst [vmem:[#allocation2 + $0x2b8] sm:$0xff] %v2022
    %v2031 = vpack.c.bf16 %v1645, %v1641
    %v2032 = vpack.c.bf16 %v1655, %v1651
    %v2033 = vpack.c.bf16 %v1665, %v1661
    %v2034 = vpack.c.bf16 %v1675, %v1671
    %v2035 = vpack.c.bf16 %v1685, %v1681
    %v2036 = vpack.c.bf16 %v1695, %v1691
    %v2037 = vpack.c.bf16 %v1705, %v1701
    %v2038 = vpack.c.bf16 %v1715, %v1711
    %2039 = vst [vmem:[#allocation2 + $0x2c0] sm:$0xff] %v2031
    %2040 = vst [vmem:[#allocation2 + $0x2c8] sm:$0xff] %v2032
    %2041 = vst [vmem:[#allocation2 + $0x2d0] sm:$0xff] %v2033
    %2042 = vst [vmem:[#allocation2 + $0x2d8] sm:$0xff] %v2034
    %2043 = vst [vmem:[#allocation2 + $0x2e0] sm:$0xff] %v2035
    %2044 = vst [vmem:[#allocation2 + $0x2e8] sm:$0xff] %v2036
    %2045 = vst [vmem:[#allocation2 + $0x2f0] sm:$0xff] %v2037
    %2046 = vst [vmem:[#allocation2 + $0x2f8] sm:$0xff] %v2038
    %v2047 = vpack.c.bf16 %v1647, %v1643
    %v2048 = vpack.c.bf16 %v1657, %v1653
    %v2049 = vpack.c.bf16 %v1667, %v1663
    %v2050 = vpack.c.bf16 %v1677, %v1673
    %v2051 = vpack.c.bf16 %v1687, %v1683
    %v2052 = vpack.c.bf16 %v1697, %v1693
    %v2053 = vpack.c.bf16 %v1707, %v1703
    %v2054 = vpack.c.bf16 %v1717, %v1713
    %2055 = vst [vmem:[#allocation2 + $0x300] sm:$0xff] %v2047
    %2056 = vst [vmem:[#allocation2 + $0x308] sm:$0xff] %v2048
    %2057 = vst [vmem:[#allocation2 + $0x310] sm:$0xff] %v2049
    %2058 = vst [vmem:[#allocation2 + $0x318] sm:$0xff] %v2050
    %2059 = vst [vmem:[#allocation2 + $0x320] sm:$0xff] %v2051
    %2060 = vst [vmem:[#allocation2 + $0x328] sm:$0xff] %v2052
    %2061 = vst [vmem:[#allocation2 + $0x330] sm:$0xff] %v2053
    %2062 = vst [vmem:[#allocation2 + $0x338] sm:$0xff] %v2054
    %v2063 = vpack.c.bf16 %v1758, %v1754
    %v2064 = vpack.c.bf16 %v1768, %v1764
    %v2065 = vpack.c.bf16 %v1778, %v1774
    %v2066 = vpack.c.bf16 %v1788, %v1784
    %v2067 = vpack.c.bf16 %v1798, %v1794
    %v2068 = vpack.c.bf16 %v1808, %v1804
    %v2069 = vpack.c.bf16 %v1818, %v1814
    %v2070 = vpack.c.bf16 %v1828, %v1824
    %2071 = vst [vmem:[#allocation2 + $0x340] sm:$0xff] %v2063
    %2072 = vst [vmem:[#allocation2 + $0x348] sm:$0xff] %v2064
    %2073 = vst [vmem:[#allocation2 + $0x350] sm:$0xff] %v2065
    %2074 = vst [vmem:[#allocation2 + $0x358] sm:$0xff] %v2066
    %2075 = vst [vmem:[#allocation2 + $0x360] sm:$0xff] %v2067
    %2076 = vst [vmem:[#allocation2 + $0x368] sm:$0xff] %v2068
    %2077 = vst [vmem:[#allocation2 + $0x370] sm:$0xff] %v2069
    %2078 = vst [vmem:[#allocation2 + $0x378] sm:$0xff] %v2070
    %v2079 = vpack.c.bf16 %v1760, %v1756
    %v2080 = vpack.c.bf16 %v1770, %v1766
    %v2081 = vpack.c.bf16 %v1780, %v1776
    %v2082 = vpack.c.bf16 %v1790, %v1786
    %v2083 = vpack.c.bf16 %v1800, %v1796
    %v2084 = vpack.c.bf16 %v1810, %v1806
    %v2085 = vpack.c.bf16 %v1820, %v1816
    %v2086 = vpack.c.bf16 %v1830, %v1826
    %2087 = vst [vmem:[#allocation2 + $0x380] sm:$0xff] %v2079
    %2088 = vst [vmem:[#allocation2 + $0x388] sm:$0xff] %v2080
    %2089 = vst [vmem:[#allocation2 + $0x390] sm:$0xff] %v2081
    %2090 = vst [vmem:[#allocation2 + $0x398] sm:$0xff] %v2082
    %2091 = vst [vmem:[#allocation2 + $0x3a0] sm:$0xff] %v2083
    %2092 = vst [vmem:[#allocation2 + $0x3a8] sm:$0xff] %v2084
    %2093 = vst [vmem:[#allocation2 + $0x3b0] sm:$0xff] %v2085
    %2094 = vst [vmem:[#allocation2 + $0x3b8] sm:$0xff] %v2086
    %v2095 = vld [vmem:[#allocation8] sm:$0xff]
    %v2096 = vld [vmem:[#allocation8 + $0x8] sm:$0xff]
    %v2097 = vld [vmem:[#allocation8 + $0x10] sm:$0xff]
    %v2098 = vld [vmem:[#allocation8 + $0x18] sm:$0xff]
    %v2099 = vld [vmem:[#allocation8 + $0x20] sm:$0xff]
    %v2100 = vld [vmem:[#allocation8 + $0x28] sm:$0xff]
    %v2101 = vld [vmem:[#allocation8 + $0x30] sm:$0xff]
    %v2102 = vld [vmem:[#allocation8 + $0x38] sm:$0xf]
    %v2103 = vld [vmem:[#allocation8 + $0x3c] sm:$0xff]
    %v2104 = vld [vmem:[#allocation8 + $0x44] sm:$0xff]
    %v2105 = vld [vmem:[#allocation8 + $0x4c] sm:$0xff]
    %v2106 = vld [vmem:[#allocation8 + $0x54] sm:$0xff]
    %v2107 = vld [vmem:[#allocation8 + $0x5c] sm:$0xff]
    %v2108 = vld [vmem:[#allocation8 + $0x64] sm:$0xff]
    %v2109 = vld [vmem:[#allocation8 + $0x6c] sm:$0xff]
    %v2110 = vld [vmem:[#allocation8 + $0x74] sm:$0xf]
    %v2111 = vld [vmem:[#allocation8 + $0x78] sm:$0xff]
    %v2112 = vld [vmem:[#allocation8 + $0x80] sm:$0xff]
    %v2113 = vld [vmem:[#allocation8 + $0x88] sm:$0xff]
    %v2114 = vld [vmem:[#allocation8 + $0x90] sm:$0xff]
    %v2115 = vld [vmem:[#allocation8 + $0x98] sm:$0xff]
    %v2116 = vld [vmem:[#allocation8 + $0xa0] sm:$0xff]
    %v2117 = vld [vmem:[#allocation8 + $0xa8] sm:$0xff]
    %v2118 = vld [vmem:[#allocation8 + $0xb0] sm:$0xf]
    %v2119 = vld [vmem:[#allocation8 + $0xb4] sm:$0xff]
    %v2120 = vld [vmem:[#allocation8 + $0xbc] sm:$0xff]
    %v2121 = vld [vmem:[#allocation8 + $0xc4] sm:$0xff]
    %v2122 = vld [vmem:[#allocation8 + $0xcc] sm:$0xff]
    %v2123 = vld [vmem:[#allocation8 + $0xd4] sm:$0xff]
    %v2124 = vld [vmem:[#allocation8 + $0xdc] sm:$0xff]
    %v2125 = vld [vmem:[#allocation8 + $0xe4] sm:$0xff]
    %v2126 = vld [vmem:[#allocation8 + $0xec] sm:$0xf]
    %v2127 = vld [vmem:[#allocation8 + $0xf0] sm:$0xff]
    %v2128 = vld [vmem:[#allocation8 + $0xf8] sm:$0xff]
    %v2129 = vld [vmem:[#allocation8 + $0x100] sm:$0xff]
    %v2130 = vld [vmem:[#allocation8 + $0x108] sm:$0xff]
    %v2131 = vld [vmem:[#allocation8 + $0x110] sm:$0xff]
    %v2132 = vld [vmem:[#allocation8 + $0x118] sm:$0xff]
    %v2133 = vld [vmem:[#allocation8 + $0x120] sm:$0xff]
    %v2134 = vld [vmem:[#allocation8 + $0x128] sm:$0xf]
    %v2135 = vld [vmem:[#allocation8 + $0x12c] sm:$0xff]
    %v2136 = vld [vmem:[#allocation8 + $0x134] sm:$0xff]
    %v2137 = vld [vmem:[#allocation8 + $0x13c] sm:$0xff]
    %v2138 = vld [vmem:[#allocation8 + $0x144] sm:$0xff]
    %v2139 = vld [vmem:[#allocation8 + $0x14c] sm:$0xff]
    %v2140 = vld [vmem:[#allocation8 + $0x154] sm:$0xff]
    %v2141 = vld [vmem:[#allocation8 + $0x15c] sm:$0xff]
    %v2142 = vld [vmem:[#allocation8 + $0x164] sm:$0xf]
    %v2143 = vld [vmem:[#allocation8 + $0x168] sm:$0xff]
    %v2144 = vld [vmem:[#allocation8 + $0x170] sm:$0xff]
    %v2145 = vld [vmem:[#allocation8 + $0x178] sm:$0xff]
    %v2146 = vld [vmem:[#allocation8 + $0x180] sm:$0xff]
    %v2147 = vld [vmem:[#allocation8 + $0x188] sm:$0xff]
    %v2148 = vld [vmem:[#allocation8 + $0x190] sm:$0xff]
    %v2149 = vld [vmem:[#allocation8 + $0x198] sm:$0xff]
    %v2150 = vld [vmem:[#allocation8 + $0x1a0] sm:$0xf]
    %v2151 = vld [vmem:[#allocation8 + $0x1a4] sm:$0xff]
    %v2152 = vld [vmem:[#allocation8 + $0x1ac] sm:$0xff]
    %v2153 = vld [vmem:[#allocation8 + $0x1b4] sm:$0xff]
    %v2154 = vld [vmem:[#allocation8 + $0x1bc] sm:$0xff]
    %v2155 = vld [vmem:[#allocation8 + $0x1c4] sm:$0xff]
    %v2156 = vld [vmem:[#allocation8 + $0x1cc] sm:$0xff]
    %v2157 = vld [vmem:[#allocation8 + $0x1d4] sm:$0xff]
    %v2158 = vld [vmem:[#allocation8 + $0x1dc] sm:$0xf]
    %v2159 = vld [vmem:[#allocation8 + $0x1e0] sm:$0xff]
    %v2160 = vld [vmem:[#allocation8 + $0x1e8] sm:$0xff]
    %v2161 = vld [vmem:[#allocation8 + $0x1f0] sm:$0xff]
    %v2162 = vld [vmem:[#allocation8 + $0x1f8] sm:$0xff]
    %v2163 = vld [vmem:[#allocation8 + $0x200] sm:$0xff]
    %v2164 = vld [vmem:[#allocation8 + $0x208] sm:$0xff]
    %v2165 = vld [vmem:[#allocation8 + $0x210] sm:$0xff]
    %v2166 = vld [vmem:[#allocation8 + $0x218] sm:$0xf]
    %v2167 = vld [vmem:[#allocation8 + $0x21c] sm:$0xff]
    %v2168 = vld [vmem:[#allocation8 + $0x224] sm:$0xff]
    %v2169 = vld [vmem:[#allocation8 + $0x22c] sm:$0xff]
    %v2170 = vld [vmem:[#allocation8 + $0x234] sm:$0xff]
    %v2171 = vld [vmem:[#allocation8 + $0x23c] sm:$0xff]
    %v2172 = vld [vmem:[#allocation8 + $0x244] sm:$0xff]
    %v2173 = vld [vmem:[#allocation8 + $0x24c] sm:$0xff]
    %v2174 = vld [vmem:[#allocation8 + $0x254] sm:$0xf]
    %v2175 = vld [vmem:[#allocation8 + $0x258] sm:$0xff]
    %v2176 = vld [vmem:[#allocation8 + $0x260] sm:$0xff]
    %v2177 = vld [vmem:[#allocation8 + $0x268] sm:$0xff]
    %v2178 = vld [vmem:[#allocation8 + $0x270] sm:$0xff]
    %v2179 = vld [vmem:[#allocation8 + $0x278] sm:$0xff]
    %v2180 = vld [vmem:[#allocation8 + $0x280] sm:$0xff]
    %v2181 = vld [vmem:[#allocation8 + $0x288] sm:$0xff]
    %v2182 = vld [vmem:[#allocation8 + $0x290] sm:$0xf]
    %v2183 = vld [vmem:[#allocation8 + $0x294] sm:$0xff]
    %v2184 = vld [vmem:[#allocation8 + $0x29c] sm:$0xff]
    %v2185 = vld [vmem:[#allocation8 + $0x2a4] sm:$0xff]
    %v2186 = vld [vmem:[#allocation8 + $0x2ac] sm:$0xff]
    %v2187 = vld [vmem:[#allocation8 + $0x2b4] sm:$0xff]
    %v2188 = vld [vmem:[#allocation8 + $0x2bc] sm:$0xff]
    %v2189 = vld [vmem:[#allocation8 + $0x2c4] sm:$0xff]
    %v2190 = vld [vmem:[#allocation8 + $0x2cc] sm:$0xf]
    %v2191 = vld [vmem:[#allocation8 + $0x2d0] sm:$0xff]
    %v2192 = vld [vmem:[#allocation8 + $0x2d8] sm:$0xff]
    %v2193 = vld [vmem:[#allocation8 + $0x2e0] sm:$0xff]
    %v2194 = vld [vmem:[#allocation8 + $0x2e8] sm:$0xff]
    %v2195 = vld [vmem:[#allocation8 + $0x2f0] sm:$0xff]
    %v2196 = vld [vmem:[#allocation8 + $0x2f8] sm:$0xff]
    %v2197 = vld [vmem:[#allocation8 + $0x300] sm:$0xff]
    %v2198 = vld [vmem:[#allocation8 + $0x308] sm:$0xf]
    %v2199 = vld [vmem:[#allocation8 + $0x30c] sm:$0xff]
    %v2200 = vld [vmem:[#allocation8 + $0x314] sm:$0xff]
    %v2201 = vld [vmem:[#allocation8 + $0x31c] sm:$0xff]
    %v2202 = vld [vmem:[#allocation8 + $0x324] sm:$0xff]
    %v2203 = vld [vmem:[#allocation8 + $0x32c] sm:$0xff]
    %v2204 = vld [vmem:[#allocation8 + $0x334] sm:$0xff]
    %v2205 = vld [vmem:[#allocation8 + $0x33c] sm:$0xff]
    %v2206 = vld [vmem:[#allocation8 + $0x344] sm:$0xf]
    %v2207 = vld [vmem:[#allocation8 + $0x348] sm:$0xff]
    %v2208 = vld [vmem:[#allocation8 + $0x350] sm:$0xff]
    %v2209 = vld [vmem:[#allocation8 + $0x358] sm:$0xff]
    %v2210 = vld [vmem:[#allocation8 + $0x360] sm:$0xff]
    %v2211 = vld [vmem:[#allocation8 + $0x368] sm:$0xff]
    %v2212 = vld [vmem:[#allocation8 + $0x370] sm:$0xff]
    %v2213 = vld [vmem:[#allocation8 + $0x378] sm:$0xff]
    %v2214 = vld [vmem:[#allocation8 + $0x380] sm:$0xf]
    %v2215 = vld [vmem:[#allocation8 + $0x384] sm:$0xff]
    %v2216 = vld [vmem:[#allocation8 + $0x38c] sm:$0xff]
    %v2217 = vld [vmem:[#allocation8 + $0x394] sm:$0xff]
    %v2218 = vld [vmem:[#allocation8 + $0x39c] sm:$0xff]
    %v2219 = vld [vmem:[#allocation8 + $0x3a4] sm:$0xff]
    %v2220 = vld [vmem:[#allocation8 + $0x3ac] sm:$0xff]
    %v2221 = vld [vmem:[#allocation8 + $0x3b4] sm:$0xff]
    %v2222 = vld [vmem:[#allocation8 + $0x3bc] sm:$0xf]
    %v2223 = vld [vmem:[#allocation2] sm:$0xff]
    %v2224 = vld [vmem:[#allocation2 + $0x8] sm:$0xff]
    %v2225 = vld [vmem:[#allocation2 + $0x10] sm:$0xff]
    %v2226 = vld [vmem:[#allocation2 + $0x18] sm:$0xff]
    %v2227 = vld [vmem:[#allocation2 + $0x20] sm:$0xff]
    %v2228 = vld [vmem:[#allocation2 + $0x28] sm:$0xff]
    %v2229 = vld [vmem:[#allocation2 + $0x30] sm:$0xff]
    %v2230 = vld [vmem:[#allocation2 + $0x38] sm:$0xff]
    %v2231 = vld [vmem:[#allocation2 + $0x40] sm:$0xff]
    %v2232 = vld [vmem:[#allocation2 + $0x48] sm:$0xff]
    %v2233 = vld [vmem:[#allocation2 + $0x50] sm:$0xff]
    %v2234 = vld [vmem:[#allocation2 + $0x58] sm:$0xff]
    %v2235 = vld [vmem:[#allocation2 + $0x60] sm:$0xff]
    %v2236 = vld [vmem:[#allocation2 + $0x68] sm:$0xff]
    %v2237 = vld [vmem:[#allocation2 + $0x70] sm:$0xff]
    %v2238 = vld [vmem:[#allocation2 + $0x78] sm:$0xff]
    %v2239 = vld [vmem:[#allocation2 + $0x80] sm:$0xff]
    %v2240 = vld [vmem:[#allocation2 + $0x88] sm:$0xff]
    %v2241 = vld [vmem:[#allocation2 + $0x90] sm:$0xff]
    %v2242 = vld [vmem:[#allocation2 + $0x98] sm:$0xff]
    %v2243 = vld [vmem:[#allocation2 + $0xa0] sm:$0xff]
    %v2244 = vld [vmem:[#allocation2 + $0xa8] sm:$0xff]
    %v2245 = vld [vmem:[#allocation2 + $0xb0] sm:$0xff]
    %v2246 = vld [vmem:[#allocation2 + $0xb8] sm:$0xff]
    %v2247 = vld [vmem:[#allocation2 + $0xc0] sm:$0xff]
    %v2248 = vld [vmem:[#allocation2 + $0xc8] sm:$0xff]
    %v2249 = vld [vmem:[#allocation2 + $0xd0] sm:$0xff]
    %v2250 = vld [vmem:[#allocation2 + $0xd8] sm:$0xff]
    %v2251 = vld [vmem:[#allocation2 + $0xe0] sm:$0xff]
    %v2252 = vld [vmem:[#allocation2 + $0xe8] sm:$0xff]
    %v2253 = vld [vmem:[#allocation2 + $0xf0] sm:$0xff]
    %v2254 = vld [vmem:[#allocation2 + $0xf8] sm:$0xff]
    %v2255 = vld [vmem:[#allocation2 + $0x100] sm:$0xff]
    %v2256 = vld [vmem:[#allocation2 + $0x108] sm:$0xff]
    %v2257 = vld [vmem:[#allocation2 + $0x110] sm:$0xff]
    %v2258 = vld [vmem:[#allocation2 + $0x118] sm:$0xff]
    %v2259 = vld [vmem:[#allocation2 + $0x120] sm:$0xff]
    %v2260 = vld [vmem:[#allocation2 + $0x128] sm:$0xff]
    %v2261 = vld [vmem:[#allocation2 + $0x130] sm:$0xff]
    %v2262 = vld [vmem:[#allocation2 + $0x138] sm:$0xff]
    %v2263 = vld [vmem:[#allocation2 + $0x140] sm:$0xff]
    %v2264 = vld [vmem:[#allocation2 + $0x148] sm:$0xff]
    %v2265 = vld [vmem:[#allocation2 + $0x150] sm:$0xff]
    %v2266 = vld [vmem:[#allocation2 + $0x158] sm:$0xff]
    %v2267 = vld [vmem:[#allocation2 + $0x160] sm:$0xff]
    %v2268 = vld [vmem:[#allocation2 + $0x168] sm:$0xff]
    %v2269 = vld [vmem:[#allocation2 + $0x170] sm:$0xff]
    %v2270 = vld [vmem:[#allocation2 + $0x178] sm:$0xff]
    %v2271 = vld [vmem:[#allocation2 + $0x180] sm:$0xff]
    %v2272 = vld [vmem:[#allocation2 + $0x188] sm:$0xff]
    %v2273 = vld [vmem:[#allocation2 + $0x190] sm:$0xff]
    %v2274 = vld [vmem:[#allocation2 + $0x198] sm:$0xff]
    %v2275 = vld [vmem:[#allocation2 + $0x1a0] sm:$0xff]
    %v2276 = vld [vmem:[#allocation2 + $0x1a8] sm:$0xff]
    %v2277 = vld [vmem:[#allocation2 + $0x1b0] sm:$0xff]
    %v2278 = vld [vmem:[#allocation2 + $0x1b8] sm:$0xff]
    %v2279 = vld [vmem:[#allocation2 + $0x1c0] sm:$0xff]
    %v2280 = vld [vmem:[#allocation2 + $0x1c8] sm:$0xff]
    %v2281 = vld [vmem:[#allocation2 + $0x1d0] sm:$0xff]
    %v2282 = vld [vmem:[#allocation2 + $0x1d8] sm:$0xff]
    %v2283 = vld [vmem:[#allocation2 + $0x1e0] sm:$0xff]
    %v2284 = vld [vmem:[#allocation2 + $0x1e8] sm:$0xff]
    %v2285 = vld [vmem:[#allocation2 + $0x1f0] sm:$0xff]
    %v2286 = vld [vmem:[#allocation2 + $0x1f8] sm:$0xff]
    %v2287 = vld [vmem:[#allocation2 + $0x200] sm:$0xff]
    %v2288 = vld [vmem:[#allocation2 + $0x208] sm:$0xff]
    %v2289 = vld [vmem:[#allocation2 + $0x210] sm:$0xff]
    %v2290 = vld [vmem:[#allocation2 + $0x218] sm:$0xff]
    %v2291 = vld [vmem:[#allocation2 + $0x220] sm:$0xff]
    %v2292 = vld [vmem:[#allocation2 + $0x228] sm:$0xff]
    %v2293 = vld [vmem:[#allocation2 + $0x230] sm:$0xff]
    %v2294 = vld [vmem:[#allocation2 + $0x238] sm:$0xff]
    %v2295 = vld [vmem:[#allocation2 + $0x240] sm:$0xff]
    %v2296 = vld [vmem:[#allocation2 + $0x248] sm:$0xff]
    %v2297 = vld [vmem:[#allocation2 + $0x250] sm:$0xff]
    %v2298 = vld [vmem:[#allocation2 + $0x258] sm:$0xff]
    %v2299 = vld [vmem:[#allocation2 + $0x260] sm:$0xff]
    %v2300 = vld [vmem:[#allocation2 + $0x268] sm:$0xff]
    %v2301 = vld [vmem:[#allocation2 + $0x270] sm:$0xff]
    %v2302 = vld [vmem:[#allocation2 + $0x278] sm:$0xff]
    %v2303 = vld [vmem:[#allocation2 + $0x280] sm:$0xff]
    %v2304 = vld [vmem:[#allocation2 + $0x288] sm:$0xff]
    %v2305 = vld [vmem:[#allocation2 + $0x290] sm:$0xff]
    %v2306 = vld [vmem:[#allocation2 + $0x298] sm:$0xff]
    %v2307 = vld [vmem:[#allocation2 + $0x2a0] sm:$0xff]
    %v2308 = vld [vmem:[#allocation2 + $0x2a8] sm:$0xff]
    %v2309 = vld [vmem:[#allocation2 + $0x2b0] sm:$0xff]
    %v2310 = vld [vmem:[#allocation2 + $0x2b8] sm:$0xff]
    %v2311 = vld [vmem:[#allocation2 + $0x2c0] sm:$0xff]
    %v2312 = vld [vmem:[#allocation2 + $0x2c8] sm:$0xff]
    %v2313 = vld [vmem:[#allocation2 + $0x2d0] sm:$0xff]
    %v2314 = vld [vmem:[#allocation2 + $0x2d8] sm:$0xff]
    %v2315 = vld [vmem:[#allocation2 + $0x2e0] sm:$0xff]
    %v2316 = vld [vmem:[#allocation2 + $0x2e8] sm:$0xff]
    %v2317 = vld [vmem:[#allocation2 + $0x2f0] sm:$0xff]
    %v2318 = vld [vmem:[#allocation2 + $0x2f8] sm:$0xff]
    %v2319 = vld [vmem:[#allocation2 + $0x300] sm:$0xff]
    %v2320 = vld [vmem:[#allocation2 + $0x308] sm:$0xff]
    %v2321 = vld [vmem:[#allocation2 + $0x310] sm:$0xff]
    %v2322 = vld [vmem:[#allocation2 + $0x318] sm:$0xff]
    %v2323 = vld [vmem:[#allocation2 + $0x320] sm:$0xff]
    %v2324 = vld [vmem:[#allocation2 + $0x328] sm:$0xff]
    %v2325 = vld [vmem:[#allocation2 + $0x330] sm:$0xff]
    %v2326 = vld [vmem:[#allocation2 + $0x338] sm:$0xff]
    %v2327 = vld [vmem:[#allocation2 + $0x340] sm:$0xff]
    %v2328 = vld [vmem:[#allocation2 + $0x348] sm:$0xff]
    %v2329 = vld [vmem:[#allocation2 + $0x350] sm:$0xff]
    %v2330 = vld [vmem:[#allocation2 + $0x358] sm:$0xff]
    %v2331 = vld [vmem:[#allocation2 + $0x360] sm:$0xff]
    %v2332 = vld [vmem:[#allocation2 + $0x368] sm:$0xff]
    %v2333 = vld [vmem:[#allocation2 + $0x370] sm:$0xff]
    %v2334 = vld [vmem:[#allocation2 + $0x378] sm:$0xff]
    %v2335 = vld [vmem:[#allocation2 + $0x380] sm:$0xff]
    %v2336 = vld [vmem:[#allocation2 + $0x388] sm:$0xff]
    %v2337 = vld [vmem:[#allocation2 + $0x390] sm:$0xff]
    %v2338 = vld [vmem:[#allocation2 + $0x398] sm:$0xff]
    %v2339 = vld [vmem:[#allocation2 + $0x3a0] sm:$0xff]
    %v2340 = vld [vmem:[#allocation2 + $0x3a8] sm:$0xff]
    %v2341 = vld [vmem:[#allocation2 + $0x3b0] sm:$0xff]
    %v2342 = vld [vmem:[#allocation2 + $0x3b8] sm:$0xff]
    %v2471 = vunpack.c.l.b16 %v2095
    %v2472 = vunpack.c.h.b16 %v2095
    %v2473 = vunpack.c.l.b16 %v2096
    %v2474 = vunpack.c.h.b16 %v2096
    %v2475 = vunpack.c.l.b16 %v2097
    %v2476 = vunpack.c.h.b16 %v2097
    %v2477 = vunpack.c.l.b16 %v2098
    %v2478 = vunpack.c.h.b16 %v2098
    %v2479 = vunpack.c.l.b16 %v2099
    %v2480 = vunpack.c.h.b16 %v2099
    %v2481 = vunpack.c.l.b16 %v2100
    %v2482 = vunpack.c.h.b16 %v2100
    %v2483 = vunpack.c.l.b16 %v2101
    %v2484 = vunpack.c.h.b16 %v2101
    %v2485 = vunpack.c.l.b16 %v2102
    %v2486 = vunpack.c.l.b16 %v2103
    %v2487 = vunpack.c.h.b16 %v2103
    %v2488 = vunpack.c.l.b16 %v2104
    %v2489 = vunpack.c.h.b16 %v2104
    %v2490 = vunpack.c.l.b16 %v2105
    %v2491 = vunpack.c.h.b16 %v2105
    %v2492 = vunpack.c.l.b16 %v2106
    %v2493 = vunpack.c.h.b16 %v2106
    %v2494 = vunpack.c.l.b16 %v2107
    %v2495 = vunpack.c.h.b16 %v2107
    %v2496 = vunpack.c.l.b16 %v2108
    %v2497 = vunpack.c.h.b16 %v2108
    %v2498 = vunpack.c.l.b16 %v2109
    %v2499 = vunpack.c.h.b16 %v2109
    %v2500 = vunpack.c.l.b16 %v2110
    %v2501 = vunpack.c.l.b16 %v2111
    %v2502 = vunpack.c.h.b16 %v2111
    %v2503 = vunpack.c.l.b16 %v2112
    %v2504 = vunpack.c.h.b16 %v2112
    %v2505 = vunpack.c.l.b16 %v2113
    %v2506 = vunpack.c.h.b16 %v2113
    %v2507 = vunpack.c.l.b16 %v2114
    %v2508 = vunpack.c.h.b16 %v2114
    %v2509 = vunpack.c.l.b16 %v2115
    %v2510 = vunpack.c.h.b16 %v2115
    %v2511 = vunpack.c.l.b16 %v2116
    %v2512 = vunpack.c.h.b16 %v2116
    %v2513 = vunpack.c.l.b16 %v2117
    %v2514 = vunpack.c.h.b16 %v2117
    %v2515 = vunpack.c.l.b16 %v2118
    %v2516 = vunpack.c.l.b16 %v2119
    %v2517 = vunpack.c.h.b16 %v2119
    %v2518 = vunpack.c.l.b16 %v2120
    %v2519 = vunpack.c.h.b16 %v2120
    %v2520 = vunpack.c.l.b16 %v2121
    %v2521 = vunpack.c.h.b16 %v2121
    %v2522 = vunpack.c.l.b16 %v2122
    %v2523 = vunpack.c.h.b16 %v2122
    %v2524 = vunpack.c.l.b16 %v2123
    %v2525 = vunpack.c.h.b16 %v2123
    %v2526 = vunpack.c.l.b16 %v2124
    %v2527 = vunpack.c.h.b16 %v2124
    %v2528 = vunpack.c.l.b16 %v2125
    %v2529 = vunpack.c.h.b16 %v2125
    %v2530 = vunpack.c.l.b16 %v2126
    %v2531 = vunpack.c.l.b16 %v2127
    %v2532 = vunpack.c.h.b16 %v2127
    %v2533 = vunpack.c.l.b16 %v2128
    %v2534 = vunpack.c.h.b16 %v2128
    %v2535 = vunpack.c.l.b16 %v2129
    %v2536 = vunpack.c.h.b16 %v2129
    %v2537 = vunpack.c.l.b16 %v2130
    %v2538 = vunpack.c.h.b16 %v2130
    %v2539 = vunpack.c.l.b16 %v2131
    %v2540 = vunpack.c.h.b16 %v2131
    %v2541 = vunpack.c.l.b16 %v2132
    %v2542 = vunpack.c.h.b16 %v2132
    %v2543 = vunpack.c.l.b16 %v2133
    %v2544 = vunpack.c.h.b16 %v2133
    %v2545 = vunpack.c.l.b16 %v2134
    %v2546 = vunpack.c.l.b16 %v2135
    %v2547 = vunpack.c.h.b16 %v2135
    %v2548 = vunpack.c.l.b16 %v2136
    %v2549 = vunpack.c.h.b16 %v2136
    %v2550 = vunpack.c.l.b16 %v2137
    %v2551 = vunpack.c.h.b16 %v2137
    %v2552 = vunpack.c.l.b16 %v2138
    %v2553 = vunpack.c.h.b16 %v2138
    %v2554 = vunpack.c.l.b16 %v2139
    %v2555 = vunpack.c.h.b16 %v2139
    %v2556 = vunpack.c.l.b16 %v2140
    %v2557 = vunpack.c.h.b16 %v2140
    %v2558 = vunpack.c.l.b16 %v2141
    %v2559 = vunpack.c.h.b16 %v2141
    %v2560 = vunpack.c.l.b16 %v2142
    %v2561 = vunpack.c.l.b16 %v2143
    %v2562 = vunpack.c.h.b16 %v2143
    %v2563 = vunpack.c.l.b16 %v2144
    %v2564 = vunpack.c.h.b16 %v2144
    %v2565 = vunpack.c.l.b16 %v2145
    %v2566 = vunpack.c.h.b16 %v2145
    %v2567 = vunpack.c.l.b16 %v2146
    %v2568 = vunpack.c.h.b16 %v2146
    %v2569 = vunpack.c.l.b16 %v2147
    %v2570 = vunpack.c.h.b16 %v2147
    %v2571 = vunpack.c.l.b16 %v2148
    %v2572 = vunpack.c.h.b16 %v2148
    %v2573 = vunpack.c.l.b16 %v2149
    %v2574 = vunpack.c.h.b16 %v2149
    %v2575 = vunpack.c.l.b16 %v2150
    %v2576 = vunpack.c.l.b16 %v2151
    %v2577 = vunpack.c.h.b16 %v2151
    %v2578 = vunpack.c.l.b16 %v2152
    %v2579 = vunpack.c.h.b16 %v2152
    %v2580 = vunpack.c.l.b16 %v2153
    %v2581 = vunpack.c.h.b16 %v2153
    %v2582 = vunpack.c.l.b16 %v2154
    %v2583 = vunpack.c.h.b16 %v2154
    %v2584 = vunpack.c.l.b16 %v2155
    %v2585 = vunpack.c.h.b16 %v2155
    %v2586 = vunpack.c.l.b16 %v2156
    %v2587 = vunpack.c.h.b16 %v2156
    %v2588 = vunpack.c.l.b16 %v2157
    %v2589 = vunpack.c.h.b16 %v2157
    %v2590 = vunpack.c.l.b16 %v2158
    %v2591 = vunpack.c.l.b16 %v2159
    %v2592 = vunpack.c.h.b16 %v2159
    %v2593 = vunpack.c.l.b16 %v2160
    %v2594 = vunpack.c.h.b16 %v2160
    %v2595 = vunpack.c.l.b16 %v2161
    %v2596 = vunpack.c.h.b16 %v2161
    %v2597 = vunpack.c.l.b16 %v2162
    %v2598 = vunpack.c.h.b16 %v2162
    %v2599 = vunpack.c.l.b16 %v2163
    %v2600 = vunpack.c.h.b16 %v2163
    %v2601 = vunpack.c.l.b16 %v2164
    %v2602 = vunpack.c.h.b16 %v2164
    %v2603 = vunpack.c.l.b16 %v2165
    %v2604 = vunpack.c.h.b16 %v2165
    %v2605 = vunpack.c.l.b16 %v2166
    %v2606 = vunpack.c.l.b16 %v2167
    %v2607 = vunpack.c.h.b16 %v2167
    %v2608 = vunpack.c.l.b16 %v2168
    %v2609 = vunpack.c.h.b16 %v2168
    %v2610 = vunpack.c.l.b16 %v2169
    %v2611 = vunpack.c.h.b16 %v2169
    %v2612 = vunpack.c.l.b16 %v2170
    %v2613 = vunpack.c.h.b16 %v2170
    %v2614 = vunpack.c.l.b16 %v2171
    %v2615 = vunpack.c.h.b16 %v2171
    %v2616 = vunpack.c.l.b16 %v2172
    %v2617 = vunpack.c.h.b16 %v2172
    %v2618 = vunpack.c.l.b16 %v2173
    %v2619 = vunpack.c.h.b16 %v2173
    %v2620 = vunpack.c.l.b16 %v2174
    %v2621 = vunpack.c.l.b16 %v2175
    %v2622 = vunpack.c.h.b16 %v2175
    %v2623 = vunpack.c.l.b16 %v2176
    %v2624 = vunpack.c.h.b16 %v2176
    %v2625 = vunpack.c.l.b16 %v2177
    %v2626 = vunpack.c.h.b16 %v2177
    %v2627 = vunpack.c.l.b16 %v2178
    %v2628 = vunpack.c.h.b16 %v2178
    %v2629 = vunpack.c.l.b16 %v2179
    %v2630 = vunpack.c.h.b16 %v2179
    %v2631 = vunpack.c.l.b16 %v2180
    %v2632 = vunpack.c.h.b16 %v2180
    %v2633 = vunpack.c.l.b16 %v2181
    %v2634 = vunpack.c.h.b16 %v2181
    %v2635 = vunpack.c.l.b16 %v2182
    %v2636 = vunpack.c.l.b16 %v2183
    %v2637 = vunpack.c.h.b16 %v2183
    %v2638 = vunpack.c.l.b16 %v2184
    %v2639 = vunpack.c.h.b16 %v2184
    %v2640 = vunpack.c.l.b16 %v2185
    %v2641 = vunpack.c.h.b16 %v2185
    %v2642 = vunpack.c.l.b16 %v2186
    %v2643 = vunpack.c.h.b16 %v2186
    %v2644 = vunpack.c.l.b16 %v2187
    %v2645 = vunpack.c.h.b16 %v2187
    %v2646 = vunpack.c.l.b16 %v2188
    %v2647 = vunpack.c.h.b16 %v2188
    %v2648 = vunpack.c.l.b16 %v2189
    %v2649 = vunpack.c.h.b16 %v2189
    %v2650 = vunpack.c.l.b16 %v2190
    %v2651 = vunpack.c.l.b16 %v2191
    %v2652 = vunpack.c.h.b16 %v2191
    %v2653 = vunpack.c.l.b16 %v2192
    %v2654 = vunpack.c.h.b16 %v2192
    %v2655 = vunpack.c.l.b16 %v2193
    %v2656 = vunpack.c.h.b16 %v2193
    %v2657 = vunpack.c.l.b16 %v2194
    %v2658 = vunpack.c.h.b16 %v2194
    %v2659 = vunpack.c.l.b16 %v2195
    %v2660 = vunpack.c.h.b16 %v2195
    %v2661 = vunpack.c.l.b16 %v2196
    %v2662 = vunpack.c.h.b16 %v2196
    %v2663 = vunpack.c.l.b16 %v2197
    %v2664 = vunpack.c.h.b16 %v2197
    %v2665 = vunpack.c.l.b16 %v2198
    %v2666 = vunpack.c.l.b16 %v2199
    %v2667 = vunpack.c.h.b16 %v2199
    %v2668 = vunpack.c.l.b16 %v2200
    %v2669 = vunpack.c.h.b16 %v2200
    %v2670 = vunpack.c.l.b16 %v2201
    %v2671 = vunpack.c.h.b16 %v2201
    %v2672 = vunpack.c.l.b16 %v2202
    %v2673 = vunpack.c.h.b16 %v2202
    %v2674 = vunpack.c.l.b16 %v2203
    %v2675 = vunpack.c.h.b16 %v2203
    %v2676 = vunpack.c.l.b16 %v2204
    %v2677 = vunpack.c.h.b16 %v2204
    %v2678 = vunpack.c.l.b16 %v2205
    %v2679 = vunpack.c.h.b16 %v2205
    %v2680 = vunpack.c.l.b16 %v2206
    %v2681 = vunpack.c.l.b16 %v2207
    %v2682 = vunpack.c.h.b16 %v2207
    %v2683 = vunpack.c.l.b16 %v2208
    %v2684 = vunpack.c.h.b16 %v2208
    %v2685 = vunpack.c.l.b16 %v2209
    %v2686 = vunpack.c.h.b16 %v2209
    %v2687 = vunpack.c.l.b16 %v2210
    %v2688 = vunpack.c.h.b16 %v2210
    %v2689 = vunpack.c.l.b16 %v2211
    %v2690 = vunpack.c.h.b16 %v2211
    %v2691 = vunpack.c.l.b16 %v2212
    %v2692 = vunpack.c.h.b16 %v2212
    %v2693 = vunpack.c.l.b16 %v2213
    %v2694 = vunpack.c.h.b16 %v2213
    %v2695 = vunpack.c.l.b16 %v2214
    %v2696 = vunpack.c.l.b16 %v2215
    %v2697 = vunpack.c.h.b16 %v2215
    %v2698 = vunpack.c.l.b16 %v2216
    %v2699 = vunpack.c.h.b16 %v2216
    %v2700 = vunpack.c.l.b16 %v2217
    %v2701 = vunpack.c.h.b16 %v2217
    %v2702 = vunpack.c.l.b16 %v2218
    %v2703 = vunpack.c.h.b16 %v2218
    %v2704 = vunpack.c.l.b16 %v2219
    %v2705 = vunpack.c.h.b16 %v2219
    %v2706 = vunpack.c.l.b16 %v2220
    %v2707 = vunpack.c.h.b16 %v2220
    %v2708 = vunpack.c.l.b16 %v2221
    %v2709 = vunpack.c.h.b16 %v2221
    %v2710 = vunpack.c.l.b16 %v2222
    %v2711 = vpack.c.b16 %v2486, %v2471
    %v2712 = vpack.c.b16 %v2487, %v2472
    %v2713 = vpack.c.b16 %v2488, %v2473
    %v2714 = vpack.c.b16 %v2489, %v2474
    %v2715 = vpack.c.b16 %v2490, %v2475
    %v2716 = vpack.c.b16 %v2491, %v2476
    %v2717 = vpack.c.b16 %v2492, %v2477
    %v2718 = vpack.c.b16 %v2493, %v2478
    %v2719 = vpack.c.b16 %v2494, %v2479
    %v2720 = vpack.c.b16 %v2495, %v2480
    %v2721 = vpack.c.b16 %v2496, %v2481
    %v2722 = vpack.c.b16 %v2497, %v2482
    %v2723 = vpack.c.b16 %v2498, %v2483
    %v2724 = vpack.c.b16 %v2499, %v2484
    %v2725 = vpack.c.b16 %v2500, %v2485
    %v2726 = vpack.c.b16 %v2516, %v2501
    %v2727 = vpack.c.b16 %v2517, %v2502
    %v2728 = vpack.c.b16 %v2518, %v2503
    %v2729 = vpack.c.b16 %v2519, %v2504
    %v2730 = vpack.c.b16 %v2520, %v2505
    %v2731 = vpack.c.b16 %v2521, %v2506
    %v2732 = vpack.c.b16 %v2522, %v2507
    %v2733 = vpack.c.b16 %v2523, %v2508
    %v2734 = vpack.c.b16 %v2524, %v2509
    %v2735 = vpack.c.b16 %v2525, %v2510
    %v2736 = vpack.c.b16 %v2526, %v2511
    %v2737 = vpack.c.b16 %v2527, %v2512
    %v2738 = vpack.c.b16 %v2528, %v2513
    %v2739 = vpack.c.b16 %v2529, %v2514
    %v2740 = vpack.c.b16 %v2530, %v2515
    %v2741 = vpack.c.b16 %v2546, %v2531
    %v2742 = vpack.c.b16 %v2547, %v2532
    %v2743 = vpack.c.b16 %v2548, %v2533
    %v2744 = vpack.c.b16 %v2549, %v2534
    %v2745 = vpack.c.b16 %v2550, %v2535
    %v2746 = vpack.c.b16 %v2551, %v2536
    %v2747 = vpack.c.b16 %v2552, %v2537
    %v2748 = vpack.c.b16 %v2553, %v2538
    %v2749 = vpack.c.b16 %v2554, %v2539
    %v2750 = vpack.c.b16 %v2555, %v2540
    %v2751 = vpack.c.b16 %v2556, %v2541
    %v2752 = vpack.c.b16 %v2557, %v2542
    %v2753 = vpack.c.b16 %v2558, %v2543
    %v2754 = vpack.c.b16 %v2559, %v2544
    %v2755 = vpack.c.b16 %v2560, %v2545
    %v2756 = vpack.c.b16 %v2576, %v2561
    %v2757 = vpack.c.b16 %v2577, %v2562
    %v2758 = vpack.c.b16 %v2578, %v2563
    %v2759 = vpack.c.b16 %v2579, %v2564
    %v2760 = vpack.c.b16 %v2580, %v2565
    %v2761 = vpack.c.b16 %v2581, %v2566
    %v2762 = vpack.c.b16 %v2582, %v2567
    %v2763 = vpack.c.b16 %v2583, %v2568
    %v2764 = vpack.c.b16 %v2584, %v2569
    %v2765 = vpack.c.b16 %v2585, %v2570
    %v2766 = vpack.c.b16 %v2586, %v2571
    %v2767 = vpack.c.b16 %v2587, %v2572
    %v2768 = vpack.c.b16 %v2588, %v2573
    %v2769 = vpack.c.b16 %v2589, %v2574
    %v2770 = vpack.c.b16 %v2590, %v2575
    %v2771 = vpack.c.b16 %v2606, %v2591
    %v2772 = vpack.c.b16 %v2607, %v2592
    %v2773 = vpack.c.b16 %v2608, %v2593
    %v2774 = vpack.c.b16 %v2609, %v2594
    %v2775 = vpack.c.b16 %v2610, %v2595
    %v2776 = vpack.c.b16 %v2611, %v2596
    %v2777 = vpack.c.b16 %v2612, %v2597
    %v2778 = vpack.c.b16 %v2613, %v2598
    %v2779 = vpack.c.b16 %v2614, %v2599
    %v2780 = vpack.c.b16 %v2615, %v2600
    %v2781 = vpack.c.b16 %v2616, %v2601
    %v2782 = vpack.c.b16 %v2617, %v2602
    %v2783 = vpack.c.b16 %v2618, %v2603
    %v2784 = vpack.c.b16 %v2619, %v2604
    %v2785 = vpack.c.b16 %v2620, %v2605
    %v2786 = vpack.c.b16 %v2636, %v2621
    %v2787 = vpack.c.b16 %v2637, %v2622
    %v2788 = vpack.c.b16 %v2638, %v2623
    %v2789 = vpack.c.b16 %v2639, %v2624
    %v2790 = vpack.c.b16 %v2640, %v2625
    %v2791 = vpack.c.b16 %v2641, %v2626
    %v2792 = vpack.c.b16 %v2642, %v2627
    %v2793 = vpack.c.b16 %v2643, %v2628
    %v2794 = vpack.c.b16 %v2644, %v2629
    %v2795 = vpack.c.b16 %v2645, %v2630
    %v2796 = vpack.c.b16 %v2646, %v2631
    %v2797 = vpack.c.b16 %v2647, %v2632
    %v2798 = vpack.c.b16 %v2648, %v2633
    %v2799 = vpack.c.b16 %v2649, %v2634
    %v2800 = vpack.c.b16 %v2650, %v2635
    %v2801 = vpack.c.b16 %v2666, %v2651
    %v2802 = vpack.c.b16 %v2667, %v2652
    %v2803 = vpack.c.b16 %v2668, %v2653
    %v2804 = vpack.c.b16 %v2669, %v2654
    %v2805 = vpack.c.b16 %v2670, %v2655
    %v2806 = vpack.c.b16 %v2671, %v2656
    %v2807 = vpack.c.b16 %v2672, %v2657
    %v2808 = vpack.c.b16 %v2673, %v2658
    %v2809 = vpack.c.b16 %v2674, %v2659
    %v2810 = vpack.c.b16 %v2675, %v2660
    %v2811 = vpack.c.b16 %v2676, %v2661
    %v2812 = vpack.c.b16 %v2677, %v2662
    %v2813 = vpack.c.b16 %v2678, %v2663
    %v2814 = vpack.c.b16 %v2679, %v2664
    %v2815 = vpack.c.b16 %v2680, %v2665
    %v2816 = vpack.c.b16 %v2696, %v2681
    %v2817 = vpack.c.b16 %v2697, %v2682
    %v2818 = vpack.c.b16 %v2698, %v2683
    %v2819 = vpack.c.b16 %v2699, %v2684
    %v2820 = vpack.c.b16 %v2700, %v2685
    %v2821 = vpack.c.b16 %v2701, %v2686
    %v2822 = vpack.c.b16 %v2702, %v2687
    %v2823 = vpack.c.b16 %v2703, %v2688
    %v2824 = vpack.c.b16 %v2704, %v2689
    %v2825 = vpack.c.b16 %v2705, %v2690
    %v2826 = vpack.c.b16 %v2706, %v2691
    %v2827 = vpack.c.b16 %v2707, %v2692
    %v2828 = vpack.c.b16 %v2708, %v2693
    %v2829 = vpack.c.b16 %v2709, %v2694
    %v2830 = vpack.c.b16 %v2710, %v2695
    %2951 = vmatprep.subr.bf16.mxu0 0
    %2952 = vmatpush1.bf16.msra.mxu0 %v2223
    %2953 = vmatprep.subr.bf16.mxu0 0
    %2954 = vmatpush1.bf16.msra.mxu0 %v2224
    %2955 = vmatprep.subr.bf16.mxu0 0
    %2956 = vmatpush1.bf16.msra.mxu0 %v2225
    %2957 = vmatprep.subr.bf16.mxu0 0
    %2958 = vmatpush1.bf16.msra.mxu0 %v2226
    %2959 = vmatprep.subr.bf16.mxu0 0
    %2960 = vmatpush1.bf16.msra.mxu0 %v2227
    %2961 = vmatprep.subr.bf16.mxu0 0
    %2962 = vmatpush1.bf16.msra.mxu0 %v2228
    %2963 = vmatprep.subr.bf16.mxu0 0
    %2964 = vmatpush1.bf16.msra.mxu0 %v2229
    %2965 = vmatprep.subr.bf16.mxu0 0
    %2966 = vmatpush1.bf16.msra.mxu0 %v2230
    %2967 = vmatprep.subr.bf16.mxu0 0
    %2968 = vmatpush1.bf16.msra.mxu0 %v2231
    %2969 = vmatprep.subr.bf16.mxu0 0
    %2970 = vmatpush1.bf16.msra.mxu0 %v2232
    %2971 = vmatprep.subr.bf16.mxu0 0
    %2972 = vmatpush1.bf16.msra.mxu0 %v2233
    %2973 = vmatprep.subr.bf16.mxu0 0
    %2974 = vmatpush1.bf16.msra.mxu0 %v2234
    %2975 = vmatprep.subr.bf16.mxu0 0
    %2976 = vmatpush1.bf16.msra.mxu0 %v2235
    %2977 = vmatprep.subr.bf16.mxu0 0
    %2978 = vmatpush1.bf16.msra.mxu0 %v2236
    %2979 = vmatprep.subr.bf16.mxu0 0
    %2980 = vmatpush1.bf16.msra.mxu0 %v2237
    %2981 = vmatprep.subr.bf16.mxu0 0
    %2982 = vmatpush1.bf16.msra.mxu0 %v2238
    %2983 = vmatprep.mubr.bf16.mxu0 %v2712
    %2984 = vmatmul.mubr.bf16.gmra.mrb[0].mxu0 %v2711
    %v2985 = vpop.f32.mrb[0].mxu0
    %v2986 = vadd.f32 0.0, %v2985
    %v2987 = vpop.f32.mrb[0].mxu0
    %v2988 = vpop.f32.mrb[0].mxu0
    %v2989 = vadd.f32 0.0, %v2988
    %v2990 = vpop.f32.mrb[0].mxu0
    %2991 = vmatprep.mubr.bf16.mxu0 %v2727
    %2992 = vmatmul.mubr.bf16.gmra.mrb[0].mxu0 %v2726
    %v2993 = vpop.f32.mrb[0].mxu0
    %v2994 = vadd.f32 0.0, %v2993
    %v2995 = vpop.f32.mrb[0].mxu0
    %v2996 = vpop.f32.mrb[0].mxu0
    %v2997 = vadd.f32 0.0, %v2996
    %v2998 = vpop.f32.mrb[0].mxu0
    %2999 = vmatprep.mubr.bf16.mxu0 %v2742
    %3000 = vmatmul.mubr.bf16.gmra.mrb[0].mxu0 %v2741
    %v3001 = vpop.f32.mrb[0].mxu0
    %v3002 = vadd.f32 0.0, %v3001
    %v3003 = vpop.f32.mrb[0].mxu0
    %v3004 = vpop.f32.mrb[0].mxu0
    %v3005 = vadd.f32 0.0, %v3004
    %v3006 = vpop.f32.mrb[0].mxu0
    %3007 = vmatprep.mubr.bf16.mxu0 %v2757
    %3008 = vmatmul.mubr.bf16.gmra.mrb[0].mxu0 %v2756
    %v3009 = vpop.f32.mrb[0].mxu0
    %v3010 = vadd.f32 0.0, %v3009
    %v3011 = vpop.f32.mrb[0].mxu0
    %v3012 = vpop.f32.mrb[0].mxu0
    %v3013 = vadd.f32 0.0, %v3012
    %v3014 = vpop.f32.mrb[0].mxu0
    %3015 = vmatprep.mubr.bf16.mxu0 %v2772
    %3016 = vmatmul.mubr.bf16.gmra.mrb[0].mxu0 %v2771
    %v3017 = vpop.f32.mrb[0].mxu0
    %v3018 = vadd.f32 0.0, %v3017
    %v3019 = vpop.f32.mrb[0].mxu0
    %v3020 = vpop.f32.mrb[0].mxu0
    %v3021 = vadd.f32 0.0, %v3020
    %v3022 = vpop.f32.mrb[0].mxu0
    %3023 = vmatprep.mubr.bf16.mxu0 %v2787
    %3024 = vmatmul.mubr.bf16.gmra.mrb[0].mxu0 %v2786
    %v3025 = vpop.f32.mrb[0].mxu0
    %v3026 = vadd.f32 0.0, %v3025
    %v3027 = vpop.f32.mrb[0].mxu0
    %v3028 = vpop.f32.mrb[0].mxu0
    %v3029 = vadd.f32 0.0, %v3028
    %v3030 = vpop.f32.mrb[0].mxu0
    %3031 = vmatprep.mubr.bf16.mxu0 %v2802
    %3032 = vmatmul.mubr.bf16.gmra.mrb[0].mxu0 %v2801
    %v3033 = vpop.f32.mrb[0].mxu0
    %v3034 = vadd.f32 0.0, %v3033
    %v3035 = vpop.f32.mrb[0].mxu0
    %v3036 = vpop.f32.mrb[0].mxu0
    %v3037 = vadd.f32 0.0, %v3036
    %v3038 = vpop.f32.mrb[0].mxu0
    %3039 = vmatprep.mubr.bf16.mxu0 %v2817
    %3040 = vmatmul.mubr.bf16.gmra.mrb[0].mxu0 %v2816
    %v3041 = vpop.f32.mrb[0].mxu0
    %v3042 = vadd.f32 0.0, %v3041
    %v3043 = vpop.f32.mrb[0].mxu0
    %v3044 = vpop.f32.mrb[0].mxu0
    %v3045 = vadd.f32 0.0, %v3044
    %v3046 = vpop.f32.mrb[0].mxu0
    %3047 = vdwg.mxu0
    %3048 = vmatprep.subr.bf16.mxu0 0
    %3049 = vmatpush1.bf16.msra.mxu0 %v2239
    %3050 = vmatprep.subr.bf16.mxu0 0
    %3051 = vmatpush1.bf16.msra.mxu0 %v2240
    %3052 = vmatprep.subr.bf16.mxu0 0
    %3053 = vmatpush1.bf16.msra.mxu0 %v2241
    %3054 = vmatprep.subr.bf16.mxu0 0
    %3055 = vmatpush1.bf16.msra.mxu0 %v2242
    %3056 = vmatprep.subr.bf16.mxu0 0
    %3057 = vmatpush1.bf16.msra.mxu0 %v2243
    %3058 = vmatprep.subr.bf16.mxu0 0
    %3059 = vmatpush1.bf16.msra.mxu0 %v2244
    %3060 = vmatprep.subr.bf16.mxu0 0
    %3061 = vmatpush1.bf16.msra.mxu0 %v2245
    %3062 = vmatprep.subr.bf16.mxu0 0
    %3063 = vmatpush1.bf16.msra.mxu0 %v2246
    %3064 = vmatprep.subr.bf16.mxu0 0
    %3065 = vmatpush1.bf16.msra.mxu0 %v2247
    %3066 = vmatprep.subr.bf16.mxu0 0
    %3067 = vmatpush1.bf16.msra.mxu0 %v2248
    %3068 = vmatprep.subr.bf16.mxu0 0
    %3069 = vmatpush1.bf16.msra.mxu0 %v2249
    %3070 = vmatprep.subr.bf16.mxu0 0
    %3071 = vmatpush1.bf16.msra.mxu0 %v2250
    %3072 = vmatprep.subr.bf16.mxu0 0
    %3073 = vmatpush1.bf16.msra.mxu0 %v2251
    %3074 = vmatprep.subr.bf16.mxu0 0
    %3075 = vmatpush1.bf16.msra.mxu0 %v2252
    %3076 = vmatprep.subr.bf16.mxu0 0
    %3077 = vmatpush1.bf16.msra.mxu0 %v2253
    %3078 = vmatprep.subr.bf16.mxu0 0
    %3079 = vmatpush1.bf16.msra.mxu0 %v2254
    %3080 = vmatprep.mubr.bf16.mxu0 %v2714
    %3081 = vmatmul.mubr.bf16.gmra.mrb[0].mxu0 %v2713
    %v3082 = vpop.f32.mrb[0].mxu0
    %v3083 = vadd.f32 %v2986, %v3082
    %v3084 = vpop.f32.mrb[0].mxu0
    %v3085 = vpop.f32.mrb[0].mxu0
    %v3086 = vadd.f32 %v2989, %v3085
    %v3087 = vpop.f32.mrb[0].mxu0
    %3088 = vmatprep.mubr.bf16.mxu0 %v2729
    %3089 = vmatmul.mubr.bf16.gmra.mrb[0].mxu0 %v2728
    %v3090 = vpop.f32.mrb[0].mxu0
    %v3091 = vadd.f32 %v2994, %v3090
    %v3092 = vpop.f32.mrb[0].mxu0
    %v3093 = vpop.f32.mrb[0].mxu0
    %v3094 = vadd.f32 %v2997, %v3093
    %v3095 = vpop.f32.mrb[0].mxu0
    %3096 = vmatprep.mubr.bf16.mxu0 %v2744
    %3097 = vmatmul.mubr.bf16.gmra.mrb[0].mxu0 %v2743
    %v3098 = vpop.f32.mrb[0].mxu0
    %v3099 = vadd.f32 %v3002, %v3098
    %v3100 = vpop.f32.mrb[0].mxu0
    %v3101 = vpop.f32.mrb[0].mxu0
    %v3102 = vadd.f32 %v3005, %v3101
    %v3103 = vpop.f32.mrb[0].mxu0
    %3104 = vmatprep.mubr.bf16.mxu0 %v2759
    %3105 = vmatmul.mubr.bf16.gmra.mrb[0].mxu0 %v2758
    %v3106 = vpop.f32.mrb[0].mxu0
    %v3107 = vadd.f32 %v3010, %v3106
    %v3108 = vpop.f32.mrb[0].mxu0
    %v3109 = vpop.f32.mrb[0].mxu0
    %v3110 = vadd.f32 %v3013, %v3109
    %v3111 = vpop.f32.mrb[0].mxu0
    %3112 = vmatprep.mubr.bf16.mxu0 %v2774
    %3113 = vmatmul.mubr.bf16.gmra.mrb[0].mxu0 %v2773
    %v3114 = vpop.f32.mrb[0].mxu0
    %v3115 = vadd.f32 %v3018, %v3114
    %v3116 = vpop.f32.mrb[0].mxu0
    %v3117 = vpop.f32.mrb[0].mxu0
    %v3118 = vadd.f32 %v3021, %v3117
    %v3119 = vpop.f32.mrb[0].mxu0
    %3120 = vmatprep.mubr.bf16.mxu0 %v2789
    %3121 = vmatmul.mubr.bf16.gmra.mrb[0].mxu0 %v2788
    %v3122 = vpop.f32.mrb[0].mxu0
    %v3123 = vadd.f32 %v3026, %v3122
    %v3124 = vpop.f32.mrb[0].mxu0
    %v3125 = vpop.f32.mrb[0].mxu0
    %v3126 = vadd.f32 %v3029, %v3125
    %v3127 = vpop.f32.mrb[0].mxu0
    %3128 = vmatprep.mubr.bf16.mxu0 %v2804
    %3129 = vmatmul.mubr.bf16.gmra.mrb[0].mxu0 %v2803
    %v3130 = vpop.f32.mrb[0].mxu0
    %v3131 = vadd.f32 %v3034, %v3130
    %v3132 = vpop.f32.mrb[0].mxu0
    %v3133 = vpop.f32.mrb[0].mxu0
    %v3134 = vadd.f32 %v3037, %v3133
    %v3135 = vpop.f32.mrb[0].mxu0
    %3136 = vmatprep.mubr.bf16.mxu0 %v2819
    %3137 = vmatmul.mubr.bf16.gmra.mrb[0].mxu0 %v2818
    %v3138 = vpop.f32.mrb[0].mxu0
    %v3139 = vadd.f32 %v3042, %v3138
    %v3140 = vpop.f32.mrb[0].mxu0
    %v3141 = vpop.f32.mrb[0].mxu0
    %v3142 = vadd.f32 %v3045, %v3141
    %v3143 = vpop.f32.mrb[0].mxu0
    %3144 = vdwg.mxu0
    %3145 = vmatprep.subr.bf16.mxu0 0
    %3146 = vmatpush1.bf16.msra.mxu0 %v2255
    %3147 = vmatprep.subr.bf16.mxu0 0
    %3148 = vmatpush1.bf16.msra.mxu0 %v2256
    %3149 = vmatprep.subr.bf16.mxu0 0
    %3150 = vmatpush1.bf16.msra.mxu0 %v2257
    %3151 = vmatprep.subr.bf16.mxu0 0
    %3152 = vmatpush1.bf16.msra.mxu0 %v2258
    %3153 = vmatprep.subr.bf16.mxu0 0
    %3154 = vmatpush1.bf16.msra.mxu0 %v2259
    %3155 = vmatprep.subr.bf16.mxu0 0
    %3156 = vmatpush1.bf16.msra.mxu0 %v2260
    %3157 = vmatprep.subr.bf16.mxu0 0
    %3158 = vmatpush1.bf16.msra.mxu0 %v2261
    %3159 = vmatprep.subr.bf16.mxu0 0
    %3160 = vmatpush1.bf16.msra.mxu0 %v2262
    %3161 = vmatprep.subr.bf16.mxu0 0
    %3162 = vmatpush1.bf16.msra.mxu0 %v2263
    %3163 = vmatprep.subr.bf16.mxu0 0
    %3164 = vmatpush1.bf16.msra.mxu0 %v2264
    %3165 = vmatprep.subr.bf16.mxu0 0
    %3166 = vmatpush1.bf16.msra.mxu0 %v2265
    %3167 = vmatprep.subr.bf16.mxu0 0
    %3168 = vmatpush1.bf16.msra.mxu0 %v2266
    %3169 = vmatprep.subr.bf16.mxu0 0
    %3170 = vmatpush1.bf16.msra.mxu0 %v2267
    %3171 = vmatprep.subr.bf16.mxu0 0
    %3172 = vmatpush1.bf16.msra.mxu0 %v2268
    %3173 = vmatprep.subr.bf16.mxu0 0
    %3174 = vmatpush1.bf16.msra.mxu0 %v2269
    %3175 = vmatprep.subr.bf16.mxu0 0
    %3176 = vmatpush1.bf16.msra.mxu0 %v2270
    %3177 = vmatprep.mubr.bf16.mxu0 %v2716
    %3178 = vmatmul.mubr.bf16.gmra.mrb[0].mxu0 %v2715
    %v3179 = vpop.f32.mrb[0].mxu0
    %v3180 = vadd.f32 %v3083, %v3179
    %v3181 = vpop.f32.mrb[0].mxu0
    %v3182 = vpop.f32.mrb[0].mxu0
    %v3183 = vadd.f32 %v3086, %v3182
    %v3184 = vpop.f32.mrb[0].mxu0
    %3185 = vmatprep.mubr.bf16.mxu0 %v2731
    %3186 = vmatmul.mubr.bf16.gmra.mrb[0].mxu0 %v2730
    %v3187 = vpop.f32.mrb[0].mxu0
    %v3188 = vadd.f32 %v3091, %v3187
    %v3189 = vpop.f32.mrb[0].mxu0
    %v3190 = vpop.f32.mrb[0].mxu0
    %v3191 = vadd.f32 %v3094, %v3190
    %v3192 = vpop.f32.mrb[0].mxu0
    %3193 = vmatprep.mubr.bf16.mxu0 %v2746
    %3194 = vmatmul.mubr.bf16.gmra.mrb[0].mxu0 %v2745
    %v3195 = vpop.f32.mrb[0].mxu0
    %v3196 = vadd.f32 %v3099, %v3195
    %v3197 = vpop.f32.mrb[0].mxu0
    %v3198 = vpop.f32.mrb[0].mxu0
    %v3199 = vadd.f32 %v3102, %v3198
    %v3200 = vpop.f32.mrb[0].mxu0
    %3201 = vmatprep.mubr.bf16.mxu0 %v2761
    %3202 = vmatmul.mubr.bf16.gmra.mrb[0].mxu0 %v2760
    %v3203 = vpop.f32.mrb[0].mxu0
    %v3204 = vadd.f32 %v3107, %v3203
    %v3205 = vpop.f32.mrb[0].mxu0
    %v3206 = vpop.f32.mrb[0].mxu0
    %v3207 = vadd.f32 %v3110, %v3206
    %v3208 = vpop.f32.mrb[0].mxu0
    %3209 = vmatprep.mubr.bf16.mxu0 %v2776
    %3210 = vmatmul.mubr.bf16.gmra.mrb[0].mxu0 %v2775
    %v3211 = vpop.f32.mrb[0].mxu0
    %v3212 = vadd.f32 %v3115, %v3211
    %v3213 = vpop.f32.mrb[0].mxu0
    %v3214 = vpop.f32.mrb[0].mxu0
    %v3215 = vadd.f32 %v3118, %v3214
    %v3216 = vpop.f32.mrb[0].mxu0
    %3217 = vmatprep.mubr.bf16.mxu0 %v2791
    %3218 = vmatmul.mubr.bf16.gmra.mrb[0].mxu0 %v2790
    %v3219 = vpop.f32.mrb[0].mxu0
    %v3220 = vadd.f32 %v3123, %v3219
    %v3221 = vpop.f32.mrb[0].mxu0
    %v3222 = vpop.f32.mrb[0].mxu0
    %v3223 = vadd.f32 %v3126, %v3222
    %v3224 = vpop.f32.mrb[0].mxu0
    %3225 = vmatprep.mubr.bf16.mxu0 %v2806
    %3226 = vmatmul.mubr.bf16.gmra.mrb[0].mxu0 %v2805
    %v3227 = vpop.f32.mrb[0].mxu0
    %v3228 = vadd.f32 %v3131, %v3227
    %v3229 = vpop.f32.mrb[0].mxu0
    %v3230 = vpop.f32.mrb[0].mxu0
    %v3231 = vadd.f32 %v3134, %v3230
    %v3232 = vpop.f32.mrb[0].mxu0
    %3233 = vmatprep.mubr.bf16.mxu0 %v2821
    %3234 = vmatmul.mubr.bf16.gmra.mrb[0].mxu0 %v2820
    %v3235 = vpop.f32.mrb[0].mxu0
    %v3236 = vadd.f32 %v3139, %v3235
    %v3237 = vpop.f32.mrb[0].mxu0
    %v3238 = vpop.f32.mrb[0].mxu0
    %v3239 = vadd.f32 %v3142, %v3238
    %v3240 = vpop.f32.mrb[0].mxu0
    %3241 = vdwg.mxu0
    %3242 = vmatprep.subr.bf16.mxu0 0
    %3243 = vmatpush1.bf16.msra.mxu0 %v2271
    %3244 = vmatprep.subr.bf16.mxu0 0
    %3245 = vmatpush1.bf16.msra.mxu0 %v2272
    %3246 = vmatprep.subr.bf16.mxu0 0
    %3247 = vmatpush1.bf16.msra.mxu0 %v2273
    %3248 = vmatprep.subr.bf16.mxu0 0
    %3249 = vmatpush1.bf16.msra.mxu0 %v2274
    %3250 = vmatprep.subr.bf16.mxu0 0
    %3251 = vmatpush1.bf16.msra.mxu0 %v2275
    %3252 = vmatprep.subr.bf16.mxu0 0
    %3253 = vmatpush1.bf16.msra.mxu0 %v2276
    %3254 = vmatprep.subr.bf16.mxu0 0
    %3255 = vmatpush1.bf16.msra.mxu0 %v2277
    %3256 = vmatprep.subr.bf16.mxu0 0
    %3257 = vmatpush1.bf16.msra.mxu0 %v2278
    %3258 = vmatprep.subr.bf16.mxu0 0
    %3259 = vmatpush1.bf16.msra.mxu0 %v2279
    %3260 = vmatprep.subr.bf16.mxu0 0
    %3261 = vmatpush1.bf16.msra.mxu0 %v2280
    %3262 = vmatprep.subr.bf16.mxu0 0
    %3263 = vmatpush1.bf16.msra.mxu0 %v2281
    %3264 = vmatprep.subr.bf16.mxu0 0
    %3265 = vmatpush1.bf16.msra.mxu0 %v2282
    %3266 = vmatprep.subr.bf16.mxu0 0
    %3267 = vmatpush1.bf16.msra.mxu0 %v2283
    %3268 = vmatprep.subr.bf16.mxu0 0
    %3269 = vmatpush1.bf16.msra.mxu0 %v2284
    %3270 = vmatprep.subr.bf16.mxu0 0
    %3271 = vmatpush1.bf16.msra.mxu0 %v2285
    %3272 = vmatprep.subr.bf16.mxu0 0
    %3273 = vmatpush1.bf16.msra.mxu0 %v2286
    %3274 = vmatprep.mubr.bf16.mxu0 %v2718
    %3275 = vmatmul.mubr.bf16.gmra.mrb[0].mxu0 %v2717
    %v3276 = vpop.f32.mrb[0].mxu0
    %v3277 = vadd.f32 %v3180, %v3276
    %v3278 = vpop.f32.mrb[0].mxu0
    %v3279 = vpop.f32.mrb[0].mxu0
    %v3280 = vadd.f32 %v3183, %v3279
    %v3281 = vpop.f32.mrb[0].mxu0
    %3282 = vmatprep.mubr.bf16.mxu0 %v2733
    %3283 = vmatmul.mubr.bf16.gmra.mrb[0].mxu0 %v2732
    %v3284 = vpop.f32.mrb[0].mxu0
    %v3285 = vadd.f32 %v3188, %v3284
    %v3286 = vpop.f32.mrb[0].mxu0
    %v3287 = vpop.f32.mrb[0].mxu0
    %v3288 = vadd.f32 %v3191, %v3287
    %v3289 = vpop.f32.mrb[0].mxu0
    %3290 = vmatprep.mubr.bf16.mxu0 %v2748
    %3291 = vmatmul.mubr.bf16.gmra.mrb[0].mxu0 %v2747
    %v3292 = vpop.f32.mrb[0].mxu0
    %v3293 = vadd.f32 %v3196, %v3292
    %v3294 = vpop.f32.mrb[0].mxu0
    %v3295 = vpop.f32.mrb[0].mxu0
    %v3296 = vadd.f32 %v3199, %v3295
    %v3297 = vpop.f32.mrb[0].mxu0
    %3298 = vmatprep.mubr.bf16.mxu0 %v2763
    %3299 = vmatmul.mubr.bf16.gmra.mrb[0].mxu0 %v2762
    %v3300 = vpop.f32.mrb[0].mxu0
    %v3301 = vadd.f32 %v3204, %v3300
    %v3302 = vpop.f32.mrb[0].mxu0
    %v3303 = vpop.f32.mrb[0].mxu0
    %v3304 = vadd.f32 %v3207, %v3303
    %v3305 = vpop.f32.mrb[0].mxu0
    %3306 = vmatprep.mubr.bf16.mxu0 %v2778
    %3307 = vmatmul.mubr.bf16.gmra.mrb[0].mxu0 %v2777
    %v3308 = vpop.f32.mrb[0].mxu0
    %v3309 = vadd.f32 %v3212, %v3308
    %v3310 = vpop.f32.mrb[0].mxu0
    %v3311 = vpop.f32.mrb[0].mxu0
    %v3312 = vadd.f32 %v3215, %v3311
    %v3313 = vpop.f32.mrb[0].mxu0
    %3314 = vmatprep.mubr.bf16.mxu0 %v2793
    %3315 = vmatmul.mubr.bf16.gmra.mrb[0].mxu0 %v2792
    %v3316 = vpop.f32.mrb[0].mxu0
    %v3317 = vadd.f32 %v3220, %v3316
    %v3318 = vpop.f32.mrb[0].mxu0
    %v3319 = vpop.f32.mrb[0].mxu0
    %v3320 = vadd.f32 %v3223, %v3319
    %v3321 = vpop.f32.mrb[0].mxu0
    %3322 = vmatprep.mubr.bf16.mxu0 %v2808
    %3323 = vmatmul.mubr.bf16.gmra.mrb[0].mxu0 %v2807
    %v3324 = vpop.f32.mrb[0].mxu0
    %v3325 = vadd.f32 %v3228, %v3324
    %v3326 = vpop.f32.mrb[0].mxu0
    %v3327 = vpop.f32.mrb[0].mxu0
    %v3328 = vadd.f32 %v3231, %v3327
    %v3329 = vpop.f32.mrb[0].mxu0
    %3330 = vmatprep.mubr.bf16.mxu0 %v2823
    %3331 = vmatmul.mubr.bf16.gmra.mrb[0].mxu0 %v2822
    %v3332 = vpop.f32.mrb[0].mxu0
    %v3333 = vadd.f32 %v3236, %v3332
    %v3334 = vpop.f32.mrb[0].mxu0
    %v3335 = vpop.f32.mrb[0].mxu0
    %v3336 = vadd.f32 %v3239, %v3335
    %v3337 = vpop.f32.mrb[0].mxu0
    %3338 = vdwg.mxu0
    %3339 = vmatprep.subr.bf16.mxu0 0
    %3340 = vmatpush1.bf16.msra.mxu0 %v2287
    %3341 = vmatprep.subr.bf16.mxu0 0
    %3342 = vmatpush1.bf16.msra.mxu0 %v2288
    %3343 = vmatprep.subr.bf16.mxu0 0
    %3344 = vmatpush1.bf16.msra.mxu0 %v2289
    %3345 = vmatprep.subr.bf16.mxu0 0
    %3346 = vmatpush1.bf16.msra.mxu0 %v2290
    %3347 = vmatprep.subr.bf16.mxu0 0
    %3348 = vmatpush1.bf16.msra.mxu0 %v2291
    %3349 = vmatprep.subr.bf16.mxu0 0
    %3350 = vmatpush1.bf16.msra.mxu0 %v2292
    %3351 = vmatprep.subr.bf16.mxu0 0
    %3352 = vmatpush1.bf16.msra.mxu0 %v2293
    %3353 = vmatprep.subr.bf16.mxu0 0
    %3354 = vmatpush1.bf16.msra.mxu0 %v2294
    %3355 = vmatprep.subr.bf16.mxu0 0
    %3356 = vmatpush1.bf16.msra.mxu0 %v2295
    %3357 = vmatprep.subr.bf16.mxu0 0
    %3358 = vmatpush1.bf16.msra.mxu0 %v2296
    %3359 = vmatprep.subr.bf16.mxu0 0
    %3360 = vmatpush1.bf16.msra.mxu0 %v2297
    %3361 = vmatprep.subr.bf16.mxu0 0
    %3362 = vmatpush1.bf16.msra.mxu0 %v2298
    %3363 = vmatprep.subr.bf16.mxu0 0
    %3364 = vmatpush1.bf16.msra.mxu0 %v2299
    %3365 = vmatprep.subr.bf16.mxu0 0
    %3366 = vmatpush1.bf16.msra.mxu0 %v2300
    %3367 = vmatprep.subr.bf16.mxu0 0
    %3368 = vmatpush1.bf16.msra.mxu0 %v2301
    %3369 = vmatprep.subr.bf16.mxu0 0
    %3370 = vmatpush1.bf16.msra.mxu0 %v2302
    %3371 = vmatprep.mubr.bf16.mxu0 %v2720
    %3372 = vmatmul.mubr.bf16.gmra.mrb[0].mxu0 %v2719
    %v3373 = vpop.f32.mrb[0].mxu0
    %v3374 = vadd.f32 %v3277, %v3373
    %v3375 = vpop.f32.mrb[0].mxu0
    %v3376 = vpop.f32.mrb[0].mxu0
    %v3377 = vadd.f32 %v3280, %v3376
    %v3378 = vpop.f32.mrb[0].mxu0
    %3379 = vmatprep.mubr.bf16.mxu0 %v2735
    %3380 = vmatmul.mubr.bf16.gmra.mrb[0].mxu0 %v2734
    %v3381 = vpop.f32.mrb[0].mxu0
    %v3382 = vadd.f32 %v3285, %v3381
    %v3383 = vpop.f32.mrb[0].mxu0
    %v3384 = vpop.f32.mrb[0].mxu0
    %v3385 = vadd.f32 %v3288, %v3384
    %v3386 = vpop.f32.mrb[0].mxu0
    %3387 = vmatprep.mubr.bf16.mxu0 %v2750
    %3388 = vmatmul.mubr.bf16.gmra.mrb[0].mxu0 %v2749
    %v3389 = vpop.f32.mrb[0].mxu0
    %v3390 = vadd.f32 %v3293, %v3389
    %v3391 = vpop.f32.mrb[0].mxu0
    %v3392 = vpop.f32.mrb[0].mxu0
    %v3393 = vadd.f32 %v3296, %v3392
    %v3394 = vpop.f32.mrb[0].mxu0
    %3395 = vmatprep.mubr.bf16.mxu0 %v2765
    %3396 = vmatmul.mubr.bf16.gmra.mrb[0].mxu0 %v2764
    %v3397 = vpop.f32.mrb[0].mxu0
    %v3398 = vadd.f32 %v3301, %v3397
    %v3399 = vpop.f32.mrb[0].mxu0
    %v3400 = vpop.f32.mrb[0].mxu0
    %v3401 = vadd.f32 %v3304, %v3400
    %v3402 = vpop.f32.mrb[0].mxu0
    %3403 = vmatprep.mubr.bf16.mxu0 %v2780
    %3404 = vmatmul.mubr.bf16.gmra.mrb[0].mxu0 %v2779
    %v3405 = vpop.f32.mrb[0].mxu0
    %v3406 = vadd.f32 %v3309, %v3405
    %v3407 = vpop.f32.mrb[0].mxu0
    %v3408 = vpop.f32.mrb[0].mxu0
    %v3409 = vadd.f32 %v3312, %v3408
    %v3410 = vpop.f32.mrb[0].mxu0
    %3411 = vmatprep.mubr.bf16.mxu0 %v2795
    %3412 = vmatmul.mubr.bf16.gmra.mrb[0].mxu0 %v2794
    %v3413 = vpop.f32.mrb[0].mxu0
    %v3414 = vadd.f32 %v3317, %v3413
    %v3415 = vpop.f32.mrb[0].mxu0
    %v3416 = vpop.f32.mrb[0].mxu0
    %v3417 = vadd.f32 %v3320, %v3416
    %v3418 = vpop.f32.mrb[0].mxu0
    %3419 = vmatprep.mubr.bf16.mxu0 %v2810
    %3420 = vmatmul.mubr.bf16.gmra.mrb[0].mxu0 %v2809
    %v3421 = vpop.f32.mrb[0].mxu0
    %v3422 = vadd.f32 %v3325, %v3421
    %v3423 = vpop.f32.mrb[0].mxu0
    %v3424 = vpop.f32.mrb[0].mxu0
    %v3425 = vadd.f32 %v3328, %v3424
    %v3426 = vpop.f32.mrb[0].mxu0
    %3427 = vmatprep.mubr.bf16.mxu0 %v2825
    %3428 = vmatmul.mubr.bf16.gmra.mrb[0].mxu0 %v2824
    %v3429 = vpop.f32.mrb[0].mxu0
    %v3430 = vadd.f32 %v3333, %v3429
    %v3431 = vpop.f32.mrb[0].mxu0
    %v3432 = vpop.f32.mrb[0].mxu0
    %v3433 = vadd.f32 %v3336, %v3432
    %v3434 = vpop.f32.mrb[0].mxu0
    %3435 = vdwg.mxu0
    %3436 = vmatprep.subr.bf16.mxu0 0
    %3437 = vmatpush1.bf16.msra.mxu0 %v2303
    %3438 = vmatprep.subr.bf16.mxu0 0
    %3439 = vmatpush1.bf16.msra.mxu0 %v2304
    %3440 = vmatprep.subr.bf16.mxu0 0
    %3441 = vmatpush1.bf16.msra.mxu0 %v2305
    %3442 = vmatprep.subr.bf16.mxu0 0
    %3443 = vmatpush1.bf16.msra.mxu0 %v2306
    %3444 = vmatprep.subr.bf16.mxu0 0
    %3445 = vmatpush1.bf16.msra.mxu0 %v2307
    %3446 = vmatprep.subr.bf16.mxu0 0
    %3447 = vmatpush1.bf16.msra.mxu0 %v2308
    %3448 = vmatprep.subr.bf16.mxu0 0
    %3449 = vmatpush1.bf16.msra.mxu0 %v2309
    %3450 = vmatprep.subr.bf16.mxu0 0
    %3451 = vmatpush1.bf16.msra.mxu0 %v2310
    %3452 = vmatprep.subr.bf16.mxu0 0
    %3453 = vmatpush1.bf16.msra.mxu0 %v2311
    %3454 = vmatprep.subr.bf16.mxu0 0
    %3455 = vmatpush1.bf16.msra.mxu0 %v2312
    %3456 = vmatprep.subr.bf16.mxu0 0
    %3457 = vmatpush1.bf16.msra.mxu0 %v2313
    %3458 = vmatprep.subr.bf16.mxu0 0
    %3459 = vmatpush1.bf16.msra.mxu0 %v2314
    %3460 = vmatprep.subr.bf16.mxu0 0
    %3461 = vmatpush1.bf16.msra.mxu0 %v2315
    %3462 = vmatprep.subr.bf16.mxu0 0
    %3463 = vmatpush1.bf16.msra.mxu0 %v2316
    %3464 = vmatprep.subr.bf16.mxu0 0
    %3465 = vmatpush1.bf16.msra.mxu0 %v2317
    %3466 = vmatprep.subr.bf16.mxu0 0
    %3467 = vmatpush1.bf16.msra.mxu0 %v2318
    %3468 = vmatprep.mubr.bf16.mxu0 %v2722
    %3469 = vmatmul.mubr.bf16.gmra.mrb[0].mxu0 %v2721
    %v3470 = vpop.f32.mrb[0].mxu0
    %v3471 = vadd.f32 %v3374, %v3470
    %v3472 = vpop.f32.mrb[0].mxu0
    %v3473 = vpop.f32.mrb[0].mxu0
    %v3474 = vadd.f32 %v3377, %v3473
    %v3475 = vpop.f32.mrb[0].mxu0
    %3476 = vmatprep.mubr.bf16.mxu0 %v2737
    %3477 = vmatmul.mubr.bf16.gmra.mrb[0].mxu0 %v2736
    %v3478 = vpop.f32.mrb[0].mxu0
    %v3479 = vadd.f32 %v3382, %v3478
    %v3480 = vpop.f32.mrb[0].mxu0
    %v3481 = vpop.f32.mrb[0].mxu0
    %v3482 = vadd.f32 %v3385, %v3481
    %v3483 = vpop.f32.mrb[0].mxu0
    %3484 = vmatprep.mubr.bf16.mxu0 %v2752
    %3485 = vmatmul.mubr.bf16.gmra.mrb[0].mxu0 %v2751
    %v3486 = vpop.f32.mrb[0].mxu0
    %v3487 = vadd.f32 %v3390, %v3486
    %v3488 = vpop.f32.mrb[0].mxu0
    %v3489 = vpop.f32.mrb[0].mxu0
    %v3490 = vadd.f32 %v3393, %v3489
    %v3491 = vpop.f32.mrb[0].mxu0
    %3492 = vmatprep.mubr.bf16.mxu0 %v2767
    %3493 = vmatmul.mubr.bf16.gmra.mrb[0].mxu0 %v2766
    %v3494 = vpop.f32.mrb[0].mxu0
    %v3495 = vadd.f32 %v3398, %v3494
    %v3496 = vpop.f32.mrb[0].mxu0
    %v3497 = vpop.f32.mrb[0].mxu0
    %v3498 = vadd.f32 %v3401, %v3497
    %v3499 = vpop.f32.mrb[0].mxu0
    %3500 = vmatprep.mubr.bf16.mxu0 %v2782
    %3501 = vmatmul.mubr.bf16.gmra.mrb[0].mxu0 %v2781
    %v3502 = vpop.f32.mrb[0].mxu0
    %v3503 = vadd.f32 %v3406, %v3502
    %v3504 = vpop.f32.mrb[0].mxu0
    %v3505 = vpop.f32.mrb[0].mxu0
    %v3506 = vadd.f32 %v3409, %v3505
    %v3507 = vpop.f32.mrb[0].mxu0
    %3508 = vmatprep.mubr.bf16.mxu0 %v2797
    %3509 = vmatmul.mubr.bf16.gmra.mrb[0].mxu0 %v2796
    %v3510 = vpop.f32.mrb[0].mxu0
    %v3511 = vadd.f32 %v3414, %v3510
    %v3512 = vpop.f32.mrb[0].mxu0
    %v3513 = vpop.f32.mrb[0].mxu0
    %v3514 = vadd.f32 %v3417, %v3513
    %v3515 = vpop.f32.mrb[0].mxu0
    %3516 = vmatprep.mubr.bf16.mxu0 %v2812
    %3517 = vmatmul.mubr.bf16.gmra.mrb[0].mxu0 %v2811
    %v3518 = vpop.f32.mrb[0].mxu0
    %v3519 = vadd.f32 %v3422, %v3518
    %v3520 = vpop.f32.mrb[0].mxu0
    %v3521 = vpop.f32.mrb[0].mxu0
    %v3522 = vadd.f32 %v3425, %v3521
    %v3523 = vpop.f32.mrb[0].mxu0
    %3524 = vmatprep.mubr.bf16.mxu0 %v2827
    %3525 = vmatmul.mubr.bf16.gmra.mrb[0].mxu0 %v2826
    %v3526 = vpop.f32.mrb[0].mxu0
    %v3527 = vadd.f32 %v3430, %v3526
    %v3528 = vpop.f32.mrb[0].mxu0
    %v3529 = vpop.f32.mrb[0].mxu0
    %v3530 = vadd.f32 %v3433, %v3529
    %v3531 = vpop.f32.mrb[0].mxu0
    %3532 = vdwg.mxu0
    %3533 = vmatprep.subr.bf16.mxu0 0
    %3534 = vmatpush1.bf16.msra.mxu0 %v2319
    %3535 = vmatprep.subr.bf16.mxu0 0
    %3536 = vmatpush1.bf16.msra.mxu0 %v2320
    %3537 = vmatprep.subr.bf16.mxu0 0
    %3538 = vmatpush1.bf16.msra.mxu0 %v2321
    %3539 = vmatprep.subr.bf16.mxu0 0
    %3540 = vmatpush1.bf16.msra.mxu0 %v2322
    %3541 = vmatprep.subr.bf16.mxu0 0
    %3542 = vmatpush1.bf16.msra.mxu0 %v2323
    %3543 = vmatprep.subr.bf16.mxu0 0
    %3544 = vmatpush1.bf16.msra.mxu0 %v2324
    %3545 = vmatprep.subr.bf16.mxu0 0
    %3546 = vmatpush1.bf16.msra.mxu0 %v2325
    %3547 = vmatprep.subr.bf16.mxu0 0
    %3548 = vmatpush1.bf16.msra.mxu0 %v2326
    %3549 = vmatprep.subr.bf16.mxu0 0
    %3550 = vmatpush1.bf16.msra.mxu0 %v2327
    %3551 = vmatprep.subr.bf16.mxu0 0
    %3552 = vmatpush1.bf16.msra.mxu0 %v2328
    %3553 = vmatprep.subr.bf16.mxu0 0
    %3554 = vmatpush1.bf16.msra.mxu0 %v2329
    %3555 = vmatprep.subr.bf16.mxu0 0
    %3556 = vmatpush1.bf16.msra.mxu0 %v2330
    %3557 = vmatprep.subr.bf16.mxu0 0
    %3558 = vmatpush1.bf16.msra.mxu0 %v2331
    %3559 = vmatprep.subr.bf16.mxu0 0
    %3560 = vmatpush1.bf16.msra.mxu0 %v2332
    %3561 = vmatprep.subr.bf16.mxu0 0
    %3562 = vmatpush1.bf16.msra.mxu0 %v2333
    %3563 = vmatprep.subr.bf16.mxu0 0
    %3564 = vmatpush1.bf16.msra.mxu0 %v2334
    %3565 = vmatprep.mubr.bf16.mxu0 %v2724
    %3566 = vmatmul.mubr.bf16.gmra.mrb[0].mxu0 %v2723
    %v3567 = vpop.f32.mrb[0].mxu0
    %v3568 = vadd.f32 %v3471, %v3567
    %v3569 = vpop.f32.mrb[0].mxu0
    %v3570 = vpop.f32.mrb[0].mxu0
    %v3571 = vadd.f32 %v3474, %v3570
    %v3572 = vpop.f32.mrb[0].mxu0
    %3573 = vmatprep.mubr.bf16.mxu0 %v2739
    %3574 = vmatmul.mubr.bf16.gmra.mrb[0].mxu0 %v2738
    %v3575 = vpop.f32.mrb[0].mxu0
    %v3576 = vadd.f32 %v3479, %v3575
    %v3577 = vpop.f32.mrb[0].mxu0
    %v3578 = vpop.f32.mrb[0].mxu0
    %v3579 = vadd.f32 %v3482, %v3578
    %v3580 = vpop.f32.mrb[0].mxu0
    %3581 = vmatprep.mubr.bf16.mxu0 %v2754
    %3582 = vmatmul.mubr.bf16.gmra.mrb[0].mxu0 %v2753
    %v3583 = vpop.f32.mrb[0].mxu0
    %v3584 = vadd.f32 %v3487, %v3583
    %v3585 = vpop.f32.mrb[0].mxu0
    %v3586 = vpop.f32.mrb[0].mxu0
    %v3587 = vadd.f32 %v3490, %v3586
    %v3588 = vpop.f32.mrb[0].mxu0
    %3589 = vmatprep.mubr.bf16.mxu0 %v2769
    %3590 = vmatmul.mubr.bf16.gmra.mrb[0].mxu0 %v2768
    %v3591 = vpop.f32.mrb[0].mxu0
    %v3592 = vadd.f32 %v3495, %v3591
    %v3593 = vpop.f32.mrb[0].mxu0
    %v3594 = vpop.f32.mrb[0].mxu0
    %v3595 = vadd.f32 %v3498, %v3594
    %v3596 = vpop.f32.mrb[0].mxu0
    %3597 = vmatprep.mubr.bf16.mxu0 %v2784
    %3598 = vmatmul.mubr.bf16.gmra.mrb[0].mxu0 %v2783
    %v3599 = vpop.f32.mrb[0].mxu0
    %v3600 = vadd.f32 %v3503, %v3599
    %v3601 = vpop.f32.mrb[0].mxu0
    %v3602 = vpop.f32.mrb[0].mxu0
    %v3603 = vadd.f32 %v3506, %v3602
    %v3604 = vpop.f32.mrb[0].mxu0
    %3605 = vmatprep.mubr.bf16.mxu0 %v2799
    %3606 = vmatmul.mubr.bf16.gmra.mrb[0].mxu0 %v2798
    %v3607 = vpop.f32.mrb[0].mxu0
    %v3608 = vadd.f32 %v3511, %v3607
    %v3609 = vpop.f32.mrb[0].mxu0
    %v3610 = vpop.f32.mrb[0].mxu0
    %v3611 = vadd.f32 %v3514, %v3610
    %v3612 = vpop.f32.mrb[0].mxu0
    %3613 = vmatprep.mubr.bf16.mxu0 %v2814
    %3614 = vmatmul.mubr.bf16.gmra.mrb[0].mxu0 %v2813
    %v3615 = vpop.f32.mrb[0].mxu0
    %v3616 = vadd.f32 %v3519, %v3615
    %v3617 = vpop.f32.mrb[0].mxu0
    %v3618 = vpop.f32.mrb[0].mxu0
    %v3619 = vadd.f32 %v3522, %v3618
    %v3620 = vpop.f32.mrb[0].mxu0
    %3621 = vmatprep.mubr.bf16.mxu0 %v2829
    %3622 = vmatmul.mubr.bf16.gmra.mrb[0].mxu0 %v2828
    %v3623 = vpop.f32.mrb[0].mxu0
    %v3624 = vadd.f32 %v3527, %v3623
    %v3625 = vpop.f32.mrb[0].mxu0
    %v3626 = vpop.f32.mrb[0].mxu0
    %v3627 = vadd.f32 %v3530, %v3626
    %v3628 = vpop.f32.mrb[0].mxu0
    %3629 = vdwg.mxu0
    %3630 = vmatprep.subr.bf16.mxu0 0
    %3631 = vmatpush1.bf16.msra.mxu0 %v2335
    %3632 = vmatprep.subr.bf16.mxu0 0
    %3633 = vmatpush1.bf16.msra.mxu0 %v2336
    %3634 = vmatprep.subr.bf16.mxu0 0
    %3635 = vmatpush1.bf16.msra.mxu0 %v2337
    %3636 = vmatprep.subr.bf16.mxu0 0
    %3637 = vmatpush1.bf16.msra.mxu0 %v2338
    %3638 = vmatprep.subr.bf16.mxu0 0
    %3639 = vmatpush1.bf16.msra.mxu0 %v2339
    %3640 = vmatprep.subr.bf16.mxu0 0
    %3641 = vmatpush1.bf16.msra.mxu0 %v2340
    %3642 = vmatprep.subr.bf16.mxu0 0
    %3643 = vmatpush1.bf16.msra.mxu0 %v2341
    %3644 = vmatprep.subr.bf16.mxu0 0
    %3645 = vmatpush1.bf16.msra.mxu0 %v2342
    %3646 = vmatprep.subr.bf16.mxu0 0
    %3647 = vmatpush1.bf16.msra.mxu0 0
    %3648 = vmatprep.subr.bf16.mxu0 0
    %3649 = vmatpush1.bf16.msra.mxu0 0
    %3650 = vmatprep.subr.bf16.mxu0 0
    %3651 = vmatpush1.bf16.msra.mxu0 0
    %3652 = vmatprep.subr.bf16.mxu0 0
    %3653 = vmatpush1.bf16.msra.mxu0 0
    %3654 = vmatprep.subr.bf16.mxu0 0
    %3655 = vmatpush1.bf16.msra.mxu0 0
    %3656 = vmatprep.subr.bf16.mxu0 0
    %3657 = vmatpush1.bf16.msra.mxu0 0
    %3658 = vmatprep.subr.bf16.mxu0 0
    %3659 = vmatpush1.bf16.msra.mxu0 0
    %3660 = vmatprep.subr.bf16.mxu0 0
    %3661 = vmatpush1.bf16.msra.mxu0 0
    %3662 = vmatprep.mubr.bf16.mxu0 0
    %3663 = vmatmul.mubr.bf16.gmra.mrb[0].mxu0 %v2725
    %v3664 = vpop.f32.mrb[0].mxu0
    %v3665 = vadd.f32 %v3568, %v3664
    %v3666 = vpop.f32.mrb[0].mxu0
    %v3667 = vpop.f32.mrb[0].mxu0
    %v3668 = vadd.f32 %v3571, %v3667
    %v3669 = vpop.f32.mrb[0].mxu0
    %3670 = vmatprep.mubr.bf16.mxu0 0
    %3671 = vmatmul.mubr.bf16.gmra.mrb[0].mxu0 %v2740
    %v3672 = vpop.f32.mrb[0].mxu0
    %v3673 = vadd.f32 %v3576, %v3672
    %v3674 = vpop.f32.mrb[0].mxu0
    %v3675 = vpop.f32.mrb[0].mxu0
    %v3676 = vadd.f32 %v3579, %v3675
    %v3677 = vpop.f32.mrb[0].mxu0
    %3678 = vmatprep.mubr.bf16.mxu0 0
    %3679 = vmatmul.mubr.bf16.gmra.mrb[0].mxu0 %v2755
    %v3680 = vpop.f32.mrb[0].mxu0
    %v3681 = vadd.f32 %v3584, %v3680
    %v3682 = vpop.f32.mrb[0].mxu0
    %v3683 = vpop.f32.mrb[0].mxu0
    %v3684 = vadd.f32 %v3587, %v3683
    %v3685 = vpop.f32.mrb[0].mxu0
    %3686 = vmatprep.mubr.bf16.mxu0 0
    %3687 = vmatmul.mubr.bf16.gmra.mrb[0].mxu0 %v2770
    %v3688 = vpop.f32.mrb[0].mxu0
    %v3689 = vadd.f32 %v3592, %v3688
    %v3690 = vpop.f32.mrb[0].mxu0
    %v3691 = vpop.f32.mrb[0].mxu0
    %v3692 = vadd.f32 %v3595, %v3691
    %v3693 = vpop.f32.mrb[0].mxu0
    %3694 = vmatprep.mubr.bf16.mxu0 0
    %3695 = vmatmul.mubr.bf16.gmra.mrb[0].mxu0 %v2785
    %v3696 = vpop.f32.mrb[0].mxu0
    %v3697 = vadd.f32 %v3600, %v3696
    %v3698 = vpop.f32.mrb[0].mxu0
    %v3699 = vpop.f32.mrb[0].mxu0
    %v3700 = vadd.f32 %v3603, %v3699
    %v3701 = vpop.f32.mrb[0].mxu0
    %3702 = vmatprep.mubr.bf16.mxu0 0
    %3703 = vmatmul.mubr.bf16.gmra.mrb[0].mxu0 %v2800
    %v3704 = vpop.f32.mrb[0].mxu0
    %v3705 = vadd.f32 %v3608, %v3704
    %v3706 = vpop.f32.mrb[0].mxu0
    %v3707 = vpop.f32.mrb[0].mxu0
    %v3708 = vadd.f32 %v3611, %v3707
    %v3709 = vpop.f32.mrb[0].mxu0
    %3710 = vmatprep.mubr.bf16.mxu0 0
    %3711 = vmatmul.mubr.bf16.gmra.mrb[0].mxu0 %v2815
    %v3712 = vpop.f32.mrb[0].mxu0
    %v3713 = vadd.f32 %v3616, %v3712
    %v3714 = vpop.f32.mrb[0].mxu0
    %v3715 = vpop.f32.mrb[0].mxu0
    %v3716 = vadd.f32 %v3619, %v3715
    %v3717 = vpop.f32.mrb[0].mxu0
    %3718 = vmatprep.mubr.bf16.mxu0 0
    %3719 = vmatmul.mubr.bf16.gmra.mrb[0].mxu0 %v2830
    %v3720 = vpop.f32.mrb[0].mxu0
    %v3721 = vadd.f32 %v3624, %v3720
    %v3722 = vpop.f32.mrb[0].mxu0
    %v3723 = vpop.f32.mrb[0].mxu0
    %v3724 = vadd.f32 %v3627, %v3723
    %v3725 = vpop.f32.mrb[0].mxu0
    %3726 = vdwg.mxu0
    %v3727 = vadd.f32 %v1839, %v3665
    %v3728 = vadd.f32 %v1840, %v3668
    %v3729 = vadd.f32 %v1841, %v3673
    %v3730 = vadd.f32 %v1842, %v3676
    %v3731 = vadd.f32 %v1843, %v3681
    %v3732 = vadd.f32 %v1844, %v3684
    %v3733 = vadd.f32 %v1845, %v3689
    %v3734 = vadd.f32 %v1846, %v3692
    %v3735 = vadd.f32 %v1847, %v3697
    %v3736 = vadd.f32 %v1848, %v3700
    %v3737 = vadd.f32 %v1849, %v3705
    %v3738 = vadd.f32 %v1850, %v3708
    %v3739 = vadd.f32 %v1851, %v3713
    %v3740 = vadd.f32 %v1852, %v3716
    %v3741 = vadd.f32 %v1853, %v3721
    %v3742 = vadd.f32 %v1854, %v3724
    %v3743 = vmax.f32 %v3727, 0.0
    %v3744 = vmax.f32 %v3728, 0.0
    %v3745 = vmax.f32 %v3729, 0.0
    %v3746 = vmax.f32 %v3730, 0.0
    %v3747 = vmax.f32 %v3731, 0.0
    %v3748 = vmax.f32 %v3732, 0.0
    %v3749 = vmax.f32 %v3733, 0.0
    %v3750 = vmax.f32 %v3734, 0.0
    %v3751 = vmax.f32 %v3735, 0.0
    %v3752 = vmax.f32 %v3736, 0.0
    %v3753 = vmax.f32 %v3737, 0.0
    %v3754 = vmax.f32 %v3738, 0.0
    %v3755 = vmax.f32 %v3739, 0.0
    %v3756 = vmax.f32 %v3740, 0.0
    %v3757 = vmax.f32 %v3741, 0.0
    %v3758 = vmax.f32 %v3742, 0.0
    %v3759 = vpack.c.bf16 %v3744, %v3743
    %v3760 = vpack.c.bf16 %v3746, %v3745
    %v3761 = vpack.c.bf16 %v3748, %v3747
    %v3762 = vpack.c.bf16 %v3750, %v3749
    %v3763 = vpack.c.bf16 %v3752, %v3751
    %v3764 = vpack.c.bf16 %v3754, %v3753
    %v3765 = vpack.c.bf16 %v3756, %v3755
    %v3766 = vpack.c.bf16 %v3758, %v3757
    %v3767 = vld [vmem:[#allocation11] sm:$0xff]
    %v3768 = vld [vmem:[#allocation11 + $0x8] sm:$0xff]
    %v3769 = vld [vmem:[#allocation11 + $0x10] sm:$0xff]
    %v3770 = vld [vmem:[#allocation11 + $0x18] sm:$0xff]
    %v3771 = vld [vmem:[#allocation11 + $0x20] sm:$0xff]
    %v3772 = vld [vmem:[#allocation11 + $0x28] sm:$0xff]
    %v3773 = vld [vmem:[#allocation11 + $0x30] sm:$0xff]
    %v3774 = vld [vmem:[#allocation11 + $0x38] sm:$0xff]
    %v3775 = vld [vmem:[#allocation11 + $0x40] sm:$0xff]
    %v3776 = vld [vmem:[#allocation11 + $0x48] sm:$0xff]
    %v3777 = vld [vmem:[#allocation11 + $0x50] sm:$0xff]
    %v3778 = vld [vmem:[#allocation11 + $0x58] sm:$0xff]
    %v3779 = vld [vmem:[#allocation11 + $0x60] sm:$0xff]
    %v3780 = vld [vmem:[#allocation11 + $0x68] sm:$0xff]
    %v3781 = vld [vmem:[#allocation11 + $0x70] sm:$0xff]
    %v3782 = vld [vmem:[#allocation11 + $0x78] sm:$0xff]
    %v3799 = vunpack.c.l.b16 %v3767
    %v3800 = vunpack.c.h.b16 %v3767
    %v3801 = vunpack.c.l.b16 %v3768
    %v3802 = vunpack.c.h.b16 %v3768
    %v3803 = vunpack.c.l.b16 %v3769
    %v3804 = vunpack.c.h.b16 %v3769
    %v3805 = vunpack.c.l.b16 %v3770
    %v3806 = vunpack.c.h.b16 %v3770
    %v3807 = vunpack.c.l.b16 %v3771
    %v3808 = vunpack.c.h.b16 %v3771
    %v3809 = vunpack.c.l.b16 %v3772
    %v3810 = vunpack.c.h.b16 %v3772
    %v3811 = vunpack.c.l.b16 %v3773
    %v3812 = vunpack.c.h.b16 %v3773
    %v3813 = vunpack.c.l.b16 %v3774
    %v3814 = vunpack.c.h.b16 %v3774
    %v3815 = vunpack.c.l.b16 %v3775
    %v3816 = vunpack.c.h.b16 %v3775
    %v3817 = vunpack.c.l.b16 %v3776
    %v3818 = vunpack.c.h.b16 %v3776
    %v3819 = vunpack.c.l.b16 %v3777
    %v3820 = vunpack.c.h.b16 %v3777
    %v3821 = vunpack.c.l.b16 %v3778
    %v3822 = vunpack.c.h.b16 %v3778
    %v3823 = vunpack.c.l.b16 %v3779
    %v3824 = vunpack.c.h.b16 %v3779
    %v3825 = vunpack.c.l.b16 %v3780
    %v3826 = vunpack.c.h.b16 %v3780
    %v3827 = vunpack.c.l.b16 %v3781
    %v3828 = vunpack.c.h.b16 %v3781
    %v3829 = vunpack.c.l.b16 %v3782
    %v3830 = vunpack.c.h.b16 %v3782
    %v3831 = vpack.c.b16 %v3801, %v3799
    %v3832 = vpack.c.b16 %v3802, %v3800
    %v3833 = vpack.c.b16 %v3805, %v3803
    %v3834 = vpack.c.b16 %v3806, %v3804
    %v3835 = vpack.c.b16 %v3809, %v3807
    %v3836 = vpack.c.b16 %v3810, %v3808
    %v3837 = vpack.c.b16 %v3813, %v3811
    %v3838 = vpack.c.b16 %v3814, %v3812
    %v3839 = vpack.c.b16 %v3817, %v3815
    %v3840 = vpack.c.b16 %v3818, %v3816
    %v3841 = vpack.c.b16 %v3821, %v3819
    %v3842 = vpack.c.b16 %v3822, %v3820
    %v3843 = vpack.c.b16 %v3825, %v3823
    %v3844 = vpack.c.b16 %v3826, %v3824
    %v3845 = vpack.c.b16 %v3829, %v3827
    %v3846 = vpack.c.b16 %v3830, %v3828
    %3863 = vmatprep.subr.bf16.mxu0 %v3832
    %3864 = vmatpush1.bf16.msra.mxu0 %v3831
    %3865 = vmatprep.subr.bf16.mxu0 %v3834
    %3866 = vmatpush1.bf16.msra.mxu0 %v3833
    %3867 = vmatprep.subr.bf16.mxu0 %v3836
    %3868 = vmatpush1.bf16.msra.mxu0 %v3835
    %3869 = vmatprep.subr.bf16.mxu0 %v3838
    %3870 = vmatpush1.bf16.msra.mxu0 %v3837
    %3871 = vmatprep.subr.bf16.mxu0 %v3840
    %3872 = vmatpush1.bf16.msra.mxu0 %v3839
    %3873 = vmatprep.subr.bf16.mxu0 %v3842
    %3874 = vmatpush1.bf16.msra.mxu0 %v3841
    %3875 = vmatprep.subr.bf16.mxu0 %v3844
    %3876 = vmatpush1.bf16.msra.mxu0 %v3843
    %3877 = vmatprep.subr.bf16.mxu0 %v3846
    %3878 = vmatpush1.bf16.msra.mxu0 %v3845
    %3879 = vmatprep.subr.bf16.mxu0 0
    %3880 = vmatpush1.bf16.msra.mxu0 0
    %3881 = vmatprep.subr.bf16.mxu0 0
    %3882 = vmatpush1.bf16.msra.mxu0 0
    %3883 = vmatprep.subr.bf16.mxu0 0
    %3884 = vmatpush1.bf16.msra.mxu0 0
    %3885 = vmatprep.subr.bf16.mxu0 0
    %3886 = vmatpush1.bf16.msra.mxu0 0
    %3887 = vmatprep.subr.bf16.mxu0 0
    %3888 = vmatpush1.bf16.msra.mxu0 0
    %3889 = vmatprep.subr.bf16.mxu0 0
    %3890 = vmatpush1.bf16.msra.mxu0 0
    %3891 = vmatprep.subr.bf16.mxu0 0
    %3892 = vmatpush1.bf16.msra.mxu0 0
    %3893 = vmatprep.subr.bf16.mxu0 0
    %3894 = vmatpush1.bf16.msra.mxu0 0
    %3895 = vmatprep.mubr.bf16.mxu0 0
    %3896 = vmatmul.mubr.bf16.gmra.mrb[0].mxu0 %v3759
    %v3897 = vpop.f32.mrb[0].mxu0
    %v3898 = vadd.f32 0.0, %v3897
    %v3899 = vpop.f32.mrb[0].mxu0
    %v3900 = vadd.f32 0.0, %v3899
    %v3901 = vpop.f32.mrb[0].mxu0
    %v3902 = vadd.f32 0.0, %v3901
    %v3903 = vpop.f32.mrb[0].mxu0
    %v3904 = vadd.f32 0.0, %v3903
    %3905 = vmatprep.mubr.bf16.mxu0 0
    %3906 = vmatmul.mubr.bf16.gmra.mrb[0].mxu0 %v3760
    %v3907 = vpop.f32.mrb[0].mxu0
    %v3908 = vadd.f32 0.0, %v3907
    %v3909 = vpop.f32.mrb[0].mxu0
    %v3910 = vadd.f32 0.0, %v3909
    %v3911 = vpop.f32.mrb[0].mxu0
    %v3912 = vadd.f32 0.0, %v3911
    %v3913 = vpop.f32.mrb[0].mxu0
    %v3914 = vadd.f32 0.0, %v3913
    %3915 = vmatprep.mubr.bf16.mxu0 0
    %3916 = vmatmul.mubr.bf16.gmra.mrb[0].mxu0 %v3761
    %v3917 = vpop.f32.mrb[0].mxu0
    %v3918 = vadd.f32 0.0, %v3917
    %v3919 = vpop.f32.mrb[0].mxu0
    %v3920 = vadd.f32 0.0, %v3919
    %v3921 = vpop.f32.mrb[0].mxu0
    %v3922 = vadd.f32 0.0, %v3921
    %v3923 = vpop.f32.mrb[0].mxu0
    %v3924 = vadd.f32 0.0, %v3923
    %3925 = vmatprep.mubr.bf16.mxu0 0
    %3926 = vmatmul.mubr.bf16.gmra.mrb[0].mxu0 %v3762
    %v3927 = vpop.f32.mrb[0].mxu0
    %v3928 = vadd.f32 0.0, %v3927
    %v3929 = vpop.f32.mrb[0].mxu0
    %v3930 = vadd.f32 0.0, %v3929
    %v3931 = vpop.f32.mrb[0].mxu0
    %v3932 = vadd.f32 0.0, %v3931
    %v3933 = vpop.f32.mrb[0].mxu0
    %v3934 = vadd.f32 0.0, %v3933
    %3935 = vmatprep.mubr.bf16.mxu0 0
    %3936 = vmatmul.mubr.bf16.gmra.mrb[0].mxu0 %v3763
    %v3937 = vpop.f32.mrb[0].mxu0
    %v3938 = vadd.f32 0.0, %v3937
    %v3939 = vpop.f32.mrb[0].mxu0
    %v3940 = vadd.f32 0.0, %v3939
    %v3941 = vpop.f32.mrb[0].mxu0
    %v3942 = vadd.f32 0.0, %v3941
    %v3943 = vpop.f32.mrb[0].mxu0
    %v3944 = vadd.f32 0.0, %v3943
    %3945 = vmatprep.mubr.bf16.mxu0 0
    %3946 = vmatmul.mubr.bf16.gmra.mrb[0].mxu0 %v3764
    %v3947 = vpop.f32.mrb[0].mxu0
    %v3948 = vadd.f32 0.0, %v3947
    %v3949 = vpop.f32.mrb[0].mxu0
    %v3950 = vadd.f32 0.0, %v3949
    %v3951 = vpop.f32.mrb[0].mxu0
    %v3952 = vadd.f32 0.0, %v3951
    %v3953 = vpop.f32.mrb[0].mxu0
    %v3954 = vadd.f32 0.0, %v3953
    %3955 = vmatprep.mubr.bf16.mxu0 0
    %3956 = vmatmul.mubr.bf16.gmra.mrb[0].mxu0 %v3765
    %v3957 = vpop.f32.mrb[0].mxu0
    %v3958 = vadd.f32 0.0, %v3957
    %v3959 = vpop.f32.mrb[0].mxu0
    %v3960 = vadd.f32 0.0, %v3959
    %v3961 = vpop.f32.mrb[0].mxu0
    %v3962 = vadd.f32 0.0, %v3961
    %v3963 = vpop.f32.mrb[0].mxu0
    %v3964 = vadd.f32 0.0, %v3963
    %3965 = vmatprep.mubr.bf16.mxu0 0
    %3966 = vmatmul.mubr.bf16.gmra.mrb[0].mxu0 %v3766
    %v3967 = vpop.f32.mrb[0].mxu0
    %v3968 = vadd.f32 0.0, %v3967
    %v3969 = vpop.f32.mrb[0].mxu0
    %v3970 = vadd.f32 0.0, %v3969
    %v3971 = vpop.f32.mrb[0].mxu0
    %v3972 = vadd.f32 0.0, %v3971
    %v3973 = vpop.f32.mrb[0].mxu0
    %v3974 = vadd.f32 0.0, %v3973
    %3975 = vdwg.mxu0
    %v3976 = vld [vmem:[#allocation9] sm:$0xf]
    %v3977 = vld [vmem:[#allocation9 + $0x4] sm:$0xf]
    %v3978 = vld [vmem:[#allocation9 + $0x8] sm:$0xf]
    %v3979 = vld [vmem:[#allocation9 + $0xc] sm:$0xf]
    %v3980 = vld [vmem:[#allocation9 + $0x10] sm:$0xf]
    %v3981 = vld [vmem:[#allocation9 + $0x14] sm:$0xf]
    %v3982 = vld [vmem:[#allocation9 + $0x18] sm:$0xf]
    %v3983 = vld [vmem:[#allocation9 + $0x1c] sm:$0xf]
    %v3984 = vld [vmem:[#allocation9 + $0x20] sm:$0xf]
    %v3985 = vld [vmem:[#allocation9 + $0x24] sm:$0xf]
    %v3986 = vld [vmem:[#allocation9 + $0x28] sm:$0xf]
    %v3987 = vld [vmem:[#allocation9 + $0x2c] sm:$0xf]
    %v3988 = vld [vmem:[#allocation9 + $0x30] sm:$0xf]
    %v3989 = vld [vmem:[#allocation9 + $0x34] sm:$0xf]
    %v3990 = vld [vmem:[#allocation9 + $0x38] sm:$0xf]
    %v3991 = vld [vmem:[#allocation9 + $0x3c] sm:$0xf]
    %v3992 = vpack.c.bf16 %v3902, %v3898
    %v3993 = vpack.c.bf16 %v3912, %v3908
    %v3994 = vpack.c.bf16 %v3922, %v3918
    %v3995 = vpack.c.bf16 %v3932, %v3928
    %v3996 = vpack.c.bf16 %v3942, %v3938
    %v3997 = vpack.c.bf16 %v3952, %v3948
    %v3998 = vpack.c.bf16 %v3962, %v3958
    %v3999 = vpack.c.bf16 %v3972, %v3968
    %v4016 = vunpack.c.l.b16 %v3976
    %v4017 = vunpack.c.l.b16 %v3977
    %v4018 = vunpack.c.l.b16 %v3978
    %v4019 = vunpack.c.l.b16 %v3979
    %v4020 = vunpack.c.l.b16 %v3980
    %v4021 = vunpack.c.l.b16 %v3981
    %v4022 = vunpack.c.l.b16 %v3982
    %v4023 = vunpack.c.l.b16 %v3983
    %v4024 = vunpack.c.l.b16 %v3984
    %v4025 = vunpack.c.l.b16 %v3985
    %v4026 = vunpack.c.l.b16 %v3986
    %v4027 = vunpack.c.l.b16 %v3987
    %v4028 = vunpack.c.l.b16 %v3988
    %v4029 = vunpack.c.l.b16 %v3989
    %v4030 = vunpack.c.l.b16 %v3990
    %v4031 = vunpack.c.l.b16 %v3991
    %v4032 = vpack.c.b16 %v4017, %v4016
    %v4033 = vpack.c.b16 %v4019, %v4018
    %v4034 = vpack.c.b16 %v4021, %v4020
    %v4035 = vpack.c.b16 %v4023, %v4022
    %v4036 = vpack.c.b16 %v4025, %v4024
    %v4037 = vpack.c.b16 %v4027, %v4026
    %v4038 = vpack.c.b16 %v4029, %v4028
    %v4039 = vpack.c.b16 %v4031, %v4030
    %4048 = vmatprep.subr.bf16.mxu0 0
    %4049 = vmatpush1.bf16.msra.mxu0 %v3992
    %4050 = vmatprep.subr.bf16.mxu0 0
    %4051 = vmatpush1.bf16.msra.mxu0 %v3993
    %4052 = vmatprep.subr.bf16.mxu0 0
    %4053 = vmatpush1.bf16.msra.mxu0 %v3994
    %4054 = vmatprep.subr.bf16.mxu0 0
    %4055 = vmatpush1.bf16.msra.mxu0 %v3995
    %4056 = vmatprep.subr.bf16.mxu0 0
    %4057 = vmatpush1.bf16.msra.mxu0 %v3996
    %4058 = vmatprep.subr.bf16.mxu0 0
    %4059 = vmatpush1.bf16.msra.mxu0 %v3997
    %4060 = vmatprep.subr.bf16.mxu0 0
    %4061 = vmatpush1.bf16.msra.mxu0 %v3998
    %4062 = vmatprep.subr.bf16.mxu0 0
    %4063 = vmatpush1.bf16.msra.mxu0 %v3999
    %4064 = vmatprep.subr.bf16.mxu0 0
    %4065 = vmatpush1.bf16.msra.mxu0 0
    %4066 = vmatprep.subr.bf16.mxu0 0
    %4067 = vmatpush1.bf16.msra.mxu0 0
    %4068 = vmatprep.subr.bf16.mxu0 0
    %4069 = vmatpush1.bf16.msra.mxu0 0
    %4070 = vmatprep.subr.bf16.mxu0 0
    %4071 = vmatpush1.bf16.msra.mxu0 0
    %4072 = vmatprep.subr.bf16.mxu0 0
    %4073 = vmatpush1.bf16.msra.mxu0 0
    %4074 = vmatprep.subr.bf16.mxu0 0
    %4075 = vmatpush1.bf16.msra.mxu0 0
    %4076 = vmatprep.subr.bf16.mxu0 0
    %4077 = vmatpush1.bf16.msra.mxu0 0
    %4078 = vmatprep.subr.bf16.mxu0 0
    %4079 = vmatpush1.bf16.msra.mxu0 0
    %4080 = vmatprep.mubr.bf16.mxu0 0
    %4081 = vmatmul.mubr.bf16.gmra.mrb[0].mxu0 %v4032
    %v4082 = vpop.f32.mrb[0].mxu0
    %v4083 = vadd.f32 %v3900, %v4082
    %v4084 = vpop.f32.mrb[0].mxu0
    %v4085 = vpop.f32.mrb[0].mxu0
    %v4086 = vadd.f32 %v3904, %v4085
    %v4087 = vpop.f32.mrb[0].mxu0
    %4088 = vmatprep.mubr.bf16.mxu0 0
    %4089 = vmatmul.mubr.bf16.gmra.mrb[0].mxu0 %v4033
    %v4090 = vpop.f32.mrb[0].mxu0
    %v4091 = vadd.f32 %v3910, %v4090
    %v4092 = vpop.f32.mrb[0].mxu0
    %v4093 = vpop.f32.mrb[0].mxu0
    %v4094 = vadd.f32 %v3914, %v4093
    %v4095 = vpop.f32.mrb[0].mxu0
    %4096 = vmatprep.mubr.bf16.mxu0 0
    %4097 = vmatmul.mubr.bf16.gmra.mrb[0].mxu0 %v4034
    %v4098 = vpop.f32.mrb[0].mxu0
    %v4099 = vadd.f32 %v3920, %v4098
    %v4100 = vpop.f32.mrb[0].mxu0
    %v4101 = vpop.f32.mrb[0].mxu0
    %v4102 = vadd.f32 %v3924, %v4101
    %v4103 = vpop.f32.mrb[0].mxu0
    %4104 = vmatprep.mubr.bf16.mxu0 0
    %4105 = vmatmul.mubr.bf16.gmra.mrb[0].mxu0 %v4035
    %v4106 = vpop.f32.mrb[0].mxu0
    %v4107 = vadd.f32 %v3930, %v4106
    %v4108 = vpop.f32.mrb[0].mxu0
    %v4109 = vpop.f32.mrb[0].mxu0
    %v4110 = vadd.f32 %v3934, %v4109
    %v4111 = vpop.f32.mrb[0].mxu0
    %4112 = vmatprep.mubr.bf16.mxu0 0
    %4113 = vmatmul.mubr.bf16.gmra.mrb[0].mxu0 %v4036
    %v4114 = vpop.f32.mrb[0].mxu0
    %v4115 = vadd.f32 %v3940, %v4114
    %v4116 = vpop.f32.mrb[0].mxu0
    %v4117 = vpop.f32.mrb[0].mxu0
    %v4118 = vadd.f32 %v3944, %v4117
    %v4119 = vpop.f32.mrb[0].mxu0
    %4120 = vmatprep.mubr.bf16.mxu0 0
    %4121 = vmatmul.mubr.bf16.gmra.mrb[0].mxu0 %v4037
    %v4122 = vpop.f32.mrb[0].mxu0
    %v4123 = vadd.f32 %v3950, %v4122
    %v4124 = vpop.f32.mrb[0].mxu0
    %v4125 = vpop.f32.mrb[0].mxu0
    %v4126 = vadd.f32 %v3954, %v4125
    %v4127 = vpop.f32.mrb[0].mxu0
    %4128 = vmatprep.mubr.bf16.mxu0 0
    %4129 = vmatmul.mubr.bf16.gmra.mrb[0].mxu0 %v4038
    %v4130 = vpop.f32.mrb[0].mxu0
    %v4131 = vadd.f32 %v3960, %v4130
    %v4132 = vpop.f32.mrb[0].mxu0
    %v4133 = vpop.f32.mrb[0].mxu0
    %v4134 = vadd.f32 %v3964, %v4133
    %v4135 = vpop.f32.mrb[0].mxu0
    %4136 = vmatprep.mubr.bf16.mxu0 0
    %4137 = vmatmul.mubr.bf16.gmra.mrb[0].mxu0 %v4039
    %v4138 = vpop.f32.mrb[0].mxu0
    %v4139 = vadd.f32 %v3970, %v4138
    %v4140 = vpop.f32.mrb[0].mxu0
    %v4141 = vpop.f32.mrb[0].mxu0
    %v4142 = vadd.f32 %v3974, %v4141
    %v4143 = vpop.f32.mrb[0].mxu0
    %4144 = vdwg.mxu0
    %v4145 = vld [vmem:[%s6] sm:$0x1]
    %v4147 = vlaneseq
    %v4148 = vshrl.u32 %v4147, 7
    %v4149 = vsub.s32 0, %v4148
    %v4150 = vrot.slane %v4145, %v4149
    %v4152 = vadd.f32 %v4083, %v4150
    %v4153 = vadd.f32 %v4086, %v4150
    %v4154 = vadd.f32 %v4091, %v4150
    %v4155 = vadd.f32 %v4094, %v4150
    %v4156 = vadd.f32 %v4099, %v4150
    %v4157 = vadd.f32 %v4102, %v4150
    %v4158 = vadd.f32 %v4107, %v4150
    %v4159 = vadd.f32 %v4110, %v4150
    %v4160 = vadd.f32 %v4115, %v4150
    %v4161 = vadd.f32 %v4118, %v4150
    %v4162 = vadd.f32 %v4123, %v4150
    %v4163 = vadd.f32 %v4126, %v4150
    %v4164 = vadd.f32 %v4131, %v4150
    %v4165 = vadd.f32 %v4134, %v4150
    %v4166 = vadd.f32 %v4139, %v4150
    %v4167 = vadd.f32 %v4142, %v4150
    %vm4168 = vcmp.gt.f32.partialorder %v4152, 0.0
    %vm4169 = vcmp.gt.f32.partialorder %v4153, 0.0
    %vm4170 = vcmp.gt.f32.partialorder %v4154, 0.0
    %vm4171 = vcmp.gt.f32.partialorder %v4155, 0.0
    %vm4172 = vcmp.gt.f32.partialorder %v4156, 0.0
    %vm4173 = vcmp.gt.f32.partialorder %v4157, 0.0
    %vm4174 = vcmp.gt.f32.partialorder %v4158, 0.0
    %vm4175 = vcmp.gt.f32.partialorder %v4159, 0.0
    %vm4176 = vcmp.gt.f32.partialorder %v4160, 0.0
    %vm4177 = vcmp.gt.f32.partialorder %v4161, 0.0
    %vm4178 = vcmp.gt.f32.partialorder %v4162, 0.0
    %vm4179 = vcmp.gt.f32.partialorder %v4163, 0.0
    %vm4180 = vcmp.gt.f32.partialorder %v4164, 0.0
    %vm4181 = vcmp.gt.f32.partialorder %v4165, 0.0
    %vm4182 = vcmp.gt.f32.partialorder %v4166, 0.0
    %vm4183 = vcmp.gt.f32.partialorder %v4167, 0.0
    %v4184 = vmul.f32 %v4152, 0.01
    %v4185 = vmul.f32 %v4153, 0.01
    %v4186 = vmul.f32 %v4154, 0.01
    %v4187 = vmul.f32 %v4155, 0.01
    %v4188 = vmul.f32 %v4156, 0.01
    %v4189 = vmul.f32 %v4157, 0.01
    %v4190 = vmul.f32 %v4158, 0.01
    %v4191 = vmul.f32 %v4159, 0.01
    %v4192 = vmul.f32 %v4160, 0.01
    %v4193 = vmul.f32 %v4161, 0.01
    %v4194 = vmul.f32 %v4162, 0.01
    %v4195 = vmul.f32 %v4163, 0.01
    %v4196 = vmul.f32 %v4164, 0.01
    %v4197 = vmul.f32 %v4165, 0.01
    %v4198 = vmul.f32 %v4166, 0.01
    %v4199 = vmul.f32 %v4167, 0.01
    %v4200 = vsel %vm4168, %v4152, %v4184
    %v4201 = vsel %vm4169, %v4153, %v4185
    %v4202 = vsel %vm4170, %v4154, %v4186
    %v4203 = vsel %vm4171, %v4155, %v4187
    %v4204 = vsel %vm4172, %v4156, %v4188
    %v4205 = vsel %vm4173, %v4157, %v4189
    %v4206 = vsel %vm4174, %v4158, %v4190
    %v4207 = vsel %vm4175, %v4159, %v4191
    %v4208 = vsel %vm4176, %v4160, %v4192
    %v4209 = vsel %vm4177, %v4161, %v4193
    %v4210 = vsel %vm4178, %v4162, %v4194
    %v4211 = vsel %vm4179, %v4163, %v4195
    %v4212 = vsel %vm4180, %v4164, %v4196
    %v4213 = vsel %vm4181, %v4165, %v4197
    %v4214 = vsel %vm4182, %v4166, %v4198
    %v4215 = vsel %vm4183, %v4167, %v4199
    %4216 = vst [vmem:[#allocation12] sm:$0xff] %v4200
    %4217 = vst [vmem:[#allocation12 + $0x8] sm:$0xff] %v4201
    %4218 = vst [vmem:[#allocation12 + $0x10] sm:$0xff] %v4202
    %4219 = vst [vmem:[#allocation12 + $0x18] sm:$0xff] %v4203
    %4220 = vst [vmem:[#allocation12 + $0x20] sm:$0xff] %v4204
    %4221 = vst [vmem:[#allocation12 + $0x28] sm:$0xff] %v4205
    %4222 = vst [vmem:[#allocation12 + $0x30] sm:$0xff] %v4206
    %4223 = vst [vmem:[#allocation12 + $0x38] sm:$0xff] %v4207
    %4224 = vst [vmem:[#allocation12 + $0x40] sm:$0xff] %v4208
    %4225 = vst [vmem:[#allocation12 + $0x48] sm:$0xff] %v4209
    %4226 = vst [vmem:[#allocation12 + $0x50] sm:$0xff] %v4210
    %4227 = vst [vmem:[#allocation12 + $0x58] sm:$0xff] %v4211
    %4228 = vst [vmem:[#allocation12 + $0x60] sm:$0xff] %v4212
    %4229 = vst [vmem:[#allocation12 + $0x68] sm:$0xff] %v4213
    %4230 = vst [vmem:[#allocation12 + $0x70] sm:$0xff] %v4214
    %4231 = vst [vmem:[#allocation12 + $0x78] sm:$0xff] %v4215
    // Predicated region
    $region50: #{tpu_custom_call.1} parent=1 // pred_check
      _
    $region51: #{tpu_custom_call.1} parent=1 // pred_check_branch
      %4233 = sbr.rel (0) target = $region53
    $region52: #{tpu_custom_call.1} parent=1 // pred_region
      %s4235 = ssub.s32 2048, 2048
      %4236 = vsyncadd [#allocation5], %s4235
      %s4237 = sshll.u32 [#allocation12], 4
      %s4238 = int_to_ptr.vmem [resolvable:$true] %s4237
      %4243 = dma.vmem_to_hbm [thread:$0]  %s4238, 2048, %s7, [#allocation5], 128, 128, 8
    $region53: #{tpu_custom_call.1} parent=1 // pred_fallthru
      _
    // Predicated region
    $region54: #{tpu_custom_call.1} parent=1 // pred_check
      _
    $region55: #{tpu_custom_call.1} parent=1 // pred_check_branch
      %4245 = sbr.rel (0) target = $region57
    $region56: #{tpu_custom_call.1} parent=1 // pred_region
      %4246 = dma.done [#allocation5], 2048
    $region57: #{tpu_custom_call.1} parent=1 // pred_fallthru
      _
    %4247 = vsyncpa [#allocation4], 1
    %4248 = vsyncpa [#allocation7], 1
    %4249 = vsyncpa [#allocation10], 1
    %4250 = vsyncpa [#allocation5], 1

</llo_original>
